<compile_context>
chip_gen: v6e
topology: v6e:2x2x1
jax: 0.10.0
libtpu: 0.0.40
codegen_flags: <defaults>
</compile_context>

<pallas_src>
import math
import functools

import jax
import jax.numpy as jnp
from jax import lax
from jax.experimental import pallas as pl
from jax.experimental.pallas import tpu as pltpu


# ----------------------------------------------------------------------------
# shared math helpers (used by both the kernel and the pure-JAX reference)
# ----------------------------------------------------------------------------
def _layernorm(h, w, b, eps):
    mu = jnp.mean(h, axis=-1, keepdims=True)
    var = jnp.mean(jnp.square(h - mu), axis=-1, keepdims=True)
    return (h - mu) * lax.rsqrt(var + eps) * w + b


def _gelu(m, exact):
    if exact:   # PyTorch F.gelu default (erf form)
        return 0.5 * m * (1.0 + lax.erf(m * (1.0 / math.sqrt(2.0))))
    # tanh approximation (EUP-friendly)
    return 0.5 * m * (1.0 + jnp.tanh(math.sqrt(2.0 / math.pi) * (m + 0.044715 * m**3)))


# ----------------------------------------------------------------------------
# kernel: one grid program == one batch element (full (T, C) resident)
# ----------------------------------------------------------------------------
def _block_kernel(x_ref,
                  ln1w_ref, ln1b_ref,
                  wqkv_ref, bqkv_ref,
                  wp_ref, bp_ref,
                  ln2w_ref, ln2b_ref,
                  w1_ref, b1_ref, w2_ref, b2_ref,
                  o_ref,
                  *, n_head, eps, exact_gelu):
    x = x_ref[0]                                   # (T, C) f32
    T, C = x.shape
    D = C // n_head
    mm_dtype = wqkv_ref.dtype                      # bf16 (MXU operand dtype)

    # ---- LN1 (f32, VPU) -----------------------------------------------------
    h = _layernorm(x, ln1w_ref[0], ln1b_ref[0], eps)

    # ---- fused QKV projection: one wide MXU pass (T,C)@(C,3C), f32 accum ----
    qkv = jnp.dot(h.astype(mm_dtype), wqkv_ref[...],
                  preferred_element_type=jnp.float32) + bqkv_ref[0]   # (T, 3C)

    # ---- split into heads once: columns are head-major [q_h | k_h | v_h] ----
    qkv_h = jnp.stack(
        [qkv[:, hh * 3 * D:(hh + 1) * 3 * D] for hh in range(n_head)],
        axis=0)                                    # (H, T, 3D) — major-axis stack
    q = qkv_h[:, :, 0:D]
    k = qkv_h[:, :, D:2 * D]
    v = qkv_h[:, :, 2 * D:3 * D]

    # ---- causal attention, heads batched on the MXU -------------------------
    scale = jnp.float32(1.0 / math.sqrt(D))
    scores = jnp.einsum('htd,hsd->hts',
                        q.astype(mm_dtype), k.astype(mm_dtype),
                        preferred_element_type=jnp.float32) * scale   # (H, T, T)
    row = lax.broadcasted_iota(jnp.int32, (T, T), 0)
    col = lax.broadcasted_iota(jnp.int32, (T, T), 1)
    scores = jnp.where(col <= row, scores, jnp.float32(-1e30))        # causal mask
    scores = scores - jnp.max(scores, axis=-1, keepdims=True)
    p = jnp.exp(scores)
    denom = jnp.sum(p, axis=-1, keepdims=True)
    p = p * pl.reciprocal(denom, approx=True)      # EUP reciprocal (free slot)

    y = jnp.einsum('hts,hsd->htd',
                   p.astype(mm_dtype), v.astype(mm_dtype),
                   preferred_element_type=jnp.float32)                # (H, T, D)

    # ---- head merge fused with output projection (no concatenate) -----------
    # (H,T,D) @ (H,D,C) batched, then reduce over heads (major-axis vreg adds).
    y_proj = jnp.einsum('htd,hdc->htc',
                        y.astype(mm_dtype), wp_ref[...],
                        preferred_element_type=jnp.float32)
    y_proj = jnp.sum(y_proj, axis=0) + bp_ref[0]                      # (T, C)

    x1 = x + y_proj                                # residual 1

    # ---- LN2 + MLP -----------------------------------------------------------
    h2 = _layernorm(x1, ln2w_ref[0], ln2b_ref[0], eps)
    m = jnp.dot(h2.astype(mm_dtype), w1_ref[...],
                preferred_element_type=jnp.float32) + b1_ref[0]       # (T, 4C)
    m = _gelu(m, exact_gelu)                       # f32 elementwise
    m = jnp.dot(m.astype(mm_dtype), w2_ref[...],
                preferred_element_type=jnp.float32) + b2_ref[0]       # (T, C)

    o_ref[0] = (x1 + m).astype(o_ref.dtype)        # residual 2


# ----------------------------------------------------------------------------
# wrapper
# ----------------------------------------------------------------------------
def pack_params(raw, n_head, matmul_dtype=jnp.bfloat16):
    """Pre-arrange raw (in_features, out_features) weights for the fused kernel.

    - Q/K/V weights fused into one (C, 3C) matrix, columns head-major so each
      head owns a contiguous 3D-wide slab of the fused projection output.
    - proj weight reshaped to (H, D, C) for the batched head-merge matmul.
    - matmul weights stored in `matmul_dtype` (bf16); biases / LN params in f32.
    """
    C = raw["wq"].shape[0]
    D = C // n_head
    md = matmul_dtype

    def wh(w):   # (C, C) -> (C, H, 1, D) split of the output-feature axis
        return w.reshape(C, n_head, 1, D)

    def bh(b):   # (C,) -> (1, H, 1, D)
        return b.reshape(1, n_head, 1, D)

    wqkv = jnp.concatenate([wh(raw["wq"]), wh(raw["wk"]), wh(raw["wv"])],
                           axis=2).reshape(C, 3 * C)
    bqkv = jnp.concatenate([bh(raw["bq"]), bh(raw["bk"]), bh(raw["bv"])],
                           axis=2).reshape(1, 3 * C)

    f32 = jnp.float32
    return dict(
        ln1_w=raw["ln1_w"].reshape(1, C).astype(f32),
        ln1_b=raw["ln1_b"].reshape(1, C).astype(f32),
        wqkv=wqkv.astype(md),
        bqkv=bqkv.astype(f32),
        wp=raw["wp"].reshape(n_head, D, C).astype(md),
        bp=raw["bp"].reshape(1, C).astype(f32),
        ln2_w=raw["ln2_w"].reshape(1, C).astype(f32),
        ln2_b=raw["ln2_b"].reshape(1, C).astype(f32),
        w1=raw["w1"].astype(md),
        b1=raw["b1"].reshape(1, 4 * C).astype(f32),
        w2=raw["w2"].astype(md),
        b2=raw["b2"].reshape(1, C).astype(f32),
    )


def transformer_block(x, params, n_head, *, eps=1e-5, exact_gelu=True,
                      resident_weights=True):
    """x: (B, T, C) float32; params: output of pack_params()."""
    B, T, C = x.shape

    weight_names = ["ln1_w", "ln1_b", "wqkv", "bqkv", "wp", "bp",
                    "ln2_w", "ln2_b", "w1", "b1", "w2", "b2"]
    weights = [params[n] for n in weight_names]

    if resident_weights:
        # Whole-array VMEM residents: loaded once, single-buffered (no per-step
        # double-buffer DMA for grid-invariant weights).
        w_specs = [pl.BlockSpec(memory_space=pltpu.MemorySpace.VMEM)
                   for _ in weights]
    else:
        # Fallback: full-shape blocked specs with constant index maps.
        def const_spec(arr):
            nd = arr.ndim
            return pl.BlockSpec(arr.shape, lambda b, _nd=nd: (0,) * _nd)
        w_specs = [const_spec(a) for a in weights]

    in_specs = [pl.BlockSpec((1, T, C), lambda b: (b, 0, 0))] + w_specs
    out_spec = pl.BlockSpec((1, T, C), lambda b: (b, 0, 0))

    # Raise the scoped VMEM limit (default 16-32 MiB) with per-chip headroom.
    try:
        vmem_cap = int(pltpu.get_tpu_info().vmem_capacity_bytes)
    except Exception:
        vmem_cap = 64 * 1024 * 1024
    vmem_limit = min(int(vmem_cap * 3 // 4), 96 * 1024 * 1024)

    kernel = functools.partial(_block_kernel, n_head=n_head, eps=eps,
                               exact_gelu=exact_gelu)

    return pl.pallas_call(
        kernel,
        out_shape=jax.ShapeDtypeStruct((B, T, C), jnp.float32),
        grid_spec=pltpu.PrefetchScalarGridSpec(
            num_scalar_prefetch=0,
            grid=(B,),
            in_specs=in_specs,
            out_specs=out_spec),
        compiler_params=pltpu.CompilerParams(
            dimension_semantics=("parallel",),      # B>=2 -> both v7x TCs busy
            vmem_limit_bytes=vmem_limit),
    )(x, *weights)


# ----------------------------------------------------------------------------
# pure-JAX reference mirroring the PyTorch forward (dropout = identity)
# ----------------------------------------------------------------------------
def _reference_block(x, raw, n_head, eps=1e-5, matmul_dtype=None, exact_gelu=True):
    B, T, C = x.shape
    D = C // n_head
    md = matmul_dtype

    def mm(eq, a, b):
        if md is not None:
            a = a.astype(md)
            b = b.astype(md)
        return jnp.einsum(eq, a, b, preferred_element_type=jnp.float32)

    h = _layernorm(x, raw["ln1_w"], raw["ln1_b"], eps)
    q = mm('btc,cf->btf', h, raw["wq"]) + raw["bq"]
    k = mm('btc,cf->btf', h, raw["wk"]) + raw["bk"]
    v = mm('btc,cf->btf', h, raw["wv"]) + raw["bv"]
    q = q.reshape(B, T, n_head, D).transpose(0, 2, 1, 3)
    k = k.reshape(B, T, n_head, D).transpose(0, 2, 1, 3)
    v = v.reshape(B, T, n_head, D).transpose(0, 2, 1, 3)
    att = mm('bhtd,bhsd->bhts', q, k) * (1.0 / math.sqrt(D))
    mask = jnp.tril(jnp.ones((T, T), bool))
    att = jnp.where(mask, att, -jnp.inf)
    att = jax.nn.softmax(att, axis=-1)
    y = mm('bhts,bhsd->bhtd', att, v)
    y = y.transpose(0, 2, 1, 3).reshape(B, T, C)
    x1 = x + mm('btc,cf->btf', y, raw["wp"]) + raw["bp"]
    h2 = _layernorm(x1, raw["ln2_w"], raw["ln2_b"], eps)
    m = mm('btc,cf->btf', h2, raw["w1"]) + raw["b1"]
    m = _gelu(m, exact_gelu)
    m = mm('btf,fc->btc', m, raw["w2"]) + raw["b2"]
    return x1 + m


# ----------------------------------------------------------------------------
if __name__ == "__main__":
    # Small but lane-dense config: B=2, block_size T=8, n_embd C=128, n_head=4.
    B, T, C, n_head = 2, 8, 128, 4
    key = jax.random.PRNGKey(0)
    ks = jax.random.split(key, 16)

    def lin(kw, kb, fan_in, fan_out):
        w = jax.random.normal(kw, (fan_in, fan_out), jnp.float32) / math.sqrt(fan_in)
        b = 0.02 * jax.random.normal(kb, (fan_out,), jnp.float32)
        return w, b

    wq, bq = lin(ks[0], ks[1], C, C)
    wk, bk = lin(ks[2], ks[3], C, C)
    wv, bv = lin(ks[4], ks[5], C, C)
    wp, bp = lin(ks[6], ks[7], C, C)
    w1, b1 = lin(ks[8], ks[9], C, 4 * C)
    w2, b2 = lin(ks[10], ks[11], 4 * C, C)

    raw = dict(
        ln1_w=jnp.ones((C,), jnp.float32) + 0.1 * jax.random.normal(ks[12], (C,), jnp.float32),
        ln1_b=0.05 * jax.random.normal(ks[13], (C,), jnp.float32),
        ln2_w=jnp.ones((C,), jnp.float32),
        ln2_b=jnp.zeros((C,), jnp.float32),
        wq=wq, bq=bq, wk=wk, bk=bk, wv=wv, bv=bv, wp=wp, bp=bp,
        w1=w1, b1=b1, w2=w2, b2=b2)

    x = jax.random.normal(ks[14], (B, T, C), jnp.float32)

    params = pack_params(raw, n_head, matmul_dtype=jnp.bfloat16)

    try:
        out = jax.block_until_ready(
            transformer_block(x, params, n_head, resident_weights=True))
    except Exception:
        # Fallback: blocked (pipelined) weight specs if the resident-VMEM form
        # is rejected by this jax build.
        out = jax.block_until_ready(
            transformer_block(x, params, n_head, resident_weights=False))

    # Reference that mirrors the kernel's bf16-operand / f32-accumulate matmuls.
    ref_matched = _reference_block(x, raw, n_head, matmul_dtype=jnp.bfloat16)
    # Pure f32 reference (the exact PyTorch semantics) — loose tolerance covers
    # the intentional bf16 MXU-operand quantization.
    ref_f32 = _reference_block(x, raw, n_head, matmul_dtype=None)

    assert out.shape == (B, T, C)
    assert bool(jnp.allclose(out, ref_matched, atol=3e-2, rtol=3e-2)), \
        "mismatch vs bf16-matched reference"
    assert bool(jnp.allclose(out, ref_f32, atol=2e-1, rtol=2e-1)), \
        "mismatch vs f32 reference"

    print("KERNEL_OK")
</pallas_src>

<mosaic_0001>
module attributes {stable_mosaic.version = 11 : i64} {
  func.func @_block_kernel(%arg0: i32, %arg1: memref<1x8x128xf32, #tpu.memory_space<vmem>>, %arg2: memref<1x128xf32, #tpu.memory_space<vmem>>, %arg3: memref<1x128xf32, #tpu.memory_space<vmem>>, %arg4: memref<128x384xbf16, #tpu.memory_space<vmem>>, %arg5: memref<1x384xf32, #tpu.memory_space<vmem>>, %arg6: memref<4x32x128xbf16, #tpu.memory_space<vmem>>, %arg7: memref<1x128xf32, #tpu.memory_space<vmem>>, %arg8: memref<1x128xf32, #tpu.memory_space<vmem>>, %arg9: memref<1x128xf32, #tpu.memory_space<vmem>>, %arg10: memref<128x512xbf16, #tpu.memory_space<vmem>>, %arg11: memref<1x512xf32, #tpu.memory_space<vmem>>, %arg12: memref<512x128xbf16, #tpu.memory_space<vmem>>, %arg13: memref<1x128xf32, #tpu.memory_space<vmem>>, %arg14: memref<1x8x128xf32, #tpu.memory_space<vmem>>) attributes {dimension_semantics = [#tpu.dimension_semantics<parallel>], iteration_bounds = array<i64: 2>, scalar_prefetch = 0 : i64, scratch_operands = 0 : i64, tpu.core_type = #tpu.core_type<tc>, window_params = [{transform_indices = @transform_0, window_bounds = array<i64: 1, 8, 128>}, {pipeline_mode = #tpu.pipeline_mode<synchronous>, transform_indices = @transform_1, window_bounds = array<i64: 1, 128>}, {pipeline_mode = #tpu.pipeline_mode<synchronous>, transform_indices = @transform_2, window_bounds = array<i64: 1, 128>}, {pipeline_mode = #tpu.pipeline_mode<synchronous>, transform_indices = @transform_3, window_bounds = array<i64: 128, 384>}, {pipeline_mode = #tpu.pipeline_mode<synchronous>, transform_indices = @transform_4, window_bounds = array<i64: 1, 384>}, {pipeline_mode = #tpu.pipeline_mode<synchronous>, transform_indices = @transform_5, window_bounds = array<i64: 4, 32, 128>}, {pipeline_mode = #tpu.pipeline_mode<synchronous>, transform_indices = @transform_6, window_bounds = array<i64: 1, 128>}, {pipeline_mode = #tpu.pipeline_mode<synchronous>, transform_indices = @transform_7, window_bounds = array<i64: 1, 128>}, {pipeline_mode = #tpu.pipeline_mode<synchronous>, transform_indices = @transform_8, window_bounds = array<i64: 1, 128>}, {pipeline_mode = #tpu.pipeline_mode<synchronous>, transform_indices = @transform_9, window_bounds = array<i64: 128, 512>}, {pipeline_mode = #tpu.pipeline_mode<synchronous>, transform_indices = @transform_10, window_bounds = array<i64: 1, 512>}, {pipeline_mode = #tpu.pipeline_mode<synchronous>, transform_indices = @transform_11, window_bounds = array<i64: 512, 128>}, {pipeline_mode = #tpu.pipeline_mode<synchronous>, transform_indices = @transform_12, window_bounds = array<i64: 1, 128>}, {transform_indices = @transform_13, window_bounds = array<i64: 1, 8, 128>}]} {
    %c0 = arith.constant 0 : index
    %c0_0 = arith.constant 0 : index
    %c0_1 = arith.constant 0 : index
    %0 = vector.load %arg1[%c0, %c0_0, %c0_1] : memref<1x8x128xf32, #tpu.memory_space<vmem>>, vector<1x8x128xf32>
    %1 = vector.shape_cast %0 : vector<1x8x128xf32> to vector<8x128xf32>
    %c0_2 = arith.constant 0 : index
    %c0_3 = arith.constant 0 : index
    %2 = vector.load %arg2[%c0_2, %c0_3] : memref<1x128xf32, #tpu.memory_space<vmem>>, vector<1x128xf32>
    %3 = vector.shape_cast %2 : vector<1x128xf32> to vector<128xf32>
    %c0_4 = arith.constant 0 : index
    %c0_5 = arith.constant 0 : index
    %4 = vector.load %arg3[%c0_4, %c0_5] : memref<1x128xf32, #tpu.memory_space<vmem>>, vector<1x128xf32>
    %5 = vector.shape_cast %4 : vector<1x128xf32> to vector<128xf32>
    %cst = arith.constant dense<0.000000e+00> : vector<8xf32>
    %6 = vector.multi_reduction <add>, %1, %cst [1] : vector<8x128xf32> to vector<8xf32>
    %7 = vector.shape_cast %6 : vector<8xf32> to vector<8x1xf32>
    %cst_6 = arith.constant 1.280000e+02 : f32
    %8 = vector.broadcast %cst_6 : f32 to vector<8x1xf32>
    %9 = arith.divf %7, %8 : vector<8x1xf32>
    %10 = vector.broadcast %9 : vector<8x1xf32> to vector<8x128xf32>
    %11 = arith.subf %1, %10 : vector<8x128xf32>
    %12 = arith.mulf %11, %11 : vector<8x128xf32>
    %cst_7 = arith.constant dense<0.000000e+00> : vector<8xf32>
    %13 = vector.multi_reduction <add>, %12, %cst_7 [1] : vector<8x128xf32> to vector<8xf32>
    %14 = vector.shape_cast %13 : vector<8xf32> to vector<8x1xf32>
    %cst_8 = arith.constant 1.280000e+02 : f32
    %15 = vector.broadcast %cst_8 : f32 to vector<8x1xf32>
    %16 = arith.divf %14, %15 : vector<8x1xf32>
    %17 = vector.broadcast %9 : vector<8x1xf32> to vector<8x128xf32>
    %18 = arith.subf %1, %17 : vector<8x128xf32>
    %cst_9 = arith.constant 9.99999974E-6 : f32
    %19 = vector.broadcast %cst_9 : f32 to vector<8x1xf32>
    %20 = arith.addf %16, %19 : vector<8x1xf32>
    %21 = math.rsqrt %20 : vector<8x1xf32>
    %22 = vector.broadcast %21 : vector<8x1xf32> to vector<8x128xf32>
    %23 = arith.mulf %18, %22 : vector<8x128xf32>
    %24 = vector.shape_cast %3 : vector<128xf32> to vector<1x128xf32>
    %25 = vector.broadcast %24 : vector<1x128xf32> to vector<8x128xf32>
    %26 = arith.mulf %23, %25 : vector<8x128xf32>
    %27 = vector.shape_cast %5 : vector<128xf32> to vector<1x128xf32>
    %28 = vector.broadcast %27 : vector<1x128xf32> to vector<8x128xf32>
    %29 = arith.addf %26, %28 : vector<8x128xf32>
    %30 = arith.truncf %29 : vector<8x128xf32> to vector<8x128xbf16>
    %c0_10 = arith.constant 0 : index
    %c0_11 = arith.constant 0 : index
    %31 = vector.load %arg4[%c0_10, %c0_11] : memref<128x384xbf16, #tpu.memory_space<vmem>>, vector<128x384xbf16>
    %cst_12 = arith.constant dense<0.000000e+00> : vector<8x384xf32>
    %32 = tpu.matmul %30, %31, %cst_12 {dimension_numbers = #tpu.dot_dimension_numbers<[1], [0], [0], [1], [0, 0, 1, 1], [], []>} : vector<8x128xbf16>, vector<128x384xbf16>, vector<8x384xf32> -> vector<8x384xf32>
    %c0_13 = arith.constant 0 : index
    %c0_14 = arith.constant 0 : index
    %33 = vector.load %arg5[%c0_13, %c0_14] : memref<1x384xf32, #tpu.memory_space<vmem>>, vector<1x384xf32>
    %34 = vector.shape_cast %33 : vector<1x384xf32> to vector<384xf32>
    %35 = vector.shape_cast %34 : vector<384xf32> to vector<1x384xf32>
    %36 = vector.broadcast %35 : vector<1x384xf32> to vector<8x384xf32>
    %37 = arith.addf %32, %36 : vector<8x384xf32>
    %38 = vector.extract_strided_slice %37 {offsets = [0, 0], sizes = [8, 96], strides = [1, 1]} : vector<8x384xf32> to vector<8x96xf32>
    %39 = vector.extract_strided_slice %37 {offsets = [0, 96], sizes = [8, 96], strides = [1, 1]} : vector<8x384xf32> to vector<8x96xf32>
    %40 = vector.extract_strided_slice %37 {offsets = [0, 192], sizes = [8, 96], strides = [1, 1]} : vector<8x384xf32> to vector<8x96xf32>
    %41 = vector.extract_strided_slice %37 {offsets = [0, 288], sizes = [8, 96], strides = [1, 1]} : vector<8x384xf32> to vector<8x96xf32>
    %42 = vector.shape_cast %38 : vector<8x96xf32> to vector<1x8x96xf32>
    %43 = vector.shape_cast %39 : vector<8x96xf32> to vector<1x8x96xf32>
    %44 = vector.shape_cast %40 : vector<8x96xf32> to vector<1x8x96xf32>
    %45 = vector.shape_cast %41 : vector<8x96xf32> to vector<1x8x96xf32>
    %46 = tpu.concatenate %42, %43, %44, %45 in 0 : vector<1x8x96xf32>, vector<1x8x96xf32>, vector<1x8x96xf32>, vector<1x8x96xf32> -> vector<4x8x96xf32>
    %47 = vector.extract_strided_slice %46 {offsets = [0, 0, 0], sizes = [4, 8, 32], strides = [1, 1, 1]} : vector<4x8x96xf32> to vector<4x8x32xf32>
    %48 = vector.extract_strided_slice %46 {offsets = [0, 0, 32], sizes = [4, 8, 32], strides = [1, 1, 1]} : vector<4x8x96xf32> to vector<4x8x32xf32>
    %49 = vector.extract_strided_slice %46 {offsets = [0, 0, 64], sizes = [4, 8, 32], strides = [1, 1, 1]} : vector<4x8x96xf32> to vector<4x8x32xf32>
    %50 = arith.truncf %47 : vector<4x8x32xf32> to vector<4x8x32xbf16>
    %51 = arith.truncf %48 : vector<4x8x32xf32> to vector<4x8x32xbf16>
    "tpu.trace_start"() <{level = 10 : i32, message = "htd,hsd->hts"}> : () -> ()
    %cst_15 = arith.constant dense<0.000000e+00> : vector<4x8x8xf32>
    %52 = tpu.matmul %50, %51, %cst_15 {dimension_numbers = #tpu.dot_dimension_numbers<[2], [2], [1], [1], [0, 0, 0, 1, 1, 1], [0], [0]>} : vector<4x8x32xbf16>, vector<4x8x32xbf16>, vector<4x8x8xf32> -> vector<4x8x8xf32>
    "tpu.trace_stop"() : () -> ()
    %cst_16 = arith.constant 0.176776692 : f32
    %53 = vector.broadcast %cst_16 : f32 to vector<4x8x8xf32>
    %54 = arith.mulf %52, %53 : vector<4x8x8xf32>
    %55 = tpu.iota {dimensions = array<i32: 0>} : vector<8x8xi32>
    %56 = tpu.iota {dimensions = array<i32: 1>} : vector<8x8xi32>
    %57 = arith.cmpi sle, %56, %55 : vector<8x8xi32>
    %cst_17 = arith.constant -1.000000e+30 : f32
    %58 = vector.shape_cast %57 : vector<8x8xi1> to vector<1x8x8xi1>
    %59 = vector.broadcast %58 : vector<1x8x8xi1> to vector<4x8x8xi1>
    %60 = vector.broadcast %cst_17 : f32 to vector<4x8x8xf32>
    %61 = arith.select %59, %54, %60 : vector<4x8x8xi1>, vector<4x8x8xf32>
    %cst_18 = arith.constant dense<0xFF800000> : vector<4x8xf32>
    %62 = vector.multi_reduction <maximumf>, %61, %cst_18 [2] : vector<4x8x8xf32> to vector<4x8xf32>
    %63 = vector.shape_cast %62 : vector<4x8xf32> to vector<4x8x1xf32>
    %64 = vector.broadcast %63 : vector<4x8x1xf32> to vector<4x8x8xf32>
    %65 = arith.subf %61, %64 : vector<4x8x8xf32>
    %66 = math.exp %65 : vector<4x8x8xf32>
    %cst_19 = arith.constant dense<0.000000e+00> : vector<4x8xf32>
    %67 = vector.multi_reduction <add>, %66, %cst_19 [2] : vector<4x8x8xf32> to vector<4x8xf32>
    %68 = vector.shape_cast %67 : vector<4x8xf32> to vector<4x8x1xf32>
    %69 = tpu.reciprocal %68 {approx = true} : vector<4x8x1xf32> -> vector<4x8x1xf32>
    %70 = vector.broadcast %69 : vector<4x8x1xf32> to vector<4x8x8xf32>
    %71 = arith.mulf %66, %70 : vector<4x8x8xf32>
    %72 = arith.truncf %71 : vector<4x8x8xf32> to vector<4x8x8xbf16>
    %73 = arith.truncf %49 : vector<4x8x32xf32> to vector<4x8x32xbf16>
    "tpu.trace_start"() <{level = 10 : i32, message = "hts,hsd->htd"}> : () -> ()
    %cst_20 = arith.constant dense<0.000000e+00> : vector<4x8x32xf32>
    %74 = tpu.matmul %72, %73, %cst_20 {dimension_numbers = #tpu.dot_dimension_numbers<[2], [1], [1], [2], [0, 0, 0, 1, 1, 2], [0], [0]>} : vector<4x8x8xbf16>, vector<4x8x32xbf16>, vector<4x8x32xf32> -> vector<4x8x32xf32>
    "tpu.trace_stop"() : () -> ()
    %75 = arith.truncf %74 : vector<4x8x32xf32> to vector<4x8x32xbf16>
    %c0_21 = arith.constant 0 : index
    %c0_22 = arith.constant 0 : index
    %c0_23 = arith.constant 0 : index
    %76 = vector.load %arg6[%c0_21, %c0_22, %c0_23] : memref<4x32x128xbf16, #tpu.memory_space<vmem>>, vector<4x32x128xbf16>
    "tpu.trace_start"() <{level = 10 : i32, message = "htd,hdc->htc"}> : () -> ()
    %cst_24 = arith.constant dense<0.000000e+00> : vector<4x8x128xf32>
    %77 = tpu.matmul %75, %76, %cst_24 {dimension_numbers = #tpu.dot_dimension_numbers<[2], [1], [1], [2], [0, 0, 0, 1, 1, 2], [0], [0]>} : vector<4x8x32xbf16>, vector<4x32x128xbf16>, vector<4x8x128xf32> -> vector<4x8x128xf32>
    "tpu.trace_stop"() : () -> ()
    %cst_25 = arith.constant dense<0.000000e+00> : vector<8x128xf32>
    %78 = vector.multi_reduction <add>, %77, %cst_25 [0] : vector<4x8x128xf32> to vector<8x128xf32>
    %c0_26 = arith.constant 0 : index
    %c0_27 = arith.constant 0 : index
    %79 = vector.load %arg7[%c0_26, %c0_27] : memref<1x128xf32, #tpu.memory_space<vmem>>, vector<1x128xf32>
    %80 = vector.shape_cast %79 : vector<1x128xf32> to vector<128xf32>
    %81 = vector.shape_cast %80 : vector<128xf32> to vector<1x128xf32>
    %82 = vector.broadcast %81 : vector<1x128xf32> to vector<8x128xf32>
    %83 = arith.addf %78, %82 : vector<8x128xf32>
    %84 = arith.addf %1, %83 : vector<8x128xf32>
    %c0_28 = arith.constant 0 : index
    %c0_29 = arith.constant 0 : index
    %85 = vector.load %arg8[%c0_28, %c0_29] : memref<1x128xf32, #tpu.memory_space<vmem>>, vector<1x128xf32>
    %86 = vector.shape_cast %85 : vector<1x128xf32> to vector<128xf32>
    %c0_30 = arith.constant 0 : index
    %c0_31 = arith.constant 0 : index
    %87 = vector.load %arg9[%c0_30, %c0_31] : memref<1x128xf32, #tpu.memory_space<vmem>>, vector<1x128xf32>
    %88 = vector.shape_cast %87 : vector<1x128xf32> to vector<128xf32>
    %cst_32 = arith.constant dense<0.000000e+00> : vector<8xf32>
    %89 = vector.multi_reduction <add>, %84, %cst_32 [1] : vector<8x128xf32> to vector<8xf32>
    %90 = vector.shape_cast %89 : vector<8xf32> to vector<8x1xf32>
    %cst_33 = arith.constant 1.280000e+02 : f32
    %91 = vector.broadcast %cst_33 : f32 to vector<8x1xf32>
    %92 = arith.divf %90, %91 : vector<8x1xf32>
    %93 = vector.broadcast %92 : vector<8x1xf32> to vector<8x128xf32>
    %94 = arith.subf %84, %93 : vector<8x128xf32>
    %95 = arith.mulf %94, %94 : vector<8x128xf32>
    %cst_34 = arith.constant dense<0.000000e+00> : vector<8xf32>
    %96 = vector.multi_reduction <add>, %95, %cst_34 [1] : vector<8x128xf32> to vector<8xf32>
    %97 = vector.shape_cast %96 : vector<8xf32> to vector<8x1xf32>
    %cst_35 = arith.constant 1.280000e+02 : f32
    %98 = vector.broadcast %cst_35 : f32 to vector<8x1xf32>
    %99 = arith.divf %97, %98 : vector<8x1xf32>
    %100 = vector.broadcast %92 : vector<8x1xf32> to vector<8x128xf32>
    %101 = arith.subf %84, %100 : vector<8x128xf32>
    %cst_36 = arith.constant 9.99999974E-6 : f32
    %102 = vector.broadcast %cst_36 : f32 to vector<8x1xf32>
    %103 = arith.addf %99, %102 : vector<8x1xf32>
    %104 = math.rsqrt %103 : vector<8x1xf32>
    %105 = vector.broadcast %104 : vector<8x1xf32> to vector<8x128xf32>
    %106 = arith.mulf %101, %105 : vector<8x128xf32>
    %107 = vector.shape_cast %86 : vector<128xf32> to vector<1x128xf32>
    %108 = vector.broadcast %107 : vector<1x128xf32> to vector<8x128xf32>
    %109 = arith.mulf %106, %108 : vector<8x128xf32>
    %110 = vector.shape_cast %88 : vector<128xf32> to vector<1x128xf32>
    %111 = vector.broadcast %110 : vector<1x128xf32> to vector<8x128xf32>
    %112 = arith.addf %109, %111 : vector<8x128xf32>
    %113 = arith.truncf %112 : vector<8x128xf32> to vector<8x128xbf16>
    %c0_37 = arith.constant 0 : index
    %c0_38 = arith.constant 0 : index
    %114 = vector.load %arg10[%c0_37, %c0_38] : memref<128x512xbf16, #tpu.memory_space<vmem>>, vector<128x512xbf16>
    %cst_39 = arith.constant dense<0.000000e+00> : vector<8x512xf32>
    %115 = tpu.matmul %113, %114, %cst_39 {dimension_numbers = #tpu.dot_dimension_numbers<[1], [0], [0], [1], [0, 0, 1, 1], [], []>} : vector<8x128xbf16>, vector<128x512xbf16>, vector<8x512xf32> -> vector<8x512xf32>
    %c0_40 = arith.constant 0 : index
    %c0_41 = arith.constant 0 : index
    %116 = vector.load %arg11[%c0_40, %c0_41] : memref<1x512xf32, #tpu.memory_space<vmem>>, vector<1x512xf32>
    %117 = vector.shape_cast %116 : vector<1x512xf32> to vector<512xf32>
    %118 = vector.shape_cast %117 : vector<512xf32> to vector<1x512xf32>
    %119 = vector.broadcast %118 : vector<1x512xf32> to vector<8x512xf32>
    %120 = arith.addf %115, %119 : vector<8x512xf32>
    %cst_42 = arith.constant 5.000000e-01 : f32
    %121 = vector.broadcast %cst_42 : f32 to vector<8x512xf32>
    %122 = arith.mulf %121, %120 : vector<8x512xf32>
    %cst_43 = arith.constant 0.707106769 : f32
    %123 = vector.broadcast %cst_43 : f32 to vector<8x512xf32>
    %124 = arith.mulf %120, %123 : vector<8x512xf32>
    %125 = math.erf %124 : vector<8x512xf32>
    %cst_44 = arith.constant 1.000000e+00 : f32
    %126 = vector.broadcast %cst_44 : f32 to vector<8x512xf32>
    %127 = arith.addf %126, %125 : vector<8x512xf32>
    %128 = arith.mulf %122, %127 : vector<8x512xf32>
    %129 = arith.truncf %128 : vector<8x512xf32> to vector<8x512xbf16>
    %c0_45 = arith.constant 0 : index
    %c0_46 = arith.constant 0 : index
    %130 = vector.load %arg12[%c0_45, %c0_46] : memref<512x128xbf16, #tpu.memory_space<vmem>>, vector<512x128xbf16>
    %cst_47 = arith.constant dense<0.000000e+00> : vector<8x128xf32>
    %131 = tpu.matmul %129, %130, %cst_47 {dimension_numbers = #tpu.dot_dimension_numbers<[1], [0], [0], [1], [0, 0, 1, 1], [], []>} : vector<8x512xbf16>, vector<512x128xbf16>, vector<8x128xf32> -> vector<8x128xf32>
    %c0_48 = arith.constant 0 : index
    %c0_49 = arith.constant 0 : index
    %132 = vector.load %arg13[%c0_48, %c0_49] : memref<1x128xf32, #tpu.memory_space<vmem>>, vector<1x128xf32>
    %133 = vector.shape_cast %132 : vector<1x128xf32> to vector<128xf32>
    %134 = vector.shape_cast %133 : vector<128xf32> to vector<1x128xf32>
    %135 = vector.broadcast %134 : vector<1x128xf32> to vector<8x128xf32>
    %136 = arith.addf %131, %135 : vector<8x128xf32>
    %137 = arith.addf %84, %136 : vector<8x128xf32>
    %c0_50 = arith.constant 0 : index
    %c0_51 = arith.constant 0 : index
    %c0_52 = arith.constant 0 : index
    %138 = vector.load %arg14[%c0_50, %c0_51, %c0_52] : memref<1x8x128xf32, #tpu.memory_space<vmem>>, vector<1x8x128xf32>
    %139 = vector.shape_cast %138 : vector<1x8x128xf32> to vector<8x128xf32>
    %140 = vector.shape_cast %137 : vector<8x128xf32> to vector<1x8x128xf32>
    tpu.vector_store %arg14[%c0_50, %c0_51, %c0_52], %140 {strides = array<i32>} : memref<1x8x128xf32, #tpu.memory_space<vmem>>, vector<1x8x128xf32>,
    return
  }
  func.func @transform_0(%arg0: i32) -> (i32, i32, i32) {
    %c0_i32 = arith.constant 0 : i32
    %c0_i32_0 = arith.constant 0 : i32
    %c0_i32_1 = arith.constant 0 : i32
    return %arg0, %c0_i32, %c0_i32_0 : i32, i32, i32
  }
  func.func @transform_1(%arg0: i32) -> (i32, i32) {
    %c0_i32 = arith.constant 0 : i32
    %c0_i32_0 = arith.constant 0 : i32
    %c0_i32_1 = arith.constant 0 : i32
    return %c0_i32, %c0_i32_0 : i32, i32
  }
  func.func @transform_2(%arg0: i32) -> (i32, i32) {
    %c0_i32 = arith.constant 0 : i32
    %c0_i32_0 = arith.constant 0 : i32
    %c0_i32_1 = arith.constant 0 : i32
    return %c0_i32, %c0_i32_0 : i32, i32
  }
  func.func @transform_3(%arg0: i32) -> (i32, i32) {
    %c0_i32 = arith.constant 0 : i32
    %c0_i32_0 = arith.constant 0 : i32
    %c0_i32_1 = arith.constant 0 : i32
    return %c0_i32, %c0_i32_0 : i32, i32
  }
  func.func @transform_4(%arg0: i32) -> (i32, i32) {
    %c0_i32 = arith.constant 0 : i32
    %c0_i32_0 = arith.constant 0 : i32
    %c0_i32_1 = arith.constant 0 : i32
    return %c0_i32, %c0_i32_0 : i32, i32
  }
  func.func @transform_5(%arg0: i32) -> (i32, i32, i32) {
    %c0_i32 = arith.constant 0 : i32
    %c0_i32_0 = arith.constant 0 : i32
    %c0_i32_1 = arith.constant 0 : i32
    %c0_i32_2 = arith.constant 0 : i32
    return %c0_i32, %c0_i32_0, %c0_i32_1 : i32, i32, i32
  }
  func.func @transform_6(%arg0: i32) -> (i32, i32) {
    %c0_i32 = arith.constant 0 : i32
    %c0_i32_0 = arith.constant 0 : i32
    %c0_i32_1 = arith.constant 0 : i32
    return %c0_i32, %c0_i32_0 : i32, i32
  }
  func.func @transform_7(%arg0: i32) -> (i32, i32) {
    %c0_i32 = arith.constant 0 : i32
    %c0_i32_0 = arith.constant 0 : i32
    %c0_i32_1 = arith.constant 0 : i32
    return %c0_i32, %c0_i32_0 : i32, i32
  }
  func.func @transform_8(%arg0: i32) -> (i32, i32) {
    %c0_i32 = arith.constant 0 : i32
    %c0_i32_0 = arith.constant 0 : i32
    %c0_i32_1 = arith.constant 0 : i32
    return %c0_i32, %c0_i32_0 : i32, i32
  }
  func.func @transform_9(%arg0: i32) -> (i32, i32) {
    %c0_i32 = arith.constant 0 : i32
    %c0_i32_0 = arith.constant 0 : i32
    %c0_i32_1 = arith.constant 0 : i32
    return %c0_i32, %c0_i32_0 : i32, i32
  }
  func.func @transform_10(%arg0: i32) -> (i32, i32) {
    %c0_i32 = arith.constant 0 : i32
    %c0_i32_0 = arith.constant 0 : i32
    %c0_i32_1 = arith.constant 0 : i32
    return %c0_i32, %c0_i32_0 : i32, i32
  }
  func.func @transform_11(%arg0: i32) -> (i32, i32) {
    %c0_i32 = arith.constant 0 : i32
    %c0_i32_0 = arith.constant 0 : i32
    %c0_i32_1 = arith.constant 0 : i32
    return %c0_i32, %c0_i32_0 : i32, i32
  }
  func.func @transform_12(%arg0: i32) -> (i32, i32) {
    %c0_i32 = arith.constant 0 : i32
    %c0_i32_0 = arith.constant 0 : i32
    %c0_i32_1 = arith.constant 0 : i32
    return %c0_i32, %c0_i32_0 : i32, i32
  }
  func.func @transform_13(%arg0: i32) -> (i32, i32, i32) {
    %c0_i32 = arith.constant 0 : i32
    %c0_i32_0 = arith.constant 0 : i32
    %c0_i32_1 = arith.constant 0 : i32
    return %arg0, %c0_i32, %c0_i32_0 : i32, i32, i32
  }
}

module attributes {stable_mosaic.version = 11 : i64} {
  func.func @_block_kernel(%arg0: i32, %arg1: memref<1x8x128xf32, #tpu.memory_space<vmem>>, %arg2: memref<1x128xf32, #tpu.memory_space<vmem>>, %arg3: memref<1x128xf32, #tpu.memory_space<vmem>>, %arg4: memref<128x384xbf16, #tpu.memory_space<vmem>>, %arg5: memref<1x384xf32, #tpu.memory_space<vmem>>, %arg6: memref<4x32x128xbf16, #tpu.memory_space<vmem>>, %arg7: memref<1x128xf32, #tpu.memory_space<vmem>>, %arg8: memref<1x128xf32, #tpu.memory_space<vmem>>, %arg9: memref<1x128xf32, #tpu.memory_space<vmem>>, %arg10: memref<128x512xbf16, #tpu.memory_space<vmem>>, %arg11: memref<1x512xf32, #tpu.memory_space<vmem>>, %arg12: memref<512x128xbf16, #tpu.memory_space<vmem>>, %arg13: memref<1x128xf32, #tpu.memory_space<vmem>>, %arg14: memref<1x8x128xf32, #tpu.memory_space<vmem>>) attributes {dimension_semantics = [#tpu.dimension_semantics<parallel>], iteration_bounds = array<i64: 2>, scalar_prefetch = 0 : i64, scratch_operands = 0 : i64, tpu.core_type = #tpu.core_type<tc>, window_params = [{transform_indices = @transform_0, window_bounds = array<i64: 1, 8, 128>}, {pipeline_mode = #tpu.pipeline_mode<synchronous>, transform_indices = @transform_1, window_bounds = array<i64: 1, 128>}, {pipeline_mode = #tpu.pipeline_mode<synchronous>, transform_indices = @transform_2, window_bounds = array<i64: 1, 128>}, {pipeline_mode = #tpu.pipeline_mode<synchronous>, transform_indices = @transform_3, window_bounds = array<i64: 128, 384>}, {pipeline_mode = #tpu.pipeline_mode<synchronous>, transform_indices = @transform_4, window_bounds = array<i64: 1, 384>}, {pipeline_mode = #tpu.pipeline_mode<synchronous>, transform_indices = @transform_5, window_bounds = array<i64: 4, 32, 128>}, {pipeline_mode = #tpu.pipeline_mode<synchronous>, transform_indices = @transform_6, window_bounds = array<i64: 1, 128>}, {pipeline_mode = #tpu.pipeline_mode<synchronous>, transform_indices = @transform_7, window_bounds = array<i64: 1, 128>}, {pipeline_mode = #tpu.pipeline_mode<synchronous>, transform_indices = @transform_8, window_bounds = array<i64: 1, 128>}, {pipeline_mode = #tpu.pipeline_mode<synchronous>, transform_indices = @transform_9, window_bounds = array<i64: 128, 512>}, {pipeline_mode = #tpu.pipeline_mode<synchronous>, transform_indices = @transform_10, window_bounds = array<i64: 1, 512>}, {pipeline_mode = #tpu.pipeline_mode<synchronous>, transform_indices = @transform_11, window_bounds = array<i64: 512, 128>}, {pipeline_mode = #tpu.pipeline_mode<synchronous>, transform_indices = @transform_12, window_bounds = array<i64: 1, 128>}, {transform_indices = @transform_13, window_bounds = array<i64: 1, 8, 128>}]} {
    %c0 = arith.constant 0 : index
    %c0_0 = arith.constant 0 : index
    %c0_1 = arith.constant 0 : index
    %0 = vector.load %arg1[%c0, %c0_0, %c0_1] : memref<1x8x128xf32, #tpu.memory_space<vmem>>, vector<1x8x128xf32>
    %1 = vector.shape_cast %0 : vector<1x8x128xf32> to vector<8x128xf32>
    %c0_2 = arith.constant 0 : index
    %c0_3 = arith.constant 0 : index
    %2 = vector.load %arg2[%c0_2, %c0_3] : memref<1x128xf32, #tpu.memory_space<vmem>>, vector<1x128xf32>
    %3 = vector.shape_cast %2 : vector<1x128xf32> to vector<128xf32>
    %c0_4 = arith.constant 0 : index
    %c0_5 = arith.constant 0 : index
    %4 = vector.load %arg3[%c0_4, %c0_5] : memref<1x128xf32, #tpu.memory_space<vmem>>, vector<1x128xf32>
    %5 = vector.shape_cast %4 : vector<1x128xf32> to vector<128xf32>
    %cst = arith.constant dense<0.000000e+00> : vector<8xf32>
    %6 = vector.multi_reduction <add>, %1, %cst [1] : vector<8x128xf32> to vector<8xf32>
    %7 = vector.shape_cast %6 : vector<8xf32> to vector<8x1xf32>
    %cst_6 = arith.constant 1.280000e+02 : f32
    %8 = vector.broadcast %cst_6 : f32 to vector<8x1xf32>
    %9 = arith.divf %7, %8 : vector<8x1xf32>
    %10 = vector.broadcast %9 : vector<8x1xf32> to vector<8x128xf32>
    %11 = arith.subf %1, %10 : vector<8x128xf32>
    %12 = arith.mulf %11, %11 : vector<8x128xf32>
    %cst_7 = arith.constant dense<0.000000e+00> : vector<8xf32>
    %13 = vector.multi_reduction <add>, %12, %cst_7 [1] : vector<8x128xf32> to vector<8xf32>
    %14 = vector.shape_cast %13 : vector<8xf32> to vector<8x1xf32>
    %cst_8 = arith.constant 1.280000e+02 : f32
    %15 = vector.broadcast %cst_8 : f32 to vector<8x1xf32>
    %16 = arith.divf %14, %15 : vector<8x1xf32>
    %17 = vector.broadcast %9 : vector<8x1xf32> to vector<8x128xf32>
    %18 = arith.subf %1, %17 : vector<8x128xf32>
    %cst_9 = arith.constant 9.99999974E-6 : f32
    %19 = vector.broadcast %cst_9 : f32 to vector<8x1xf32>
    %20 = arith.addf %16, %19 : vector<8x1xf32>
    %21 = math.rsqrt %20 : vector<8x1xf32>
    %22 = vector.broadcast %21 : vector<8x1xf32> to vector<8x128xf32>
    %23 = arith.mulf %18, %22 : vector<8x128xf32>
    %24 = vector.shape_cast %3 : vector<128xf32> to vector<1x128xf32>
    %25 = vector.broadcast %24 : vector<1x128xf32> to vector<8x128xf32>
    %26 = arith.mulf %23, %25 : vector<8x128xf32>
    %27 = vector.shape_cast %5 : vector<128xf32> to vector<1x128xf32>
    %28 = vector.broadcast %27 : vector<1x128xf32> to vector<8x128xf32>
    %29 = arith.addf %26, %28 : vector<8x128xf32>
    %30 = arith.truncf %29 : vector<8x128xf32> to vector<8x128xbf16>
    %c0_10 = arith.constant 0 : index
    %c0_11 = arith.constant 0 : index
    %31 = vector.load %arg4[%c0_10, %c0_11] : memref<128x384xbf16, #tpu.memory_space<vmem>>, vector<128x384xbf16>
    %cst_12 = arith.constant dense<0.000000e+00> : vector<8x384xf32>
    %32 = tpu.matmul %30, %31, %cst_12 {dimension_numbers = #tpu.dot_dimension_numbers<[1], [0], [0], [1], [0, 0, 1, 1], [], []>} : vector<8x128xbf16>, vector<128x384xbf16>, vector<8x384xf32> -> vector<8x384xf32>
    %c0_13 = arith.constant 0 : index
    %c0_14 = arith.constant 0 : index
    %33 = vector.load %arg5[%c0_13, %c0_14] : memref<1x384xf32, #tpu.memory_space<vmem>>, vector<1x384xf32>
    %34 = vector.shape_cast %33 : vector<1x384xf32> to vector<384xf32>
    %35 = vector.shape_cast %34 : vector<384xf32> to vector<1x384xf32>
    %36 = vector.broadcast %35 : vector<1x384xf32> to vector<8x384xf32>
    %37 = arith.addf %32, %36 : vector<8x384xf32>
    %38 = vector.extract_strided_slice %37 {offsets = [0, 0], sizes = [8, 96], strides = [1, 1]} : vector<8x384xf32> to vector<8x96xf32>
    %39 = vector.extract_strided_slice %37 {offsets = [0, 96], sizes = [8, 96], strides = [1, 1]} : vector<8x384xf32> to vector<8x96xf32>
    %40 = vector.extract_strided_slice %37 {offsets = [0, 192], sizes = [8, 96], strides = [1, 1]} : vector<8x384xf32> to vector<8x96xf32>
    %41 = vector.extract_strided_slice %37 {offsets = [0, 288], sizes = [8, 96], strides = [1, 1]} : vector<8x384xf32> to vector<8x96xf32>
    %42 = vector.shape_cast %38 : vector<8x96xf32> to vector<1x8x96xf32>
    %43 = vector.shape_cast %39 : vector<8x96xf32> to vector<1x8x96xf32>
    %44 = vector.shape_cast %40 : vector<8x96xf32> to vector<1x8x96xf32>
    %45 = vector.shape_cast %41 : vector<8x96xf32> to vector<1x8x96xf32>
    %46 = tpu.concatenate %42, %43, %44, %45 in 0 : vector<1x8x96xf32>, vector<1x8x96xf32>, vector<1x8x96xf32>, vector<1x8x96xf32> -> vector<4x8x96xf32>
    %47 = vector.extract_strided_slice %46 {offsets = [0, 0, 0], sizes = [4, 8, 32], strides = [1, 1, 1]} : vector<4x8x96xf32> to vector<4x8x32xf32>
    %48 = vector.extract_strided_slice %46 {offsets = [0, 0, 32], sizes = [4, 8, 32], strides = [1, 1, 1]} : vector<4x8x96xf32> to vector<4x8x32xf32>
    %49 = vector.extract_strided_slice %46 {offsets = [0, 0, 64], sizes = [4, 8, 32], strides = [1, 1, 1]} : vector<4x8x96xf32> to vector<4x8x32xf32>
    %50 = arith.truncf %47 : vector<4x8x32xf32> to vector<4x8x32xbf16>
    %51 = arith.truncf %48 : vector<4x8x32xf32> to vector<4x8x32xbf16>
    "tpu.trace_start"() <{level = 10 : i32, message = "htd,hsd->hts"}> : () -> ()
    %cst_15 = arith.constant dense<0.000000e+00> : vector<4x8x8xf32>
    %52 = tpu.matmul %50, %51, %cst_15 {dimension_numbers = #tpu.dot_dimension_numbers<[2], [2], [1], [1], [0, 0, 0, 1, 1, 1], [0], [0]>} : vector<4x8x32xbf16>, vector<4x8x32xbf16>, vector<4x8x8xf32> -> vector<4x8x8xf32>
    "tpu.trace_stop"() : () -> ()
    %cst_16 = arith.constant 0.176776692 : f32
    %53 = vector.broadcast %cst_16 : f32 to vector<4x8x8xf32>
    %54 = arith.mulf %52, %53 : vector<4x8x8xf32>
    %55 = tpu.iota {dimensions = array<i32: 0>} : vector<8x8xi32>
    %56 = tpu.iota {dimensions = array<i32: 1>} : vector<8x8xi32>
    %57 = arith.cmpi sle, %56, %55 : vector<8x8xi32>
    %cst_17 = arith.constant -1.000000e+30 : f32
    %58 = vector.shape_cast %57 : vector<8x8xi1> to vector<1x8x8xi1>
    %59 = vector.broadcast %58 : vector<1x8x8xi1> to vector<4x8x8xi1>
    %60 = vector.broadcast %cst_17 : f32 to vector<4x8x8xf32>
    %61 = arith.select %59, %54, %60 : vector<4x8x8xi1>, vector<4x8x8xf32>
    %cst_18 = arith.constant dense<0xFF800000> : vector<4x8xf32>
    %62 = vector.multi_reduction <maximumf>, %61, %cst_18 [2] : vector<4x8x8xf32> to vector<4x8xf32>
    %63 = vector.shape_cast %62 : vector<4x8xf32> to vector<4x8x1xf32>
    %64 = vector.broadcast %63 : vector<4x8x1xf32> to vector<4x8x8xf32>
    %65 = arith.subf %61, %64 : vector<4x8x8xf32>
    %66 = math.exp %65 : vector<4x8x8xf32>
    %cst_19 = arith.constant dense<0.000000e+00> : vector<4x8xf32>
    %67 = vector.multi_reduction <add>, %66, %cst_19 [2] : vector<4x8x8xf32> to vector<4x8xf32>
    %68 = vector.shape_cast %67 : vector<4x8xf32> to vector<4x8x1xf32>
    %69 = tpu.reciprocal %68 {approx = true} : vector<4x8x1xf32> -> vector<4x8x1xf32>
    %70 = vector.broadcast %69 : vector<4x8x1xf32> to vector<4x8x8xf32>
    %71 = arith.mulf %66, %70 : vector<4x8x8xf32>
    %72 = arith.truncf %71 : vector<4x8x8xf32> to vector<4x8x8xbf16>
    %73 = arith.truncf %49 : vector<4x8x32xf32> to vector<4x8x32xbf16>
    "tpu.trace_start"() <{level = 10 : i32, message = "hts,hsd->htd"}> : () -> ()
    %cst_20 = arith.constant dense<0.000000e+00> : vector<4x8x32xf32>
    %74 = tpu.matmul %72, %73, %cst_20 {dimension_numbers = #tpu.dot_dimension_numbers<[2], [1], [1], [2], [0, 0, 0, 1, 1, 2], [0], [0]>} : vector<4x8x8xbf16>, vector<4x8x32xbf16>, vector<4x8x32xf32> -> vector<4x8x32xf32>
    "tpu.trace_stop"() : () -> ()
    %75 = arith.truncf %74 : vector<4x8x32xf32> to vector<4x8x32xbf16>
    %c0_21 = arith.constant 0 : index
    %c0_22 = arith.constant 0 : index
    %c0_23 = arith.constant 0 : index
    %76 = vector.load %arg6[%c0_21, %c0_22, %c0_23] : memref<4x32x128xbf16, #tpu.memory_space<vmem>>, vector<4x32x128xbf16>
    "tpu.trace_start"() <{level = 10 : i32, message = "htd,hdc->htc"}> : () -> ()
    %cst_24 = arith.constant dense<0.000000e+00> : vector<4x8x128xf32>
    %77 = tpu.matmul %75, %76, %cst_24 {dimension_numbers = #tpu.dot_dimension_numbers<[2], [1], [1], [2], [0, 0, 0, 1, 1, 2], [0], [0]>} : vector<4x8x32xbf16>, vector<4x32x128xbf16>, vector<4x8x128xf32> -> vector<4x8x128xf32>
    "tpu.trace_stop"() : () -> ()
    %cst_25 = arith.constant dense<0.000000e+00> : vector<8x128xf32>
    %78 = vector.multi_reduction <add>, %77, %cst_25 [0] : vector<4x8x128xf32> to vector<8x128xf32>
    %c0_26 = arith.constant 0 : index
    %c0_27 = arith.constant 0 : index
    %79 = vector.load %arg7[%c0_26, %c0_27] : memref<1x128xf32, #tpu.memory_space<vmem>>, vector<1x128xf32>
    %80 = vector.shape_cast %79 : vector<1x128xf32> to vector<128xf32>
    %81 = vector.shape_cast %80 : vector<128xf32> to vector<1x128xf32>
    %82 = vector.broadcast %81 : vector<1x128xf32> to vector<8x128xf32>
    %83 = arith.addf %78, %82 : vector<8x128xf32>
    %84 = arith.addf %1, %83 : vector<8x128xf32>
    %c0_28 = arith.constant 0 : index
    %c0_29 = arith.constant 0 : index
    %85 = vector.load %arg8[%c0_28, %c0_29] : memref<1x128xf32, #tpu.memory_space<vmem>>, vector<1x128xf32>
    %86 = vector.shape_cast %85 : vector<1x128xf32> to vector<128xf32>
    %c0_30 = arith.constant 0 : index
    %c0_31 = arith.constant 0 : index
    %87 = vector.load %arg9[%c0_30, %c0_31] : memref<1x128xf32, #tpu.memory_space<vmem>>, vector<1x128xf32>
    %88 = vector.shape_cast %87 : vector<1x128xf32> to vector<128xf32>
    %cst_32 = arith.constant dense<0.000000e+00> : vector<8xf32>
    %89 = vector.multi_reduction <add>, %84, %cst_32 [1] : vector<8x128xf32> to vector<8xf32>
    %90 = vector.shape_cast %89 : vector<8xf32> to vector<8x1xf32>
    %cst_33 = arith.constant 1.280000e+02 : f32
    %91 = vector.broadcast %cst_33 : f32 to vector<8x1xf32>
    %92 = arith.divf %90, %91 : vector<8x1xf32>
    %93 = vector.broadcast %92 : vector<8x1xf32> to vector<8x128xf32>
    %94 = arith.subf %84, %93 : vector<8x128xf32>
    %95 = arith.mulf %94, %94 : vector<8x128xf32>
    %cst_34 = arith.constant dense<0.000000e+00> : vector<8xf32>
    %96 = vector.multi_reduction <add>, %95, %cst_34 [1] : vector<8x128xf32> to vector<8xf32>
    %97 = vector.shape_cast %96 : vector<8xf32> to vector<8x1xf32>
    %cst_35 = arith.constant 1.280000e+02 : f32
    %98 = vector.broadcast %cst_35 : f32 to vector<8x1xf32>
    %99 = arith.divf %97, %98 : vector<8x1xf32>
    %100 = vector.broadcast %92 : vector<8x1xf32> to vector<8x128xf32>
    %101 = arith.subf %84, %100 : vector<8x128xf32>
    %cst_36 = arith.constant 9.99999974E-6 : f32
    %102 = vector.broadcast %cst_36 : f32 to vector<8x1xf32>
    %103 = arith.addf %99, %102 : vector<8x1xf32>
    %104 = math.rsqrt %103 : vector<8x1xf32>
    %105 = vector.broadcast %104 : vector<8x1xf32> to vector<8x128xf32>
    %106 = arith.mulf %101, %105 : vector<8x128xf32>
    %107 = vector.shape_cast %86 : vector<128xf32> to vector<1x128xf32>
    %108 = vector.broadcast %107 : vector<1x128xf32> to vector<8x128xf32>
    %109 = arith.mulf %106, %108 : vector<8x128xf32>
    %110 = vector.shape_cast %88 : vector<128xf32> to vector<1x128xf32>
    %111 = vector.broadcast %110 : vector<1x128xf32> to vector<8x128xf32>
    %112 = arith.addf %109, %111 : vector<8x128xf32>
    %113 = arith.truncf %112 : vector<8x128xf32> to vector<8x128xbf16>
    %c0_37 = arith.constant 0 : index
    %c0_38 = arith.constant 0 : index
    %114 = vector.load %arg10[%c0_37, %c0_38] : memref<128x512xbf16, #tpu.memory_space<vmem>>, vector<128x512xbf16>
    %cst_39 = arith.constant dense<0.000000e+00> : vector<8x512xf32>
    %115 = tpu.matmul %113, %114, %cst_39 {dimension_numbers = #tpu.dot_dimension_numbers<[1], [0], [0], [1], [0, 0, 1, 1], [], []>} : vector<8x128xbf16>, vector<128x512xbf16>, vector<8x512xf32> -> vector<8x512xf32>
    %c0_40 = arith.constant 0 : index
    %c0_41 = arith.constant 0 : index
    %116 = vector.load %arg11[%c0_40, %c0_41] : memref<1x512xf32, #tpu.memory_space<vmem>>, vector<1x512xf32>
    %117 = vector.shape_cast %116 : vector<1x512xf32> to vector<512xf32>
    %118 = vector.shape_cast %117 : vector<512xf32> to vector<1x512xf32>
    %119 = vector.broadcast %118 : vector<1x512xf32> to vector<8x512xf32>
    %120 = arith.addf %115, %119 : vector<8x512xf32>
    %cst_42 = arith.constant 5.000000e-01 : f32
    %121 = vector.broadcast %cst_42 : f32 to vector<8x512xf32>
    %122 = arith.mulf %121, %120 : vector<8x512xf32>
    %cst_43 = arith.constant 0.707106769 : f32
    %123 = vector.broadcast %cst_43 : f32 to vector<8x512xf32>
    %124 = arith.mulf %120, %123 : vector<8x512xf32>
    %125 = math.erf %124 : vector<8x512xf32>
    %cst_44 = arith.constant 1.000000e+00 : f32
    %126 = vector.broadcast %cst_44 : f32 to vector<8x512xf32>
    %127 = arith.addf %126, %125 : vector<8x512xf32>
    %128 = arith.mulf %122, %127 : vector<8x512xf32>
    %129 = arith.truncf %128 : vector<8x512xf32> to vector<8x512xbf16>
    %c0_45 = arith.constant 0 : index
    %c0_46 = arith.constant 0 : index
    %130 = vector.load %arg12[%c0_45, %c0_46] : memref<512x128xbf16, #tpu.memory_space<vmem>>, vector<512x128xbf16>
    %cst_47 = arith.constant dense<0.000000e+00> : vector<8x128xf32>
    %131 = tpu.matmul %129, %130, %cst_47 {dimension_numbers = #tpu.dot_dimension_numbers<[1], [0], [0], [1], [0, 0, 1, 1], [], []>} : vector<8x512xbf16>, vector<512x128xbf16>, vector<8x128xf32> -> vector<8x128xf32>
    %c0_48 = arith.constant 0 : index
    %c0_49 = arith.constant 0 : index
    %132 = vector.load %arg13[%c0_48, %c0_49] : memref<1x128xf32, #tpu.memory_space<vmem>>, vector<1x128xf32>
    %133 = vector.shape_cast %132 : vector<1x128xf32> to vector<128xf32>
    %134 = vector.shape_cast %133 : vector<128xf32> to vector<1x128xf32>
    %135 = vector.broadcast %134 : vector<1x128xf32> to vector<8x128xf32>
    %136 = arith.addf %131, %135 : vector<8x128xf32>
    %137 = arith.addf %84, %136 : vector<8x128xf32>
    %c0_50 = arith.constant 0 : index
    %c0_51 = arith.constant 0 : index
    %c0_52 = arith.constant 0 : index
    %138 = vector.load %arg14[%c0_50, %c0_51, %c0_52] : memref<1x8x128xf32, #tpu.memory_space<vmem>>, vector<1x8x128xf32>
    %139 = vector.shape_cast %138 : vector<1x8x128xf32> to vector<8x128xf32>
    %140 = vector.shape_cast %137 : vector<8x128xf32> to vector<1x8x128xf32>
    tpu.vector_store %arg14[%c0_50, %c0_51, %c0_52], %140 {strides = array<i32>} : memref<1x8x128xf32, #tpu.memory_space<vmem>>, vector<1x8x128xf32>,
    return
  }
  func.func @transform_0(%arg0: i32) -> (i32, i32, i32) {
    %c0_i32 = arith.constant 0 : i32
    %c0_i32_0 = arith.constant 0 : i32
    %c0_i32_1 = arith.constant 0 : i32
    return %arg0, %c0_i32, %c0_i32_0 : i32, i32, i32
  }
  func.func @transform_1(%arg0: i32) -> (i32, i32) {
    %c0_i32 = arith.constant 0 : i32
    %c0_i32_0 = arith.constant 0 : i32
    %c0_i32_1 = arith.constant 0 : i32
    return %c0_i32, %c0_i32_0 : i32, i32
  }
  func.func @transform_2(%arg0: i32) -> (i32, i32) {
    %c0_i32 = arith.constant 0 : i32
    %c0_i32_0 = arith.constant 0 : i32
    %c0_i32_1 = arith.constant 0 : i32
    return %c0_i32, %c0_i32_0 : i32, i32
  }
  func.func @transform_3(%arg0: i32) -> (i32, i32) {
    %c0_i32 = arith.constant 0 : i32
    %c0_i32_0 = arith.constant 0 : i32
    %c0_i32_1 = arith.constant 0 : i32
    return %c0_i32, %c0_i32_0 : i32, i32
  }
  func.func @transform_4(%arg0: i32) -> (i32, i32) {
    %c0_i32 = arith.constant 0 : i32
    %c0_i32_0 = arith.constant 0 : i32
    %c0_i32_1 = arith.constant 0 : i32
    return %c0_i32, %c0_i32_0 : i32, i32
  }
  func.func @transform_5(%arg0: i32) -> (i32, i32, i32) {
    %c0_i32 = arith.constant 0 : i32
    %c0_i32_0 = arith.constant 0 : i32
    %c0_i32_1 = arith.constant 0 : i32
    %c0_i32_2 = arith.constant 0 : i32
    return %c0_i32, %c0_i32_0, %c0_i32_1 : i32, i32, i32
  }
  func.func @transform_6(%arg0: i32) -> (i32, i32) {
    %c0_i32 = arith.constant 0 : i32
    %c0_i32_0 = arith.constant 0 : i32
    %c0_i32_1 = arith.constant 0 : i32
    return %c0_i32, %c0_i32_0 : i32, i32
  }
  func.func @transform_7(%arg0: i32) -> (i32, i32) {
    %c0_i32 = arith.constant 0 : i32
    %c0_i32_0 = arith.constant 0 : i32
    %c0_i32_1 = arith.constant 0 : i32
    return %c0_i32, %c0_i32_0 : i32, i32
  }
  func.func @transform_8(%arg0: i32) -> (i32, i32) {
    %c0_i32 = arith.constant 0 : i32
    %c0_i32_0 = arith.constant 0 : i32
    %c0_i32_1 = arith.constant 0 : i32
    return %c0_i32, %c0_i32_0 : i32, i32
  }
  func.func @transform_9(%arg0: i32) -> (i32, i32) {
    %c0_i32 = arith.constant 0 : i32
    %c0_i32_0 = arith.constant 0 : i32
    %c0_i32_1 = arith.constant 0 : i32
    return %c0_i32, %c0_i32_0 : i32, i32
  }
  func.func @transform_10(%arg0: i32) -> (i32, i32) {
    %c0_i32 = arith.constant 0 : i32
    %c0_i32_0 = arith.constant 0 : i32
    %c0_i32_1 = arith.constant 0 : i32
    return %c0_i32, %c0_i32_0 : i32, i32
  }
  func.func @transform_11(%arg0: i32) -> (i32, i32) {
    %c0_i32 = arith.constant 0 : i32
    %c0_i32_0 = arith.constant 0 : i32
    %c0_i32_1 = arith.constant 0 : i32
    return %c0_i32, %c0_i32_0 : i32, i32
  }
  func.func @transform_12(%arg0: i32) -> (i32, i32) {
    %c0_i32 = arith.constant 0 : i32
    %c0_i32_0 = arith.constant 0 : i32
    %c0_i32_1 = arith.constant 0 : i32
    return %c0_i32, %c0_i32_0 : i32, i32
  }
  func.func @transform_13(%arg0: i32) -> (i32, i32, i32) {
    %c0_i32 = arith.constant 0 : i32
    %c0_i32_0 = arith.constant 0 : i32
    %c0_i32_1 = arith.constant 0 : i32
    return %arg0, %c0_i32, %c0_i32_0 : i32, i32, i32
  }
}

</mosaic_0001>

<llo_original>
// kernel: tpu_custom_call.1
$region0: #{tpu_custom_call.1}
  #allocation0 [shape = 'u32[]', space=smem, size = 0x4, offset = 0x4, fixed_abs, tag = 'smem constant byte address 0x4 - core index']
  #allocation1 [shape = 'u32[144,128]{1,0:T(1,128)}', space=vmem, size = 0x12000, scoped, tag = 'internal scratch']
  %s0 = inlined_call_operand.hbm [shape: f32[2,8,128], index: 0, kind: input, shape index: {}]
  %s1 = inlined_call_operand.hbm [shape: f32[1,128], index: 1, kind: input, shape index: {}]
  %s2 = inlined_call_operand.hbm [shape: f32[1,128], index: 2, kind: input, shape index: {}]
  %s3 = inlined_call_operand.hbm [shape: bf16[128,384], index: 3, kind: input, shape index: {}]
  %s4 = inlined_call_operand.vmem [shape: f32[1,384], index: 4, kind: input, shape index: {}]
  %s5 = inlined_call_operand.hbm [shape: bf16[4,32,128], index: 5, kind: input, shape index: {}]
  %s6 = inlined_call_operand.vmem [shape: f32[1,128], index: 6, kind: input, shape index: {}]
  %s7 = inlined_call_operand.vmem [shape: f32[1,128], index: 7, kind: input, shape index: {}]
  %s8 = inlined_call_operand.vmem [shape: f32[1,128], index: 8, kind: input, shape index: {}]
  %s9 = inlined_call_operand.hbm [shape: bf16[128,512], index: 9, kind: input, shape index: {}]
  %s10 = inlined_call_operand.vmem [shape: f32[1,512], index: 10, kind: input, shape index: {}]
  %s11 = inlined_call_operand.hbm [shape: bf16[512,128], index: 11, kind: input, shape index: {}]
  %s12 = inlined_call_operand.vmem [shape: f32[1,128], index: 12, kind: input, shape index: {}]
  %s13 = inlined_call_operand.hbm [shape: f32[2,8,128], index: 13, kind: output, shape index: {}]
  %s14 = sld [smem:[#allocation0]]
  $region113: #{tpu_custom_call.1} parent=0
    _
  %s16 = ssub.s32 1, %s14
  %s17 = scalar_select 0, %s16, %s14
  $region1: #{tpu_custom_call.1} parent=0
    #allocation2 [shape = 'u8[8192]{0}', space=vmem, size = 0x2000, scoped, tag = 'input window, operand 0']
    #allocation3 [shape = 's32[2]{0}', space=sflag, size = 0x8, scoped, tag = 'scoped memory for tpu_custom_call.1']
    #allocation4 [shape = 's32[2]{0}', space=sflag, size = 0x8, scoped, tag = 'scoped memory for tpu_custom_call.1']
    #allocation5 [shape = 'u8[512]{0}', space=vmem, size = 0x400, scoped, tag = 'input window, operand 1, single buffered']
    #allocation6 [shape = 's32[1]{0}', space=sflag, size = 0x4, scoped, tag = 'scoped memory for tpu_custom_call.1']
    #allocation7 [shape = 'u8[512]{0}', space=vmem, size = 0x400, scoped, tag = 'input window, operand 2, single buffered']
    #allocation8 [shape = 'u8[98304]{0}', space=vmem, size = 0x18000, scoped, tag = 'input window, operand 3, single buffered']
    #allocation9 [shape = 's32[1]{0}', space=sflag, size = 0x4, scoped, tag = 'scoped memory for tpu_custom_call.1']
    #allocation10 [shape = 'u8[32768]{0}', space=vmem, size = 0x8000, scoped, tag = 'input window, operand 5, single buffered']
    #allocation11 [shape = 'u8[131072]{0}', space=vmem, size = 0x20000, scoped, tag = 'input window, operand 9, single buffered']
    #allocation12 [shape = 's32[1]{0}', space=sflag, size = 0x4, scoped, tag = 'scoped memory for tpu_custom_call.1']
    #allocation13 [shape = 'u8[131072]{0}', space=vmem, size = 0x20000, scoped, tag = 'input window, operand 11, single buffered']
    #allocation14 [shape = 'u8[8192]{0}', space=vmem, size = 0x2000, scoped, tag = 'output window, operand 0']
    %18 = vsyncpa [#allocation3], 0
    %s19 = scalar_lea.sflag [#allocation3], 1
    %20 = vsyncpa %s19, 0
    %21 = vsyncpa [#allocation6], 0
    %22 = vsyncpa [#allocation9], 0
    %23 = vsyncpa [#allocation12], 0
    %24 = vsyncpa [#allocation4], 0
    %s25 = scalar_lea.sflag [#allocation4], 1
    %26 = vsyncpa %s25, 0
    loop: start=0, step=1, limit=4
    $region2: #{tpu_custom_call.1} parent=1 // loop_pre_header
      _
    $region3: #{tpu_custom_call.1} parent=1 // loop_header
      %s28 = sphi 0, %s32
      %p29 = scmp.ge.s32.totalorder %s28, 4
      %s38 = sphi 0, %s40
      %s41 = sphi 0, %s38
      %s42 = sphi 0, %s41
      %s58 = sphi 0, %s42
      %s62 = sphi 0, %s62
      %s64 = sphi 0, %s62
      %s65 = sphi 0, %s64
      %s79 = sphi 0, %s65
      %s83 = sphi 0, %s83
      %s85 = sphi 0, %s83
      %s86 = sphi 0, %s85
      %s100 = sphi 0, %s86
      %s104 = sphi 0, %s104
      %s106 = sphi 0, %s104
      %s107 = sphi 0, %s106
      %s121 = sphi 0, %s107
      %s125 = sphi 0, %s125
      %s127 = sphi 0, %s125
      %s128 = sphi 0, %s127
      %s142 = sphi 0, %s128
      %s146 = sphi 0, %s146
      %s148 = sphi 0, %s146
      %s149 = sphi 0, %s148
      %s163 = sphi 0, %s149
      %s167 = sphi 0, %s167
      %s169 = sphi 0, %s167
      %s170 = sphi 0, %s169
      %s184 = sphi 0, %s170
      %s188 = sphi 0, %s188
      %s190 = sphi 0, %s188
      %s191 = sphi 0, %s190
      %s205 = sphi 0, %s191
      %s209 = sphi 0, %s209
      %s211 = sphi 0, %s209
      %s212 = sphi 0, %s211
      %s226 = sphi 0, %s212
      %s230 = sphi 0, %s230
      %s232 = sphi 0, %s230
      %s233 = sphi 0, %s232
      %s247 = sphi 0, %s233
      %s251 = sphi 0, %s251
      %s253 = sphi 0, %s251
      %s254 = sphi 0, %s253
      %s268 = sphi 0, %s254
      %s272 = sphi 0, %s272
      %s274 = sphi 0, %s272
      %s275 = sphi 0, %s274
      %s289 = sphi 0, %s275
      %s293 = sphi 0, %s293
      %s295 = sphi 0, %s293
      %s296 = sphi 0, %s295
      %s310 = sphi 0, %s296
      %s316 = sphi 0, %s318
      %s319 = sphi 0, %s316
      %s320 = sphi 0, %s319
      %s336 = sphi 0, %s320
    $region4: #{tpu_custom_call.1} parent=1 // loop_header_branch
      %31 = sbr.rel (%p29) target = $region8
    $region5: #{tpu_custom_call.1} parent=1 // loop_body
      %s33 = ssub.s32 %s28, 1
      %s34 = ssub.s32 %s28, 2
      %s35 = sadd.s32 %s28, 1
      %s36 = ssub.s32 %s28, %s35
      %p37 = scmp.eq.s32.totalorder %s36, 0
      %s39 = sadd.s32 %s38, 1
      %s40 = scalar_select %p37, %s38, %s39
      %p43 = pneg %p37
      %p44 = scmp.eq.s32.totalorder %s28, 1
      %p45 = por %p43, %p44
      %p46 = scmp.ne.s32.totalorder %s38, %s41
      %p47 = scmp.eq.s32.totalorder %s28, 0
      %p48 = por %p46, %p47
      %p49 = scmp.ne.s32.totalorder %s38, %s41
      %p50 = scmp.eq.s32.totalorder %s33, 1
      %p51 = por %p49, %p50
      %p52 = scmp.ne.s32.totalorder %s41, %s42
      %p53 = scmp.eq.s32.totalorder %s33, 0
      %p54 = por %p52, %p53
      %p55 = scmp.ne.s32.totalorder %s41, %s42
      %p56 = scmp.eq.s32.totalorder %s34, 1
      %p57 = por %p55, %p56
      %p59 = scmp.ne.s32.totalorder %s42, %s58
      %p60 = scmp.eq.s32.totalorder %s34, 0
      %p61 = por %p59, %p60
      %s63 = sadd.s32 %s62, 1
      %p66 = scmp.eq.s32.totalorder %s28, 1
      %p67 = scmp.ne.s32.totalorder %s62, %s64
      %p68 = scmp.eq.s32.totalorder %s28, 0
      %p69 = por %p67, %p68
      %p70 = scmp.ne.s32.totalorder %s62, %s64
      %p71 = scmp.eq.s32.totalorder %s33, 1
      %p72 = por %p70, %p71
      %p73 = scmp.ne.s32.totalorder %s64, %s65
      %p74 = scmp.eq.s32.totalorder %s33, 0
      %p75 = por %p73, %p74
      %p76 = scmp.ne.s32.totalorder %s64, %s65
      %p77 = scmp.eq.s32.totalorder %s34, 1
      %p78 = por %p76, %p77
      %p80 = scmp.ne.s32.totalorder %s65, %s79
      %p81 = scmp.eq.s32.totalorder %s34, 0
      %p82 = por %p80, %p81
      %s84 = sadd.s32 %s83, 1
      %p87 = scmp.eq.s32.totalorder %s28, 1
      %p88 = scmp.ne.s32.totalorder %s83, %s85
      %p89 = scmp.eq.s32.totalorder %s28, 0
      %p90 = por %p88, %p89
      %p91 = scmp.ne.s32.totalorder %s83, %s85
      %p92 = scmp.eq.s32.totalorder %s33, 1
      %p93 = por %p91, %p92
      %p94 = scmp.ne.s32.totalorder %s85, %s86
      %p95 = scmp.eq.s32.totalorder %s33, 0
      %p96 = por %p94, %p95
      %p97 = scmp.ne.s32.totalorder %s85, %s86
      %p98 = scmp.eq.s32.totalorder %s34, 1
      %p99 = por %p97, %p98
      %p101 = scmp.ne.s32.totalorder %s86, %s100
      %p102 = scmp.eq.s32.totalorder %s34, 0
      %p103 = por %p101, %p102
      %s105 = sadd.s32 %s104, 1
      %p108 = scmp.eq.s32.totalorder %s28, 1
      %p109 = scmp.ne.s32.totalorder %s104, %s106
      %p110 = scmp.eq.s32.totalorder %s28, 0
      %p111 = por %p109, %p110
      %p112 = scmp.ne.s32.totalorder %s104, %s106
      %p113 = scmp.eq.s32.totalorder %s33, 1
      %p114 = por %p112, %p113
      %p115 = scmp.ne.s32.totalorder %s106, %s107
      %p116 = scmp.eq.s32.totalorder %s33, 0
      %p117 = por %p115, %p116
      %p118 = scmp.ne.s32.totalorder %s106, %s107
      %p119 = scmp.eq.s32.totalorder %s34, 1
      %p120 = por %p118, %p119
      %p122 = scmp.ne.s32.totalorder %s107, %s121
      %p123 = scmp.eq.s32.totalorder %s34, 0
      %p124 = por %p122, %p123
      %s126 = sadd.s32 %s125, 1
      %p129 = scmp.eq.s32.totalorder %s28, 1
      %p130 = scmp.ne.s32.totalorder %s125, %s127
      %p131 = scmp.eq.s32.totalorder %s28, 0
      %p132 = por %p130, %p131
      %p133 = scmp.ne.s32.totalorder %s125, %s127
      %p134 = scmp.eq.s32.totalorder %s33, 1
      %p135 = por %p133, %p134
      %p136 = scmp.ne.s32.totalorder %s127, %s128
      %p137 = scmp.eq.s32.totalorder %s33, 0
      %p138 = por %p136, %p137
      %p139 = scmp.ne.s32.totalorder %s127, %s128
      %p140 = scmp.eq.s32.totalorder %s34, 1
      %p141 = por %p139, %p140
      %p143 = scmp.ne.s32.totalorder %s128, %s142
      %p144 = scmp.eq.s32.totalorder %s34, 0
      %p145 = por %p143, %p144
      %s147 = sadd.s32 %s146, 1
      %p150 = scmp.eq.s32.totalorder %s28, 1
      %p151 = scmp.ne.s32.totalorder %s146, %s148
      %p152 = scmp.eq.s32.totalorder %s28, 0
      %p153 = por %p151, %p152
      %p154 = scmp.ne.s32.totalorder %s146, %s148
      %p155 = scmp.eq.s32.totalorder %s33, 1
      %p156 = por %p154, %p155
      %p157 = scmp.ne.s32.totalorder %s148, %s149
      %p158 = scmp.eq.s32.totalorder %s33, 0
      %p159 = por %p157, %p158
      %p160 = scmp.ne.s32.totalorder %s148, %s149
      %p161 = scmp.eq.s32.totalorder %s34, 1
      %p162 = por %p160, %p161
      %p164 = scmp.ne.s32.totalorder %s149, %s163
      %p165 = scmp.eq.s32.totalorder %s34, 0
      %p166 = por %p164, %p165
      %s168 = sadd.s32 %s167, 1
      %p171 = scmp.eq.s32.totalorder %s28, 1
      %p172 = scmp.ne.s32.totalorder %s167, %s169
      %p173 = scmp.eq.s32.totalorder %s28, 0
      %p174 = por %p172, %p173
      %p175 = scmp.ne.s32.totalorder %s167, %s169
      %p176 = scmp.eq.s32.totalorder %s33, 1
      %p177 = por %p175, %p176
      %p178 = scmp.ne.s32.totalorder %s169, %s170
      %p179 = scmp.eq.s32.totalorder %s33, 0
      %p180 = por %p178, %p179
      %p181 = scmp.ne.s32.totalorder %s169, %s170
      %p182 = scmp.eq.s32.totalorder %s34, 1
      %p183 = por %p181, %p182
      %p185 = scmp.ne.s32.totalorder %s170, %s184
      %p186 = scmp.eq.s32.totalorder %s34, 0
      %p187 = por %p185, %p186
      %s189 = sadd.s32 %s188, 1
      %p192 = scmp.eq.s32.totalorder %s28, 1
      %p193 = scmp.ne.s32.totalorder %s188, %s190
      %p194 = scmp.eq.s32.totalorder %s28, 0
      %p195 = por %p193, %p194
      %p196 = scmp.ne.s32.totalorder %s188, %s190
      %p197 = scmp.eq.s32.totalorder %s33, 1
      %p198 = por %p196, %p197
      %p199 = scmp.ne.s32.totalorder %s190, %s191
      %p200 = scmp.eq.s32.totalorder %s33, 0
      %p201 = por %p199, %p200
      %p202 = scmp.ne.s32.totalorder %s190, %s191
      %p203 = scmp.eq.s32.totalorder %s34, 1
      %p204 = por %p202, %p203
      %p206 = scmp.ne.s32.totalorder %s191, %s205
      %p207 = scmp.eq.s32.totalorder %s34, 0
      %p208 = por %p206, %p207
      %s210 = sadd.s32 %s209, 1
      %p213 = scmp.eq.s32.totalorder %s28, 1
      %p214 = scmp.ne.s32.totalorder %s209, %s211
      %p215 = scmp.eq.s32.totalorder %s28, 0
      %p216 = por %p214, %p215
      %p217 = scmp.ne.s32.totalorder %s209, %s211
      %p218 = scmp.eq.s32.totalorder %s33, 1
      %p219 = por %p217, %p218
      %p220 = scmp.ne.s32.totalorder %s211, %s212
      %p221 = scmp.eq.s32.totalorder %s33, 0
      %p222 = por %p220, %p221
      %p223 = scmp.ne.s32.totalorder %s211, %s212
      %p224 = scmp.eq.s32.totalorder %s34, 1
      %p225 = por %p223, %p224
      %p227 = scmp.ne.s32.totalorder %s212, %s226
      %p228 = scmp.eq.s32.totalorder %s34, 0
      %p229 = por %p227, %p228
      %s231 = sadd.s32 %s230, 1
      %p234 = scmp.eq.s32.totalorder %s28, 1
      %p235 = scmp.ne.s32.totalorder %s230, %s232
      %p236 = scmp.eq.s32.totalorder %s28, 0
      %p237 = por %p235, %p236
      %p238 = scmp.ne.s32.totalorder %s230, %s232
      %p239 = scmp.eq.s32.totalorder %s33, 1
      %p240 = por %p238, %p239
      %p241 = scmp.ne.s32.totalorder %s232, %s233
      %p242 = scmp.eq.s32.totalorder %s33, 0
      %p243 = por %p241, %p242
      %p244 = scmp.ne.s32.totalorder %s232, %s233
      %p245 = scmp.eq.s32.totalorder %s34, 1
      %p246 = por %p244, %p245
      %p248 = scmp.ne.s32.totalorder %s233, %s247
      %p249 = scmp.eq.s32.totalorder %s34, 0
      %p250 = por %p248, %p249
      %s252 = sadd.s32 %s251, 1
      %p255 = scmp.eq.s32.totalorder %s28, 1
      %p256 = scmp.ne.s32.totalorder %s251, %s253
      %p257 = scmp.eq.s32.totalorder %s28, 0
      %p258 = por %p256, %p257
      %p259 = scmp.ne.s32.totalorder %s251, %s253
      %p260 = scmp.eq.s32.totalorder %s33, 1
      %p261 = por %p259, %p260
      %p262 = scmp.ne.s32.totalorder %s253, %s254
      %p263 = scmp.eq.s32.totalorder %s33, 0
      %p264 = por %p262, %p263
      %p265 = scmp.ne.s32.totalorder %s253, %s254
      %p266 = scmp.eq.s32.totalorder %s34, 1
      %p267 = por %p265, %p266
      %p269 = scmp.ne.s32.totalorder %s254, %s268
      %p270 = scmp.eq.s32.totalorder %s34, 0
      %p271 = por %p269, %p270
      %s273 = sadd.s32 %s272, 1
      %p276 = scmp.eq.s32.totalorder %s28, 1
      %p277 = scmp.ne.s32.totalorder %s272, %s274
      %p278 = scmp.eq.s32.totalorder %s28, 0
      %p279 = por %p277, %p278
      %p280 = scmp.ne.s32.totalorder %s272, %s274
      %p281 = scmp.eq.s32.totalorder %s33, 1
      %p282 = por %p280, %p281
      %p283 = scmp.ne.s32.totalorder %s274, %s275
      %p284 = scmp.eq.s32.totalorder %s33, 0
      %p285 = por %p283, %p284
      %p286 = scmp.ne.s32.totalorder %s274, %s275
      %p287 = scmp.eq.s32.totalorder %s34, 1
      %p288 = por %p286, %p287
      %p290 = scmp.ne.s32.totalorder %s275, %s289
      %p291 = scmp.eq.s32.totalorder %s34, 0
      %p292 = por %p290, %p291
      %s294 = sadd.s32 %s293, 1
      %p297 = scmp.eq.s32.totalorder %s28, 1
      %p298 = scmp.ne.s32.totalorder %s293, %s295
      %p299 = scmp.eq.s32.totalorder %s28, 0
      %p300 = por %p298, %p299
      %p301 = scmp.ne.s32.totalorder %s293, %s295
      %p302 = scmp.eq.s32.totalorder %s33, 1
      %p303 = por %p301, %p302
      %p304 = scmp.ne.s32.totalorder %s295, %s296
      %p305 = scmp.eq.s32.totalorder %s33, 0
      %p306 = por %p304, %p305
      %p307 = scmp.ne.s32.totalorder %s295, %s296
      %p308 = scmp.eq.s32.totalorder %s34, 1
      %p309 = por %p307, %p308
      %p311 = scmp.ne.s32.totalorder %s296, %s310
      %p312 = scmp.eq.s32.totalorder %s34, 0
      %p313 = por %p311, %p312
      %s314 = ssub.s32 %s28, %s35
      %p315 = scmp.eq.s32.totalorder %s314, 0
      %s317 = sadd.s32 %s316, 1
      %s318 = scalar_select %p315, %s316, %s317
      %p321 = pneg %p315
      %p322 = scmp.eq.s32.totalorder %s28, 1
      %p323 = por %p321, %p322
      %p324 = scmp.ne.s32.totalorder %s316, %s319
      %p325 = scmp.eq.s32.totalorder %s28, 0
      %p326 = por %p324, %p325
      %p327 = scmp.ne.s32.totalorder %s316, %s319
      %p328 = scmp.eq.s32.totalorder %s33, 1
      %p329 = por %p327, %p328
      %p330 = scmp.ne.s32.totalorder %s319, %s320
      %p331 = scmp.eq.s32.totalorder %s33, 0
      %p332 = por %p330, %p331
      %p333 = scmp.ne.s32.totalorder %s319, %s320
      %p334 = scmp.eq.s32.totalorder %s34, 1
      %p335 = por %p333, %p334
      %p337 = scmp.ne.s32.totalorder %s320, %s336
      %p338 = scmp.eq.s32.totalorder %s34, 0
      %p339 = por %p337, %p338
      %p340 = scmp.le.s32.totalorder 1, %s28
      %p341 = scmp.lt.s32.totalorder %s28, 3
      %p342 = pnand %p340, %p341
      %p343 = pneg %p342
      // Predicated region
      $region9: #{tpu_custom_call.1} parent=5 // pred_check
        _
      $region10: #{tpu_custom_call.1} parent=5 // pred_check_branch
        %345 = sbr.rel (%p342) target = $region12
      $region11: #{tpu_custom_call.1} parent=5 // pred_region
        %s346 = ssub.s32 %s28, 1
        // Predicated region
        $region13: #{tpu_custom_call.1} parent=11 // pred_check
          %p347 = pneg %p75
        $region14: #{tpu_custom_call.1} parent=11 // pred_check_branch
          %349 = sbr.rel (%p347) target = $region16
        $region15: #{tpu_custom_call.1} parent=11 // pred_region
          %s351 = ssub.s32 16, 16
          %352 = vsyncadd [#allocation6], %s351
          %s354 = sshll.u32 [#allocation5], 4
          %s355 = int_to_ptr.vmem [resolvable:$true] %s354
          %357 = dma.hbm_to_vmem [thread:$0]  %s1, 16, %s355, [#allocation6]
        $region16: #{tpu_custom_call.1} parent=11 // pred_fallthru
          _
        // Predicated region
        $region17: #{tpu_custom_call.1} parent=11 // pred_check
          %p358 = pneg %p96
        $region18: #{tpu_custom_call.1} parent=11 // pred_check_branch
          %360 = sbr.rel (%p358) target = $region20
        $region19: #{tpu_custom_call.1} parent=11 // pred_region
          %s362 = ssub.s32 16, 16
          %363 = vsyncadd [#allocation6], %s362
          %s365 = sshll.u32 [#allocation7], 4
          %s366 = int_to_ptr.vmem [resolvable:$true] %s365
          %368 = dma.hbm_to_vmem [thread:$0]  %s2, 16, %s366, [#allocation6]
        $region20: #{tpu_custom_call.1} parent=11 // pred_fallthru
          _
        // Predicated region
        $region21: #{tpu_custom_call.1} parent=11 // pred_check
          %p369 = pneg %p117
        $region22: #{tpu_custom_call.1} parent=11 // pred_check_branch
          %371 = sbr.rel (%p369) target = $region24
        $region23: #{tpu_custom_call.1} parent=11 // pred_region
          %s373 = ssub.s32 3072, 3072
          %374 = vsyncadd [#allocation9], %s373
          %s375 = sshll.u32 [#allocation8], 4
          %s376 = int_to_ptr.vmem [resolvable:$true] %s375
          %381 = dma.hbm_to_vmem [thread:$0]  %s3, 3072, %s376, [#allocation9], 192, 192, 12
        $region24: #{tpu_custom_call.1} parent=11 // pred_fallthru
          _
        // Predicated region
        $region25: #{tpu_custom_call.1} parent=11 // pred_check
          %p382 = pneg %p138
        $region26: #{tpu_custom_call.1} parent=11 // pred_check_branch
          %384 = sbr.rel (%p382) target = $region28
        $region27: #{tpu_custom_call.1} parent=11 // pred_region
          _
        $region28: #{tpu_custom_call.1} parent=11 // pred_fallthru
          _
        // Predicated region
        $region29: #{tpu_custom_call.1} parent=11 // pred_check
          %p385 = pneg %p159
        $region30: #{tpu_custom_call.1} parent=11 // pred_check_branch
          %387 = sbr.rel (%p385) target = $region32
        $region31: #{tpu_custom_call.1} parent=11 // pred_region
          %s389 = ssub.s32 1024, 1024
          %390 = vsyncadd [#allocation9], %s389
          %s391 = sshll.u32 [#allocation10], 4
          %s392 = int_to_ptr.vmem [resolvable:$true] %s391
          %397 = dma.hbm_to_vmem [thread:$0]  %s5, 1024, %s392, [#allocation9], 64, 64, 4
        $region32: #{tpu_custom_call.1} parent=11 // pred_fallthru
          _
        // Predicated region
        $region33: #{tpu_custom_call.1} parent=11 // pred_check
          %p398 = pneg %p180
        $region34: #{tpu_custom_call.1} parent=11 // pred_check_branch
          %400 = sbr.rel (%p398) target = $region36
        $region35: #{tpu_custom_call.1} parent=11 // pred_region
          _
        $region36: #{tpu_custom_call.1} parent=11 // pred_fallthru
          _
        // Predicated region
        $region37: #{tpu_custom_call.1} parent=11 // pred_check
          %p401 = pneg %p201
        $region38: #{tpu_custom_call.1} parent=11 // pred_check_branch
          %403 = sbr.rel (%p401) target = $region40
        $region39: #{tpu_custom_call.1} parent=11 // pred_region
          _
        $region40: #{tpu_custom_call.1} parent=11 // pred_fallthru
          _
        // Predicated region
        $region41: #{tpu_custom_call.1} parent=11 // pred_check
          %p404 = pneg %p222
        $region42: #{tpu_custom_call.1} parent=11 // pred_check_branch
          %406 = sbr.rel (%p404) target = $region44
        $region43: #{tpu_custom_call.1} parent=11 // pred_region
          _
        $region44: #{tpu_custom_call.1} parent=11 // pred_fallthru
          _
        // Predicated region
        $region45: #{tpu_custom_call.1} parent=11 // pred_check
          %p407 = pneg %p243
        $region46: #{tpu_custom_call.1} parent=11 // pred_check_branch
          %409 = sbr.rel (%p407) target = $region48
        $region47: #{tpu_custom_call.1} parent=11 // pred_region
          %s411 = ssub.s32 4096, 4096
          %412 = vsyncadd [#allocation12], %s411
          %s413 = sshll.u32 [#allocation11], 4
          %s414 = int_to_ptr.vmem [resolvable:$true] %s413
          %419 = dma.hbm_to_vmem [thread:$0]  %s9, 4096, %s414, [#allocation12], 256, 256, 16
        $region48: #{tpu_custom_call.1} parent=11 // pred_fallthru
          _
        // Predicated region
        $region49: #{tpu_custom_call.1} parent=11 // pred_check
          %p420 = pneg %p264
        $region50: #{tpu_custom_call.1} parent=11 // pred_check_branch
          %422 = sbr.rel (%p420) target = $region52
        $region51: #{tpu_custom_call.1} parent=11 // pred_region
          _
        $region52: #{tpu_custom_call.1} parent=11 // pred_fallthru
          _
        // Predicated region
        $region53: #{tpu_custom_call.1} parent=11 // pred_check
          %p423 = pneg %p285
        $region54: #{tpu_custom_call.1} parent=11 // pred_check_branch
          %425 = sbr.rel (%p423) target = $region56
        $region55: #{tpu_custom_call.1} parent=11 // pred_region
          %s427 = ssub.s32 4096, 4096
          %428 = vsyncadd [#allocation12], %s427
          %s429 = sshll.u32 [#allocation13], 4
          %s430 = int_to_ptr.vmem [resolvable:$true] %s429
          %435 = dma.hbm_to_vmem [thread:$0]  %s11, 4096, %s430, [#allocation12], 64, 64, 4
        $region56: #{tpu_custom_call.1} parent=11 // pred_fallthru
          _
        // Predicated region
        $region57: #{tpu_custom_call.1} parent=11 // pred_check
          %p436 = pneg %p306
        $region58: #{tpu_custom_call.1} parent=11 // pred_check_branch
          %438 = sbr.rel (%p436) target = $region60
        $region59: #{tpu_custom_call.1} parent=11 // pred_region
          _
        $region60: #{tpu_custom_call.1} parent=11 // pred_fallthru
          _
      $region12: #{tpu_custom_call.1} parent=5 // pred_fallthru
        _
      %p439 = scmp.lt.s32.totalorder %s28, 2
      // Predicated region
      $region61: #{tpu_custom_call.1} parent=5 // pred_check
        %p440 = pneg %p439
      $region62: #{tpu_custom_call.1} parent=5 // pred_check_branch
        %442 = sbr.rel (%p440) target = $region64
      $region63: #{tpu_custom_call.1} parent=5 // pred_region
        // Predicated region
        $region65: #{tpu_custom_call.1} parent=63 // pred_check
          %p443 = pneg %p48
        $region66: #{tpu_custom_call.1} parent=63 // pred_check_branch
          %445 = sbr.rel (%p443) target = $region68
        $region67: #{tpu_custom_call.1} parent=63 // pred_region
          %s446 = sand.u32 %s38, 1
          %s447 = scalar_lea.sflag [#allocation3], %s446
          %s448 = sand.u32 %s38, 1
          %s449 = smul.addr %s448, 8
          %s450 = scalar_lea.vmem [#allocation2], %s449
          %s452 = ssub.s32 128, 128
          %453 = vsyncadd %s447, %s452
          %s454 = smul.addr %s28, 128
          %s455 = scalar_lea.hbm %s0, %s454
          %s457 = sshll.u32 %s450, 4
          %s458 = int_to_ptr.vmem [resolvable:$true] %s457
          %460 = dma.hbm_to_vmem [thread:$0]  %s455, 128, %s458, %s447
        $region68: #{tpu_custom_call.1} parent=63 // pred_fallthru
          _
      $region64: #{tpu_custom_call.1} parent=5 // pred_fallthru
        _
      %p461 = scmp.le.s32.totalorder 1, %s28
      %p462 = scmp.lt.s32.totalorder %s28, 3
      %p463 = pnand %p461, %p462
      %p464 = pneg %p463
      // Predicated region
      $region69: #{tpu_custom_call.1} parent=5 // pred_check
        _
      $region70: #{tpu_custom_call.1} parent=5 // pred_check_branch
        %466 = sbr.rel (%p463) target = $region72
      $region71: #{tpu_custom_call.1} parent=5 // pred_region
        %s467 = ssub.s32 %s28, 1
        %s468 = sand.u32 %s41, 1
        %s469 = scalar_lea.sflag [#allocation3], %s468
        %s470 = sand.u32 %s41, 1
        %s471 = smul.addr %s470, 8
        %s472 = scalar_lea.vmem [#allocation2], %s471
        // Predicated region
        $region73: #{tpu_custom_call.1} parent=71 // pred_check
          %p473 = pneg %p54
        $region74: #{tpu_custom_call.1} parent=71 // pred_check_branch
          %475 = sbr.rel (%p473) target = $region76
        $region75: #{tpu_custom_call.1} parent=71 // pred_region
          %476 = dma.done %s469, 128
        $region76: #{tpu_custom_call.1} parent=71 // pred_fallthru
          _
        // Predicated region
        $region77: #{tpu_custom_call.1} parent=71 // pred_check
          %p477 = pneg %p75
        $region78: #{tpu_custom_call.1} parent=71 // pred_check_branch
          %479 = sbr.rel (%p477) target = $region80
        $region79: #{tpu_custom_call.1} parent=71 // pred_region
          %480 = dma.done [#allocation6], 16
        $region80: #{tpu_custom_call.1} parent=71 // pred_fallthru
          _
        // Predicated region
        $region81: #{tpu_custom_call.1} parent=71 // pred_check
          %p481 = pneg %p96
        $region82: #{tpu_custom_call.1} parent=71 // pred_check_branch
          %483 = sbr.rel (%p481) target = $region84
        $region83: #{tpu_custom_call.1} parent=71 // pred_region
          %484 = dma.done [#allocation6], 16
        $region84: #{tpu_custom_call.1} parent=71 // pred_fallthru
          _
        // Predicated region
        $region85: #{tpu_custom_call.1} parent=71 // pred_check
          %p485 = pneg %p117
        $region86: #{tpu_custom_call.1} parent=71 // pred_check_branch
          %487 = sbr.rel (%p485) target = $region88
        $region87: #{tpu_custom_call.1} parent=71 // pred_region
          %488 = dma.done [#allocation9], 3072
        $region88: #{tpu_custom_call.1} parent=71 // pred_fallthru
          _
        // Predicated region
        $region89: #{tpu_custom_call.1} parent=71 // pred_check
          %p489 = pneg %p159
        $region90: #{tpu_custom_call.1} parent=71 // pred_check_branch
          %491 = sbr.rel (%p489) target = $region92
        $region91: #{tpu_custom_call.1} parent=71 // pred_region
          %492 = dma.done [#allocation9], 1024
        $region92: #{tpu_custom_call.1} parent=71 // pred_fallthru
          _
        // Predicated region
        $region93: #{tpu_custom_call.1} parent=71 // pred_check
          %p493 = pneg %p243
        $region94: #{tpu_custom_call.1} parent=71 // pred_check_branch
          %495 = sbr.rel (%p493) target = $region96
        $region95: #{tpu_custom_call.1} parent=71 // pred_region
          %496 = dma.done [#allocation12], 4096
        $region96: #{tpu_custom_call.1} parent=71 // pred_fallthru
          _
        // Predicated region
        $region97: #{tpu_custom_call.1} parent=71 // pred_check
          %p497 = pneg %p285
        $region98: #{tpu_custom_call.1} parent=71 // pred_check_branch
          %499 = sbr.rel (%p497) target = $region100
        $region99: #{tpu_custom_call.1} parent=71 // pred_region
          %500 = dma.done [#allocation12], 4096
        $region100: #{tpu_custom_call.1} parent=71 // pred_fallthru
          _
        %s501 = sand.u32 %s41, 1
        %s502 = scalar_lea.sflag [#allocation3], %s501
        %s503 = sand.u32 %s41, 1
        %s504 = smul.addr %s503, 8
        %s505 = scalar_lea.vmem [#allocation2], %s504
        %p506 = pneg %p54
        %p507 = pneg %p51
        %p508 = pneg %p75
        %p509 = pneg %p72
        %p510 = pneg %p96
        %p511 = pneg %p93
        %p512 = pneg %p117
        %p513 = pneg %p114
        %p514 = pneg %p138
        %p515 = pneg %p135
        %p516 = pneg %p159
        %p517 = pneg %p156
        %p518 = pneg %p180
        %p519 = pneg %p177
        %p520 = pneg %p201
        %p521 = pneg %p198
        %p522 = pneg %p222
        %p523 = pneg %p219
        %p524 = pneg %p243
        %p525 = pneg %p240
        %p526 = pneg %p264
        %p527 = pneg %p261
        %p528 = pneg %p285
        %p529 = pneg %p282
        %p530 = pneg %p306
        %p531 = pneg %p303
        %p532 = pneg %p332
        %p533 = pneg %p329
        %s534 = sand.u32 %s319, 1
        %s535 = scalar_lea.sflag [#allocation4], %s534
        %s536 = sand.u32 %s319, 1
        %s537 = smul.addr %s536, 8
        %s538 = scalar_lea.vmem [#allocation14], %s537
        %v540 = vld [vmem:[%s472] sm:$0xff]
        %v541 = vld [vmem:[#allocation5] sm:$0x1]
        %v542 = vld [vmem:[#allocation7] sm:$0x1]
        %543 = vadd.xlane.f32.xlu0 %v540
        %v544 = vpop.xlane.xlu0 %543
        %v545 = vrcp.pop 128.0
        %v546 = vmul.f32 %v544, %v545
        %v547 = vsub.f32 %v540, %v546
        %v548 = vmul.f32 %v547, %v547
        %549 = vadd.xlane.f32.xlu0 %v548
        %v550 = vpop.xlane.xlu0 %549
        %v551 = vmul.f32 %v550, %v545
        %v552 = vadd.f32 %v551, 1e-05
        %v553 = vrsqrt.pop %v552
        %v554 = vmul.f32 %v547, %v553
        %v556 = vlaneseq
        %v557 = vshrl.u32 %v556, 7
        %v558 = vsub.s32 0, %v557
        %v559 = vrot.slane %v541, %v558
        %v561 = vmul.f32 %v554, %v559
        %v563 = vlaneseq
        %v564 = vshrl.u32 %v563, 7
        %v565 = vsub.s32 0, %v564
        %v566 = vrot.slane %v542, %v565
        %v568 = vadd.f32 %v561, %v566
        %v569 = vpack.c.bf16 %v568, %v568
        %v570 = vld [vmem:[#allocation8] sm:$0xff]
        %v571 = vld [vmem:[#allocation8 + $0x8] sm:$0xf]
        %v572 = vld [vmem:[#allocation8 + $0xc] sm:$0xff]
        %v573 = vld [vmem:[#allocation8 + $0x14] sm:$0xf]
        %v574 = vld [vmem:[#allocation8 + $0x18] sm:$0xff]
        %v575 = vld [vmem:[#allocation8 + $0x20] sm:$0xf]
        %v576 = vld [vmem:[#allocation8 + $0x24] sm:$0xff]
        %v577 = vld [vmem:[#allocation8 + $0x2c] sm:$0xf]
        %v578 = vld [vmem:[#allocation8 + $0x30] sm:$0xff]
        %v579 = vld [vmem:[#allocation8 + $0x38] sm:$0xf]
        %v580 = vld [vmem:[#allocation8 + $0x3c] sm:$0xff]
        %v581 = vld [vmem:[#allocation8 + $0x44] sm:$0xf]
        %v582 = vld [vmem:[#allocation8 + $0x48] sm:$0xff]
        %v583 = vld [vmem:[#allocation8 + $0x50] sm:$0xf]
        %v584 = vld [vmem:[#allocation8 + $0x54] sm:$0xff]
        %v585 = vld [vmem:[#allocation8 + $0x5c] sm:$0xf]
        %v586 = vld [vmem:[#allocation8 + $0x60] sm:$0xff]
        %v587 = vld [vmem:[#allocation8 + $0x68] sm:$0xf]
        %v588 = vld [vmem:[#allocation8 + $0x6c] sm:$0xff]
        %v589 = vld [vmem:[#allocation8 + $0x74] sm:$0xf]
        %v590 = vld [vmem:[#allocation8 + $0x78] sm:$0xff]
        %v591 = vld [vmem:[#allocation8 + $0x80] sm:$0xf]
        %v592 = vld [vmem:[#allocation8 + $0x84] sm:$0xff]
        %v593 = vld [vmem:[#allocation8 + $0x8c] sm:$0xf]
        %v594 = vld [vmem:[#allocation8 + $0x90] sm:$0xff]
        %v595 = vld [vmem:[#allocation8 + $0x98] sm:$0xf]
        %v596 = vld [vmem:[#allocation8 + $0x9c] sm:$0xff]
        %v597 = vld [vmem:[#allocation8 + $0xa4] sm:$0xf]
        %v598 = vld [vmem:[#allocation8 + $0xa8] sm:$0xff]
        %v599 = vld [vmem:[#allocation8 + $0xb0] sm:$0xf]
        %v600 = vld [vmem:[#allocation8 + $0xb4] sm:$0xff]
        %v601 = vld [vmem:[#allocation8 + $0xbc] sm:$0xf]
        %v602 = vld [vmem:[%s4] sm:$0x7]
        %v604 = vlaneseq
        %v605 = vshrl.u32 %v604, 7
        %v606 = vsub.s32 0, %v605
        %v607 = vrot.slane %v602, %v606
        %v608 = vlaneseq
        %v609 = vshrl.u32 %v608, 7
        %v610 = vsub.s32 1, %v609
        %v611 = vrot.slane %v602, %v610
        %v612 = vlaneseq
        %v613 = vshrl.u32 %v612, 7
        %v614 = vsub.s32 2, %v613
        %v615 = vrot.slane %v602, %v614
        %v651 = vunpack.c.l.b16 %v570
        %v652 = vunpack.c.h.b16 %v570
        %v653 = vunpack.c.l.b16 %v571
        %v654 = vunpack.c.l.b16 %v572
        %v655 = vunpack.c.h.b16 %v572
        %v656 = vunpack.c.l.b16 %v573
        %v657 = vunpack.c.l.b16 %v574
        %v658 = vunpack.c.h.b16 %v574
        %v659 = vunpack.c.l.b16 %v575
        %v660 = vunpack.c.l.b16 %v576
        %v661 = vunpack.c.h.b16 %v576
        %v662 = vunpack.c.l.b16 %v577
        %v663 = vunpack.c.l.b16 %v578
        %v664 = vunpack.c.h.b16 %v578
        %v665 = vunpack.c.l.b16 %v579
        %v666 = vunpack.c.l.b16 %v580
        %v667 = vunpack.c.h.b16 %v580
        %v668 = vunpack.c.l.b16 %v581
        %v669 = vunpack.c.l.b16 %v582
        %v670 = vunpack.c.h.b16 %v582
        %v671 = vunpack.c.l.b16 %v583
        %v672 = vunpack.c.l.b16 %v584
        %v673 = vunpack.c.h.b16 %v584
        %v674 = vunpack.c.l.b16 %v585
        %v675 = vunpack.c.l.b16 %v586
        %v676 = vunpack.c.h.b16 %v586
        %v677 = vunpack.c.l.b16 %v587
        %v678 = vunpack.c.l.b16 %v588
        %v679 = vunpack.c.h.b16 %v588
        %v680 = vunpack.c.l.b16 %v589
        %v681 = vunpack.c.l.b16 %v590
        %v682 = vunpack.c.h.b16 %v590
        %v683 = vunpack.c.l.b16 %v591
        %v684 = vunpack.c.l.b16 %v592
        %v685 = vunpack.c.h.b16 %v592
        %v686 = vunpack.c.l.b16 %v593
        %v687 = vunpack.c.l.b16 %v594
        %v688 = vunpack.c.h.b16 %v594
        %v689 = vunpack.c.l.b16 %v595
        %v690 = vunpack.c.l.b16 %v596
        %v691 = vunpack.c.h.b16 %v596
        %v692 = vunpack.c.l.b16 %v597
        %v693 = vunpack.c.l.b16 %v598
        %v694 = vunpack.c.h.b16 %v598
        %v695 = vunpack.c.l.b16 %v599
        %v696 = vunpack.c.l.b16 %v600
        %v697 = vunpack.c.h.b16 %v600
        %v698 = vunpack.c.l.b16 %v601
        %v699 = vpack.c.b16 %v654, %v651
        %v700 = vpack.c.b16 %v655, %v652
        %v701 = vpack.c.b16 %v656, %v653
        %v702 = vpack.c.b16 %v660, %v657
        %v703 = vpack.c.b16 %v661, %v658
        %v704 = vpack.c.b16 %v662, %v659
        %v705 = vpack.c.b16 %v666, %v663
        %v706 = vpack.c.b16 %v667, %v664
        %v707 = vpack.c.b16 %v668, %v665
        %v708 = vpack.c.b16 %v672, %v669
        %v709 = vpack.c.b16 %v673, %v670
        %v710 = vpack.c.b16 %v674, %v671
        %v711 = vpack.c.b16 %v678, %v675
        %v712 = vpack.c.b16 %v679, %v676
        %v713 = vpack.c.b16 %v680, %v677
        %v714 = vpack.c.b16 %v684, %v681
        %v715 = vpack.c.b16 %v685, %v682
        %v716 = vpack.c.b16 %v686, %v683
        %v717 = vpack.c.b16 %v690, %v687
        %v718 = vpack.c.b16 %v691, %v688
        %v719 = vpack.c.b16 %v692, %v689
        %v720 = vpack.c.b16 %v696, %v693
        %v721 = vpack.c.b16 %v697, %v694
        %v722 = vpack.c.b16 %v698, %v695
        %747 = vmatprep.subr.bf16.mxu0 %v721
        %748 = vmatpush1.bf16.msra.mxu0 %v720
        %749 = vmatprep.subr.bf16.mxu0 %v718
        %750 = vmatpush1.bf16.msra.mxu0 %v717
        %751 = vmatprep.subr.bf16.mxu0 %v715
        %752 = vmatpush1.bf16.msra.mxu0 %v714
        %753 = vmatprep.subr.bf16.mxu0 %v712
        %754 = vmatpush1.bf16.msra.mxu0 %v711
        %755 = vmatprep.subr.bf16.mxu0 %v709
        %756 = vmatpush1.bf16.msra.mxu0 %v708
        %757 = vmatprep.subr.bf16.mxu0 %v706
        %758 = vmatpush1.bf16.msra.mxu0 %v705
        %759 = vmatprep.subr.bf16.mxu0 %v703
        %760 = vmatpush1.bf16.msra.mxu0 %v702
        %761 = vmatprep.subr.bf16.mxu0 %v700
        %762 = vmatpush1.bf16.msra.mxu0 %v699
        %763 = vmatprep.subr.bf16.mxu0 0
        %764 = vmatpush2.bf16.msra.mxu0 0
        %765 = vmatprep.subr.bf16.mxu0 0
        %766 = vmatpush2.bf16.msra.mxu0 0
        %767 = vmatprep.subr.bf16.mxu0 0
        %768 = vmatpush2.bf16.msra.mxu0 0
        %769 = vmatprep.subr.bf16.mxu0 0
        %770 = vmatpush2.bf16.msra.mxu0 0
        %771 = vmatprep.subr.bf16.mxu0 0
        %772 = vmatpush2.bf16.msra.mxu0 0
        %773 = vmatprep.subr.bf16.mxu0 0
        %774 = vmatpush2.bf16.msra.mxu0 0
        %775 = vmatprep.subr.bf16.mxu0 0
        %776 = vmatpush2.bf16.msra.mxu0 0
        %777 = vmatprep.subr.bf16.mxu0 0
        %778 = vmatpush2.bf16.msra.mxu0 0
        %779 = vmatprep.mubr.bf16.mxu0 0
        %780 = vmatmul.mubr.bf16.gmra.mxu0 %v569
        %v781 = vpop.f32.mrf.mxu0
        %v782 = vadd.f32 %v607, %v781
        %v783 = vpop.f32.mrf.mxu0
        %v784 = vadd.f32 %v611, %v783
        %v785 = vpop.f32.mrf.mxu0
        %v786 = vpop.f32.mrf.mxu0
        %787 = vdwg.mxu0
        %788 = vmatprep.subr.bf16.mxu0 0
        %789 = vmatpush1.bf16.msra.mxu0 %v722
        %790 = vmatprep.subr.bf16.mxu0 0
        %791 = vmatpush1.bf16.msra.mxu0 %v719
        %792 = vmatprep.subr.bf16.mxu0 0
        %793 = vmatpush1.bf16.msra.mxu0 %v716
        %794 = vmatprep.subr.bf16.mxu0 0
        %795 = vmatpush1.bf16.msra.mxu0 %v713
        %796 = vmatprep.subr.bf16.mxu0 0
        %797 = vmatpush1.bf16.msra.mxu0 %v710
        %798 = vmatprep.subr.bf16.mxu0 0
        %799 = vmatpush1.bf16.msra.mxu0 %v707
        %800 = vmatprep.subr.bf16.mxu0 0
        %801 = vmatpush1.bf16.msra.mxu0 %v704
        %802 = vmatprep.subr.bf16.mxu0 0
        %803 = vmatpush1.bf16.msra.mxu0 %v701
        %804 = vmatprep.subr.bf16.mxu0 0
        %805 = vmatpush2.bf16.msra.mxu0 0
        %806 = vmatprep.subr.bf16.mxu0 0
        %807 = vmatpush2.bf16.msra.mxu0 0
        %808 = vmatprep.subr.bf16.mxu0 0
        %809 = vmatpush2.bf16.msra.mxu0 0
        %810 = vmatprep.subr.bf16.mxu0 0
        %811 = vmatpush2.bf16.msra.mxu0 0
        %812 = vmatprep.subr.bf16.mxu0 0
        %813 = vmatpush2.bf16.msra.mxu0 0
        %814 = vmatprep.subr.bf16.mxu0 0
        %815 = vmatpush2.bf16.msra.mxu0 0
        %816 = vmatprep.subr.bf16.mxu0 0
        %817 = vmatpush2.bf16.msra.mxu0 0
        %818 = vmatprep.subr.bf16.mxu0 0
        %819 = vmatpush2.bf16.msra.mxu0 0
        %820 = vmatprep.mubr.bf16.mxu0 0
        %821 = vmatmul.mubr.bf16.gmra.mxu0 %v569
        %v822 = vpop.f32.mrf.mxu0
        %v823 = vadd.f32 %v615, %v822
        %v824 = vpop.f32.mrf.mxu0
        %v825 = vpop.f32.mrf.mxu0
        %v826 = vpop.f32.mrf.mxu0
        %827 = vdwg.mxu0
        %830 = vrot.lane.b32.xlu0 %v782, 32
        %v831 = vpop.permute.xlu0 %830
        %832 = vrot.lane.b32.xlu0 %v784, 32
        %v833 = vpop.permute.xlu0 %832
        %vm834 = vcmask 261120
        %v835 = vsel %vm834, %v831, %v833
        %838 = vrot.lane.b32.xlu0 %v784, 64
        %v839 = vpop.permute.xlu0 %838
        %840 = vrot.lane.b32.xlu0 %v823, 64
        %v841 = vpop.permute.xlu0 %840
        %vm842 = vcmask 523264
        %v843 = vsel %vm842, %v839, %v841
        %845 = vrot.lane.b32.xlu0 %v823, 96
        %v846 = vpop.permute.xlu0 %845
        %v848 = vpack.c.bf16 %v782, %v782
        %v849 = vpack.c.bf16 %v835, %v835
        %v850 = vpack.c.bf16 %v843, %v843
        %v851 = vpack.c.bf16 %v846, %v846
        %853 = vrot.lane.b32.xlu0 %v848, 96
        %v854 = vpop.permute.xlu0 %853
        %v856 = vsel %vm834, %v848, 0
        %v859 = vsel %vm834, %v854, 0
        %861 = vmatprep.subr.bf16.mxu0 0
        %862 = vmatpush1.bf16.xpose.msra.mxu0 0
        %863 = vmatprep.subr.bf16.mxu0 0
        %864 = vmatpush1.bf16.xpose.msra.mxu0 0
        %865 = vmatprep.subr.bf16.mxu0 0
        %866 = vmatpush1.bf16.xpose.msra.mxu0 0
        %867 = vmatprep.subr.bf16.mxu0 0
        %868 = vmatpush1.bf16.xpose.msra.mxu0 0
        %869 = vmatprep.subr.bf16.mxu0 0
        %870 = vmatpush1.bf16.xpose.msra.mxu0 0
        %871 = vmatprep.subr.bf16.mxu0 0
        %872 = vmatpush1.bf16.xpose.msra.mxu0 0
        %873 = vmatprep.subr.bf16.mxu0 0
        %874 = vmatpush1.bf16.xpose.msra.mxu0 0
        %875 = vmatprep.subr.bf16.mxu0 0
        %876 = vmatpush1.bf16.xpose.msra.mxu0 %v859
        %877 = vmatprep.subr.bf16.mxu0 0
        %878 = vmatpush2.bf16.xpose.msra.mxu0 0
        %879 = vmatprep.subr.bf16.mxu0 0
        %880 = vmatpush2.bf16.xpose.msra.mxu0 0
        %881 = vmatprep.subr.bf16.mxu0 0
        %882 = vmatpush2.bf16.xpose.msra.mxu0 0
        %883 = vmatprep.subr.bf16.mxu0 0
        %884 = vmatpush2.bf16.xpose.msra.mxu0 0
        %885 = vmatprep.subr.bf16.mxu0 0
        %886 = vmatpush2.bf16.xpose.msra.mxu0 0
        %887 = vmatprep.subr.bf16.mxu0 0
        %888 = vmatpush2.bf16.xpose.msra.mxu0 0
        %889 = vmatprep.subr.bf16.mxu0 0
        %890 = vmatpush2.bf16.xpose.msra.mxu0 0
        %891 = vmatprep.subr.bf16.mxu0 0
        %892 = vmatpush2.bf16.xpose.msra.mxu0 0
        %893 = vmatprep.mubr.bf16.mxu0 0
        %894 = vmatmul.mubr.bf16.gmra.mxu0 %v856
        %v895 = vpop.f32.mrf.mxu0
        %v896 = vadd.f32 0.0, %v895
        %v897 = vpop.f32.mrf.mxu0
        %v898 = vpop.f32.mrf.mxu0
        %v899 = vpop.f32.mrf.mxu0
        %900 = vdwg.mxu0
        %902 = vrot.lane.b32.xlu0 %v849, 96
        %v903 = vpop.permute.xlu0 %902
        %v905 = vsel %vm834, %v849, 0
        %v908 = vsel %vm834, %v903, 0
        %910 = vmatprep.subr.bf16.mxu0 0
        %911 = vmatpush1.bf16.xpose.msra.mxu0 0
        %912 = vmatprep.subr.bf16.mxu0 0
        %913 = vmatpush1.bf16.xpose.msra.mxu0 0
        %914 = vmatprep.subr.bf16.mxu0 0
        %915 = vmatpush1.bf16.xpose.msra.mxu0 0
        %916 = vmatprep.subr.bf16.mxu0 0
        %917 = vmatpush1.bf16.xpose.msra.mxu0 0
        %918 = vmatprep.subr.bf16.mxu0 0
        %919 = vmatpush1.bf16.xpose.msra.mxu0 0
        %920 = vmatprep.subr.bf16.mxu0 0
        %921 = vmatpush1.bf16.xpose.msra.mxu0 0
        %922 = vmatprep.subr.bf16.mxu0 0
        %923 = vmatpush1.bf16.xpose.msra.mxu0 0
        %924 = vmatprep.subr.bf16.mxu0 0
        %925 = vmatpush1.bf16.xpose.msra.mxu0 %v908
        %926 = vmatprep.subr.bf16.mxu0 0
        %927 = vmatpush2.bf16.xpose.msra.mxu0 0
        %928 = vmatprep.subr.bf16.mxu0 0
        %929 = vmatpush2.bf16.xpose.msra.mxu0 0
        %930 = vmatprep.subr.bf16.mxu0 0
        %931 = vmatpush2.bf16.xpose.msra.mxu0 0
        %932 = vmatprep.subr.bf16.mxu0 0
        %933 = vmatpush2.bf16.xpose.msra.mxu0 0
        %934 = vmatprep.subr.bf16.mxu0 0
        %935 = vmatpush2.bf16.xpose.msra.mxu0 0
        %936 = vmatprep.subr.bf16.mxu0 0
        %937 = vmatpush2.bf16.xpose.msra.mxu0 0
        %938 = vmatprep.subr.bf16.mxu0 0
        %939 = vmatpush2.bf16.xpose.msra.mxu0 0
        %940 = vmatprep.subr.bf16.mxu0 0
        %941 = vmatpush2.bf16.xpose.msra.mxu0 0
        %942 = vmatprep.mubr.bf16.mxu0 0
        %943 = vmatmul.mubr.bf16.gmra.mxu0 %v905
        %v944 = vpop.f32.mrf.mxu0
        %v945 = vadd.f32 0.0, %v944
        %v946 = vpop.f32.mrf.mxu0
        %v947 = vpop.f32.mrf.mxu0
        %v948 = vpop.f32.mrf.mxu0
        %949 = vdwg.mxu0
        %951 = vrot.lane.b32.xlu0 %v850, 96
        %v952 = vpop.permute.xlu0 %951
        %v954 = vsel %vm834, %v850, 0
        %v957 = vsel %vm834, %v952, 0
        %959 = vmatprep.subr.bf16.mxu0 0
        %960 = vmatpush1.bf16.xpose.msra.mxu0 0
        %961 = vmatprep.subr.bf16.mxu0 0
        %962 = vmatpush1.bf16.xpose.msra.mxu0 0
        %963 = vmatprep.subr.bf16.mxu0 0
        %964 = vmatpush1.bf16.xpose.msra.mxu0 0
        %965 = vmatprep.subr.bf16.mxu0 0
        %966 = vmatpush1.bf16.xpose.msra.mxu0 0
        %967 = vmatprep.subr.bf16.mxu0 0
        %968 = vmatpush1.bf16.xpose.msra.mxu0 0
        %969 = vmatprep.subr.bf16.mxu0 0
        %970 = vmatpush1.bf16.xpose.msra.mxu0 0
        %971 = vmatprep.subr.bf16.mxu0 0
        %972 = vmatpush1.bf16.xpose.msra.mxu0 0
        %973 = vmatprep.subr.bf16.mxu0 0
        %974 = vmatpush1.bf16.xpose.msra.mxu0 %v957
        %975 = vmatprep.subr.bf16.mxu0 0
        %976 = vmatpush2.bf16.xpose.msra.mxu0 0
        %977 = vmatprep.subr.bf16.mxu0 0
        %978 = vmatpush2.bf16.xpose.msra.mxu0 0
        %979 = vmatprep.subr.bf16.mxu0 0
        %980 = vmatpush2.bf16.xpose.msra.mxu0 0
        %981 = vmatprep.subr.bf16.mxu0 0
        %982 = vmatpush2.bf16.xpose.msra.mxu0 0
        %983 = vmatprep.subr.bf16.mxu0 0
        %984 = vmatpush2.bf16.xpose.msra.mxu0 0
        %985 = vmatprep.subr.bf16.mxu0 0
        %986 = vmatpush2.bf16.xpose.msra.mxu0 0
        %987 = vmatprep.subr.bf16.mxu0 0
        %988 = vmatpush2.bf16.xpose.msra.mxu0 0
        %989 = vmatprep.subr.bf16.mxu0 0
        %990 = vmatpush2.bf16.xpose.msra.mxu0 0
        %991 = vmatprep.mubr.bf16.mxu0 0
        %992 = vmatmul.mubr.bf16.gmra.mxu0 %v954
        %v993 = vpop.f32.mrf.mxu0
        %v994 = vadd.f32 0.0, %v993
        %v995 = vpop.f32.mrf.mxu0
        %v996 = vpop.f32.mrf.mxu0
        %v997 = vpop.f32.mrf.mxu0
        %998 = vdwg.mxu0
        %1000 = vrot.lane.b32.xlu0 %v851, 96
        %v1001 = vpop.permute.xlu0 %1000
        %v1003 = vsel %vm834, %v851, 0
        %v1006 = vsel %vm834, %v1001, 0
        %1008 = vmatprep.subr.bf16.mxu0 0
        %1009 = vmatpush1.bf16.xpose.msra.mxu0 0
        %1010 = vmatprep.subr.bf16.mxu0 0
        %1011 = vmatpush1.bf16.xpose.msra.mxu0 0
        %1012 = vmatprep.subr.bf16.mxu0 0
        %1013 = vmatpush1.bf16.xpose.msra.mxu0 0
        %1014 = vmatprep.subr.bf16.mxu0 0
        %1015 = vmatpush1.bf16.xpose.msra.mxu0 0
        %1016 = vmatprep.subr.bf16.mxu0 0
        %1017 = vmatpush1.bf16.xpose.msra.mxu0 0
        %1018 = vmatprep.subr.bf16.mxu0 0
        %1019 = vmatpush1.bf16.xpose.msra.mxu0 0
        %1020 = vmatprep.subr.bf16.mxu0 0
        %1021 = vmatpush1.bf16.xpose.msra.mxu0 0
        %1022 = vmatprep.subr.bf16.mxu0 0
        %1023 = vmatpush1.bf16.xpose.msra.mxu0 %v1006
        %1024 = vmatprep.subr.bf16.mxu0 0
        %1025 = vmatpush2.bf16.xpose.msra.mxu0 0
        %1026 = vmatprep.subr.bf16.mxu0 0
        %1027 = vmatpush2.bf16.xpose.msra.mxu0 0
        %1028 = vmatprep.subr.bf16.mxu0 0
        %1029 = vmatpush2.bf16.xpose.msra.mxu0 0
        %1030 = vmatprep.subr.bf16.mxu0 0
        %1031 = vmatpush2.bf16.xpose.msra.mxu0 0
        %1032 = vmatprep.subr.bf16.mxu0 0
        %1033 = vmatpush2.bf16.xpose.msra.mxu0 0
        %1034 = vmatprep.subr.bf16.mxu0 0
        %1035 = vmatpush2.bf16.xpose.msra.mxu0 0
        %1036 = vmatprep.subr.bf16.mxu0 0
        %1037 = vmatpush2.bf16.xpose.msra.mxu0 0
        %1038 = vmatprep.subr.bf16.mxu0 0
        %1039 = vmatpush2.bf16.xpose.msra.mxu0 0
        %1040 = vmatprep.mubr.bf16.mxu0 0
        %1041 = vmatmul.mubr.bf16.gmra.mxu0 %v1003
        %v1042 = vpop.f32.mrf.mxu0
        %v1043 = vadd.f32 0.0, %v1042
        %v1044 = vpop.f32.mrf.mxu0
        %v1045 = vpop.f32.mrf.mxu0
        %v1046 = vpop.f32.mrf.mxu0
        %1047 = vdwg.mxu0
        %v1048 = vmul.f32 %v896, 0.17677669
        %v1049 = vmul.f32 %v945, 0.17677669
        %v1050 = vmul.f32 %v994, 0.17677669
        %v1051 = vmul.f32 %v1043, 0.17677669
        %v1052 = vlaneseq
        %v1053 = vshrl.u32 %v1052, 7
        %v1054 = vlaneseq
        %v1055 = vand.u32 %v1054, 127
        %vm1056 = vcmp.le.s32.totalorder %v1055, %v1053
        %v1057 = vsel %vm1056, 1, 0
        %vm1058 = vcmp.eq.s32.totalorder %v1057, 1
        %v1059 = vsel %vm1058, %v1048, -1e+30
        %v1060 = vsel %vm1058, %v1049, -1e+30
        %v1061 = vsel %vm1058, %v1050, -1e+30
        %v1062 = vsel %vm1058, %v1051, -1e+30
        %vm1063 = vcmask 64512
        %v1064 = vsel %vm1063, %v1059, -inf
        %1065 = vmax.xlane.f32.xlu0 %v1064
        %v1066 = vpop.xlane.xlu0 %1065
        %v1067 = vsel %vm1063, %v1060, -inf
        %1068 = vmax.xlane.f32.xlu0 %v1067
        %v1069 = vpop.xlane.xlu0 %1068
        %v1070 = vsel %vm1063, %v1061, -inf
        %1071 = vmax.xlane.f32.xlu0 %v1070
        %v1072 = vpop.xlane.xlu0 %1071
        %v1073 = vsel %vm1063, %v1062, -inf
        %1074 = vmax.xlane.f32.xlu0 %v1073
        %v1075 = vpop.xlane.xlu0 %1074
        %v1076 = vsub.f32 %v1059, %v1066
        %v1077 = vsub.f32 %v1060, %v1069
        %v1078 = vsub.f32 %v1061, %v1072
        %v1079 = vsub.f32 %v1062, %v1075
        %v1080 = vmul.f32 %v1076, 1.442695
        %v1081 = vpow.pop %v1080
        %v1082 = vmul.f32 %v1077, 1.442695
        %v1083 = vpow.pop %v1082
        %v1084 = vmul.f32 %v1078, 1.442695
        %v1085 = vpow.pop %v1084
        %v1086 = vmul.f32 %v1079, 1.442695
        %v1087 = vpow.pop %v1086
        %v1088 = vsel %vm1063, %v1081, 0.0
        %1089 = vadd.xlane.f32.xlu0 %v1088
        %v1090 = vpop.xlane.xlu0 %1089
        %v1091 = vsel %vm1063, %v1083, 0.0
        %1092 = vadd.xlane.f32.xlu0 %v1091
        %v1093 = vpop.xlane.xlu0 %1092
        %v1094 = vsel %vm1063, %v1085, 0.0
        %1095 = vadd.xlane.f32.xlu0 %v1094
        %v1096 = vpop.xlane.xlu0 %1095
        %v1097 = vsel %vm1063, %v1087, 0.0
        %1098 = vadd.xlane.f32.xlu0 %v1097
        %v1099 = vpop.xlane.xlu0 %1098
        %v1100 = vrcp.pop %v1090
        %v1101 = vrcp.pop %v1093
        %v1102 = vrcp.pop %v1096
        %v1103 = vrcp.pop %v1099
        %v1104 = vmul.f32 %v1081, %v1100
        %v1105 = vmul.f32 %v1083, %v1101
        %v1106 = vmul.f32 %v1085, %v1102
        %v1107 = vmul.f32 %v1087, %v1103
        %v1108 = vpack.c.bf16 %v1104, %v1104
        %v1109 = vpack.c.bf16 %v1105, %v1105
        %v1110 = vpack.c.bf16 %v1106, %v1106
        %v1111 = vpack.c.bf16 %v1107, %v1107
        %1112 = vrot.lane.b32.xlu0 %v848, 64
        %v1113 = vpop.permute.xlu0 %1112
        %v1115 = vsel %vm1063, %v1108, 0
        %vm1117 = vcmask 1043456
        %v1119 = vsel %vm1117, %v1113, 0
        %1121 = vmatprep.subr.bf16.mxu0 0
        %1122 = vmatpush1.bf16.msra.mxu0 0
        %1123 = vmatprep.subr.bf16.mxu0 0
        %1124 = vmatpush1.bf16.msra.mxu0 0
        %1125 = vmatprep.subr.bf16.mxu0 0
        %1126 = vmatpush1.bf16.msra.mxu0 0
        %1127 = vmatprep.subr.bf16.mxu0 0
        %1128 = vmatpush1.bf16.msra.mxu0 0
        %1129 = vmatprep.subr.bf16.mxu0 0
        %1130 = vmatpush1.bf16.msra.mxu0 0
        %1131 = vmatprep.subr.bf16.mxu0 0
        %1132 = vmatpush1.bf16.msra.mxu0 0
        %1133 = vmatprep.subr.bf16.mxu0 0
        %1134 = vmatpush1.bf16.msra.mxu0 0
        %1135 = vmatprep.subr.bf16.mxu0 0
        %1136 = vmatpush1.bf16.msra.mxu0 %v1119
        %1137 = vmatprep.subr.bf16.mxu0 0
        %1138 = vmatpush2.bf16.msra.mxu0 0
        %1139 = vmatprep.subr.bf16.mxu0 0
        %1140 = vmatpush2.bf16.msra.mxu0 0
        %1141 = vmatprep.subr.bf16.mxu0 0
        %1142 = vmatpush2.bf16.msra.mxu0 0
        %1143 = vmatprep.subr.bf16.mxu0 0
        %1144 = vmatpush2.bf16.msra.mxu0 0
        %1145 = vmatprep.subr.bf16.mxu0 0
        %1146 = vmatpush2.bf16.msra.mxu0 0
        %1147 = vmatprep.subr.bf16.mxu0 0
        %1148 = vmatpush2.bf16.msra.mxu0 0
        %1149 = vmatprep.subr.bf16.mxu0 0
        %1150 = vmatpush2.bf16.msra.mxu0 0
        %1151 = vmatprep.subr.bf16.mxu0 0
        %1152 = vmatpush2.bf16.msra.mxu0 0
        %1153 = vmatprep.mubr.bf16.mxu0 0
        %1154 = vmatmul.mubr.bf16.gmra.mxu0 %v1115
        %v1155 = vpop.f32.mrf.mxu0
        %v1156 = vadd.f32 0.0, %v1155
        %v1157 = vpop.f32.mrf.mxu0
        %v1158 = vpop.f32.mrf.mxu0
        %v1159 = vpop.f32.mrf.mxu0
        %1160 = vdwg.mxu0
        %1161 = vrot.lane.b32.xlu0 %v849, 64
        %v1162 = vpop.permute.xlu0 %1161
        %v1164 = vsel %vm1063, %v1109, 0
        %v1167 = vsel %vm1117, %v1162, 0
        %1169 = vmatprep.subr.bf16.mxu0 0
        %1170 = vmatpush1.bf16.msra.mxu0 0
        %1171 = vmatprep.subr.bf16.mxu0 0
        %1172 = vmatpush1.bf16.msra.mxu0 0
        %1173 = vmatprep.subr.bf16.mxu0 0
        %1174 = vmatpush1.bf16.msra.mxu0 0
        %1175 = vmatprep.subr.bf16.mxu0 0
        %1176 = vmatpush1.bf16.msra.mxu0 0
        %1177 = vmatprep.subr.bf16.mxu0 0
        %1178 = vmatpush1.bf16.msra.mxu0 0
        %1179 = vmatprep.subr.bf16.mxu0 0
        %1180 = vmatpush1.bf16.msra.mxu0 0
        %1181 = vmatprep.subr.bf16.mxu0 0
        %1182 = vmatpush1.bf16.msra.mxu0 0
        %1183 = vmatprep.subr.bf16.mxu0 0
        %1184 = vmatpush1.bf16.msra.mxu0 %v1167
        %1185 = vmatprep.subr.bf16.mxu0 0
        %1186 = vmatpush2.bf16.msra.mxu0 0
        %1187 = vmatprep.subr.bf16.mxu0 0
        %1188 = vmatpush2.bf16.msra.mxu0 0
        %1189 = vmatprep.subr.bf16.mxu0 0
        %1190 = vmatpush2.bf16.msra.mxu0 0
        %1191 = vmatprep.subr.bf16.mxu0 0
        %1192 = vmatpush2.bf16.msra.mxu0 0
        %1193 = vmatprep.subr.bf16.mxu0 0
        %1194 = vmatpush2.bf16.msra.mxu0 0
        %1195 = vmatprep.subr.bf16.mxu0 0
        %1196 = vmatpush2.bf16.msra.mxu0 0
        %1197 = vmatprep.subr.bf16.mxu0 0
        %1198 = vmatpush2.bf16.msra.mxu0 0
        %1199 = vmatprep.subr.bf16.mxu0 0
        %1200 = vmatpush2.bf16.msra.mxu0 0
        %1201 = vmatprep.mubr.bf16.mxu0 0
        %1202 = vmatmul.mubr.bf16.gmra.mxu0 %v1164
        %v1203 = vpop.f32.mrf.mxu0
        %v1204 = vadd.f32 0.0, %v1203
        %v1205 = vpop.f32.mrf.mxu0
        %v1206 = vpop.f32.mrf.mxu0
        %v1207 = vpop.f32.mrf.mxu0
        %1208 = vdwg.mxu0
        %1209 = vrot.lane.b32.xlu0 %v850, 64
        %v1210 = vpop.permute.xlu0 %1209
        %v1212 = vsel %vm1063, %v1110, 0
        %v1215 = vsel %vm1117, %v1210, 0
        %1217 = vmatprep.subr.bf16.mxu0 0
        %1218 = vmatpush1.bf16.msra.mxu0 0
        %1219 = vmatprep.subr.bf16.mxu0 0
        %1220 = vmatpush1.bf16.msra.mxu0 0
        %1221 = vmatprep.subr.bf16.mxu0 0
        %1222 = vmatpush1.bf16.msra.mxu0 0
        %1223 = vmatprep.subr.bf16.mxu0 0
        %1224 = vmatpush1.bf16.msra.mxu0 0
        %1225 = vmatprep.subr.bf16.mxu0 0
        %1226 = vmatpush1.bf16.msra.mxu0 0
        %1227 = vmatprep.subr.bf16.mxu0 0
        %1228 = vmatpush1.bf16.msra.mxu0 0
        %1229 = vmatprep.subr.bf16.mxu0 0
        %1230 = vmatpush1.bf16.msra.mxu0 0
        %1231 = vmatprep.subr.bf16.mxu0 0
        %1232 = vmatpush1.bf16.msra.mxu0 %v1215
        %1233 = vmatprep.subr.bf16.mxu0 0
        %1234 = vmatpush2.bf16.msra.mxu0 0
        %1235 = vmatprep.subr.bf16.mxu0 0
        %1236 = vmatpush2.bf16.msra.mxu0 0
        %1237 = vmatprep.subr.bf16.mxu0 0
        %1238 = vmatpush2.bf16.msra.mxu0 0
        %1239 = vmatprep.subr.bf16.mxu0 0
        %1240 = vmatpush2.bf16.msra.mxu0 0
        %1241 = vmatprep.subr.bf16.mxu0 0
        %1242 = vmatpush2.bf16.msra.mxu0 0
        %1243 = vmatprep.subr.bf16.mxu0 0
        %1244 = vmatpush2.bf16.msra.mxu0 0
        %1245 = vmatprep.subr.bf16.mxu0 0
        %1246 = vmatpush2.bf16.msra.mxu0 0
        %1247 = vmatprep.subr.bf16.mxu0 0
        %1248 = vmatpush2.bf16.msra.mxu0 0
        %1249 = vmatprep.mubr.bf16.mxu0 0
        %1250 = vmatmul.mubr.bf16.gmra.mxu0 %v1212
        %v1251 = vpop.f32.mrf.mxu0
        %v1252 = vadd.f32 0.0, %v1251
        %v1253 = vpop.f32.mrf.mxu0
        %v1254 = vpop.f32.mrf.mxu0
        %v1255 = vpop.f32.mrf.mxu0
        %1256 = vdwg.mxu0
        %1257 = vrot.lane.b32.xlu0 %v851, 64
        %v1258 = vpop.permute.xlu0 %1257
        %v1260 = vsel %vm1063, %v1111, 0
        %v1263 = vsel %vm1117, %v1258, 0
        %1265 = vmatprep.subr.bf16.mxu0 0
        %1266 = vmatpush1.bf16.msra.mxu0 0
        %1267 = vmatprep.subr.bf16.mxu0 0
        %1268 = vmatpush1.bf16.msra.mxu0 0
        %1269 = vmatprep.subr.bf16.mxu0 0
        %1270 = vmatpush1.bf16.msra.mxu0 0
        %1271 = vmatprep.subr.bf16.mxu0 0
        %1272 = vmatpush1.bf16.msra.mxu0 0
        %1273 = vmatprep.subr.bf16.mxu0 0
        %1274 = vmatpush1.bf16.msra.mxu0 0
        %1275 = vmatprep.subr.bf16.mxu0 0
        %1276 = vmatpush1.bf16.msra.mxu0 0
        %1277 = vmatprep.subr.bf16.mxu0 0
        %1278 = vmatpush1.bf16.msra.mxu0 0
        %1279 = vmatprep.subr.bf16.mxu0 0
        %1280 = vmatpush1.bf16.msra.mxu0 %v1263
        %1281 = vmatprep.subr.bf16.mxu0 0
        %1282 = vmatpush2.bf16.msra.mxu0 0
        %1283 = vmatprep.subr.bf16.mxu0 0
        %1284 = vmatpush2.bf16.msra.mxu0 0
        %1285 = vmatprep.subr.bf16.mxu0 0
        %1286 = vmatpush2.bf16.msra.mxu0 0
        %1287 = vmatprep.subr.bf16.mxu0 0
        %1288 = vmatpush2.bf16.msra.mxu0 0
        %1289 = vmatprep.subr.bf16.mxu0 0
        %1290 = vmatpush2.bf16.msra.mxu0 0
        %1291 = vmatprep.subr.bf16.mxu0 0
        %1292 = vmatpush2.bf16.msra.mxu0 0
        %1293 = vmatprep.subr.bf16.mxu0 0
        %1294 = vmatpush2.bf16.msra.mxu0 0
        %1295 = vmatprep.subr.bf16.mxu0 0
        %1296 = vmatpush2.bf16.msra.mxu0 0
        %1297 = vmatprep.mubr.bf16.mxu0 0
        %1298 = vmatmul.mubr.bf16.gmra.mxu0 %v1260
        %v1299 = vpop.f32.mrf.mxu0
        %v1300 = vadd.f32 0.0, %v1299
        %v1301 = vpop.f32.mrf.mxu0
        %v1302 = vpop.f32.mrf.mxu0
        %v1303 = vpop.f32.mrf.mxu0
        %1304 = vdwg.mxu0
        %v1305 = vpack.c.bf16 %v1156, %v1156
        %v1306 = vpack.c.bf16 %v1204, %v1204
        %v1307 = vpack.c.bf16 %v1252, %v1252
        %v1308 = vpack.c.bf16 %v1300, %v1300
        %v1309 = vld [vmem:[#allocation10] sm:$0xf]
        %v1310 = vld [vmem:[#allocation10 + $0x4] sm:$0xf]
        %v1311 = vld [vmem:[#allocation10 + $0x8] sm:$0xf]
        %v1312 = vld [vmem:[#allocation10 + $0xc] sm:$0xf]
        %v1313 = vld [vmem:[#allocation10 + $0x10] sm:$0xf]
        %v1314 = vld [vmem:[#allocation10 + $0x14] sm:$0xf]
        %v1315 = vld [vmem:[#allocation10 + $0x18] sm:$0xf]
        %v1316 = vld [vmem:[#allocation10 + $0x1c] sm:$0xf]
        %v1317 = vld [vmem:[#allocation10 + $0x20] sm:$0xf]
        %v1318 = vld [vmem:[#allocation10 + $0x24] sm:$0xf]
        %v1319 = vld [vmem:[#allocation10 + $0x28] sm:$0xf]
        %v1320 = vld [vmem:[#allocation10 + $0x2c] sm:$0xf]
        %v1321 = vld [vmem:[#allocation10 + $0x30] sm:$0xf]
        %v1322 = vld [vmem:[#allocation10 + $0x34] sm:$0xf]
        %v1323 = vld [vmem:[#allocation10 + $0x38] sm:$0xf]
        %v1324 = vld [vmem:[#allocation10 + $0x3c] sm:$0xf]
        %v1329 = vunpack.c.l.b16 %v1309
        %v1330 = vunpack.c.l.b16 %v1310
        %v1331 = vunpack.c.l.b16 %v1311
        %v1332 = vunpack.c.l.b16 %v1312
        %v1333 = vpack.c.b16 %v1330, %v1329
        %v1334 = vpack.c.b16 %v1332, %v1331
        %v1338 = vsel %vm834, %v1305, 0
        %1340 = vmatprep.subr.bf16.mxu0 0
        %1341 = vmatpush1.bf16.msra.mxu0 0
        %1342 = vmatprep.subr.bf16.mxu0 0
        %1343 = vmatpush1.bf16.msra.mxu0 0
        %1344 = vmatprep.subr.bf16.mxu0 0
        %1345 = vmatpush1.bf16.msra.mxu0 0
        %1346 = vmatprep.subr.bf16.mxu0 0
        %1347 = vmatpush1.bf16.msra.mxu0 0
        %1348 = vmatprep.subr.bf16.mxu0 0
        %1349 = vmatpush1.bf16.msra.mxu0 0
        %1350 = vmatprep.subr.bf16.mxu0 0
        %1351 = vmatpush1.bf16.msra.mxu0 0
        %1352 = vmatprep.subr.bf16.mxu0 0
        %1353 = vmatpush1.bf16.msra.mxu0 %v1334
        %1354 = vmatprep.subr.bf16.mxu0 0
        %1355 = vmatpush1.bf16.msra.mxu0 %v1333
        %1356 = vmatprep.subr.bf16.mxu0 0
        %1357 = vmatpush2.bf16.msra.mxu0 0
        %1358 = vmatprep.subr.bf16.mxu0 0
        %1359 = vmatpush2.bf16.msra.mxu0 0
        %1360 = vmatprep.subr.bf16.mxu0 0
        %1361 = vmatpush2.bf16.msra.mxu0 0
        %1362 = vmatprep.subr.bf16.mxu0 0
        %1363 = vmatpush2.bf16.msra.mxu0 0
        %1364 = vmatprep.subr.bf16.mxu0 0
        %1365 = vmatpush2.bf16.msra.mxu0 0
        %1366 = vmatprep.subr.bf16.mxu0 0
        %1367 = vmatpush2.bf16.msra.mxu0 0
        %1368 = vmatprep.subr.bf16.mxu0 0
        %1369 = vmatpush2.bf16.msra.mxu0 0
        %1370 = vmatprep.subr.bf16.mxu0 0
        %1371 = vmatpush2.bf16.msra.mxu0 0
        %1372 = vmatprep.mubr.bf16.mxu0 0
        %1373 = vmatmul.mubr.bf16.gmra.mxu0 %v1338
        %v1374 = vpop.f32.mrf.mxu0
        %v1375 = vadd.f32 0.0, %v1374
        %v1376 = vpop.f32.mrf.mxu0
        %v1377 = vpop.f32.mrf.mxu0
        %v1378 = vpop.f32.mrf.mxu0
        %1379 = vdwg.mxu0
        %v1384 = vunpack.c.l.b16 %v1313
        %v1385 = vunpack.c.l.b16 %v1314
        %v1386 = vunpack.c.l.b16 %v1315
        %v1387 = vunpack.c.l.b16 %v1316
        %v1388 = vpack.c.b16 %v1385, %v1384
        %v1389 = vpack.c.b16 %v1387, %v1386
        %v1393 = vsel %vm834, %v1306, 0
        %1395 = vmatprep.subr.bf16.mxu0 0
        %1396 = vmatpush1.bf16.msra.mxu0 0
        %1397 = vmatprep.subr.bf16.mxu0 0
        %1398 = vmatpush1.bf16.msra.mxu0 0
        %1399 = vmatprep.subr.bf16.mxu0 0
        %1400 = vmatpush1.bf16.msra.mxu0 0
        %1401 = vmatprep.subr.bf16.mxu0 0
        %1402 = vmatpush1.bf16.msra.mxu0 0
        %1403 = vmatprep.subr.bf16.mxu0 0
        %1404 = vmatpush1.bf16.msra.mxu0 0
        %1405 = vmatprep.subr.bf16.mxu0 0
        %1406 = vmatpush1.bf16.msra.mxu0 0
        %1407 = vmatprep.subr.bf16.mxu0 0
        %1408 = vmatpush1.bf16.msra.mxu0 %v1389
        %1409 = vmatprep.subr.bf16.mxu0 0
        %1410 = vmatpush1.bf16.msra.mxu0 %v1388
        %1411 = vmatprep.subr.bf16.mxu0 0
        %1412 = vmatpush2.bf16.msra.mxu0 0
        %1413 = vmatprep.subr.bf16.mxu0 0
        %1414 = vmatpush2.bf16.msra.mxu0 0
        %1415 = vmatprep.subr.bf16.mxu0 0
        %1416 = vmatpush2.bf16.msra.mxu0 0
        %1417 = vmatprep.subr.bf16.mxu0 0
        %1418 = vmatpush2.bf16.msra.mxu0 0
        %1419 = vmatprep.subr.bf16.mxu0 0
        %1420 = vmatpush2.bf16.msra.mxu0 0
        %1421 = vmatprep.subr.bf16.mxu0 0
        %1422 = vmatpush2.bf16.msra.mxu0 0
        %1423 = vmatprep.subr.bf16.mxu0 0
        %1424 = vmatpush2.bf16.msra.mxu0 0
        %1425 = vmatprep.subr.bf16.mxu0 0
        %1426 = vmatpush2.bf16.msra.mxu0 0
        %1427 = vmatprep.mubr.bf16.mxu0 0
        %1428 = vmatmul.mubr.bf16.gmra.mxu0 %v1393
        %v1429 = vpop.f32.mrf.mxu0
        %v1430 = vadd.f32 0.0, %v1429
        %v1431 = vpop.f32.mrf.mxu0
        %v1432 = vpop.f32.mrf.mxu0
        %v1433 = vpop.f32.mrf.mxu0
        %1434 = vdwg.mxu0
        %v1439 = vunpack.c.l.b16 %v1317
        %v1440 = vunpack.c.l.b16 %v1318
        %v1441 = vunpack.c.l.b16 %v1319
        %v1442 = vunpack.c.l.b16 %v1320
        %v1443 = vpack.c.b16 %v1440, %v1439
        %v1444 = vpack.c.b16 %v1442, %v1441
        %v1448 = vsel %vm834, %v1307, 0
        %1450 = vmatprep.subr.bf16.mxu0 0
        %1451 = vmatpush1.bf16.msra.mxu0 0
        %1452 = vmatprep.subr.bf16.mxu0 0
        %1453 = vmatpush1.bf16.msra.mxu0 0
        %1454 = vmatprep.subr.bf16.mxu0 0
        %1455 = vmatpush1.bf16.msra.mxu0 0
        %1456 = vmatprep.subr.bf16.mxu0 0
        %1457 = vmatpush1.bf16.msra.mxu0 0
        %1458 = vmatprep.subr.bf16.mxu0 0
        %1459 = vmatpush1.bf16.msra.mxu0 0
        %1460 = vmatprep.subr.bf16.mxu0 0
        %1461 = vmatpush1.bf16.msra.mxu0 0
        %1462 = vmatprep.subr.bf16.mxu0 0
        %1463 = vmatpush1.bf16.msra.mxu0 %v1444
        %1464 = vmatprep.subr.bf16.mxu0 0
        %1465 = vmatpush1.bf16.msra.mxu0 %v1443
        %1466 = vmatprep.subr.bf16.mxu0 0
        %1467 = vmatpush2.bf16.msra.mxu0 0
        %1468 = vmatprep.subr.bf16.mxu0 0
        %1469 = vmatpush2.bf16.msra.mxu0 0
        %1470 = vmatprep.subr.bf16.mxu0 0
        %1471 = vmatpush2.bf16.msra.mxu0 0
        %1472 = vmatprep.subr.bf16.mxu0 0
        %1473 = vmatpush2.bf16.msra.mxu0 0
        %1474 = vmatprep.subr.bf16.mxu0 0
        %1475 = vmatpush2.bf16.msra.mxu0 0
        %1476 = vmatprep.subr.bf16.mxu0 0
        %1477 = vmatpush2.bf16.msra.mxu0 0
        %1478 = vmatprep.subr.bf16.mxu0 0
        %1479 = vmatpush2.bf16.msra.mxu0 0
        %1480 = vmatprep.subr.bf16.mxu0 0
        %1481 = vmatpush2.bf16.msra.mxu0 0
        %1482 = vmatprep.mubr.bf16.mxu0 0
        %1483 = vmatmul.mubr.bf16.gmra.mxu0 %v1448
        %v1484 = vpop.f32.mrf.mxu0
        %v1485 = vadd.f32 0.0, %v1484
        %v1486 = vpop.f32.mrf.mxu0
        %v1487 = vpop.f32.mrf.mxu0
        %v1488 = vpop.f32.mrf.mxu0
        %1489 = vdwg.mxu0
        %v1494 = vunpack.c.l.b16 %v1321
        %v1495 = vunpack.c.l.b16 %v1322
        %v1496 = vunpack.c.l.b16 %v1323
        %v1497 = vunpack.c.l.b16 %v1324
        %v1498 = vpack.c.b16 %v1495, %v1494
        %v1499 = vpack.c.b16 %v1497, %v1496
        %v1503 = vsel %vm834, %v1308, 0
        %1505 = vmatprep.subr.bf16.mxu0 0
        %1506 = vmatpush1.bf16.msra.mxu0 0
        %1507 = vmatprep.subr.bf16.mxu0 0
        %1508 = vmatpush1.bf16.msra.mxu0 0
        %1509 = vmatprep.subr.bf16.mxu0 0
        %1510 = vmatpush1.bf16.msra.mxu0 0
        %1511 = vmatprep.subr.bf16.mxu0 0
        %1512 = vmatpush1.bf16.msra.mxu0 0
        %1513 = vmatprep.subr.bf16.mxu0 0
        %1514 = vmatpush1.bf16.msra.mxu0 0
        %1515 = vmatprep.subr.bf16.mxu0 0
        %1516 = vmatpush1.bf16.msra.mxu0 0
        %1517 = vmatprep.subr.bf16.mxu0 0
        %1518 = vmatpush1.bf16.msra.mxu0 %v1499
        %1519 = vmatprep.subr.bf16.mxu0 0
        %1520 = vmatpush1.bf16.msra.mxu0 %v1498
        %1521 = vmatprep.subr.bf16.mxu0 0
        %1522 = vmatpush2.bf16.msra.mxu0 0
        %1523 = vmatprep.subr.bf16.mxu0 0
        %1524 = vmatpush2.bf16.msra.mxu0 0
        %1525 = vmatprep.subr.bf16.mxu0 0
        %1526 = vmatpush2.bf16.msra.mxu0 0
        %1527 = vmatprep.subr.bf16.mxu0 0
        %1528 = vmatpush2.bf16.msra.mxu0 0
        %1529 = vmatprep.subr.bf16.mxu0 0
        %1530 = vmatpush2.bf16.msra.mxu0 0
        %1531 = vmatprep.subr.bf16.mxu0 0
        %1532 = vmatpush2.bf16.msra.mxu0 0
        %1533 = vmatprep.subr.bf16.mxu0 0
        %1534 = vmatpush2.bf16.msra.mxu0 0
        %1535 = vmatprep.subr.bf16.mxu0 0
        %1536 = vmatpush2.bf16.msra.mxu0 0
        %1537 = vmatprep.mubr.bf16.mxu0 0
        %1538 = vmatmul.mubr.bf16.gmra.mxu0 %v1503
        %v1539 = vpop.f32.mrf.mxu0
        %v1540 = vadd.f32 0.0, %v1539
        %v1541 = vpop.f32.mrf.mxu0
        %v1542 = vpop.f32.mrf.mxu0
        %v1543 = vpop.f32.mrf.mxu0
        %1544 = vdwg.mxu0
        %v1545 = vadd.f32 %v1375, %v1430
        %v1546 = vadd.f32 %v1545, %v1485
        %v1547 = vadd.f32 %v1546, %v1540
        %v1548 = vld [vmem:[%s6] sm:$0x1]
        %v1550 = vlaneseq
        %v1551 = vshrl.u32 %v1550, 7
        %v1552 = vsub.s32 0, %v1551
        %v1553 = vrot.slane %v1548, %v1552
        %v1555 = vadd.f32 %v1547, %v1553
        %v1556 = vadd.f32 %v540, %v1555
        %v1557 = vld [vmem:[%s7] sm:$0x1]
        %v1558 = vld [vmem:[%s8] sm:$0x1]
        %1559 = vadd.xlane.f32.xlu0 %v1556
        %v1560 = vpop.xlane.xlu0 %1559
        %v1561 = vmul.f32 %v1560, %v545
        %v1562 = vsub.f32 %v1556, %v1561
        %v1563 = vmul.f32 %v1562, %v1562
        %1564 = vadd.xlane.f32.xlu0 %v1563
        %v1565 = vpop.xlane.xlu0 %1564
        %v1566 = vmul.f32 %v1565, %v545
        %v1567 = vadd.f32 %v1566, 1e-05
        %v1568 = vrsqrt.pop %v1567
        %v1569 = vmul.f32 %v1562, %v1568
        %v1571 = vlaneseq
        %v1572 = vshrl.u32 %v1571, 7
        %v1573 = vsub.s32 0, %v1572
        %v1574 = vrot.slane %v1557, %v1573
        %v1576 = vmul.f32 %v1569, %v1574
        %v1578 = vlaneseq
        %v1579 = vshrl.u32 %v1578, 7
        %v1580 = vsub.s32 0, %v1579
        %v1581 = vrot.slane %v1558, %v1580
        %v1583 = vadd.f32 %v1576, %v1581
        %v1584 = vpack.c.bf16 %v1583, %v1583
        %v1585 = vld [vmem:[#allocation11] sm:$0xff]
        %v1586 = vld [vmem:[#allocation11 + $0x8] sm:$0xff]
        %v1587 = vld [vmem:[#allocation11 + $0x10] sm:$0xff]
        %v1588 = vld [vmem:[#allocation11 + $0x18] sm:$0xff]
        %v1589 = vld [vmem:[#allocation11 + $0x20] sm:$0xff]
        %v1590 = vld [vmem:[#allocation11 + $0x28] sm:$0xff]
        %v1591 = vld [vmem:[#allocation11 + $0x30] sm:$0xff]
        %v1592 = vld [vmem:[#allocation11 + $0x38] sm:$0xff]
        %v1593 = vld [vmem:[#allocation11 + $0x40] sm:$0xff]
        %v1594 = vld [vmem:[#allocation11 + $0x48] sm:$0xff]
        %v1595 = vld [vmem:[#allocation11 + $0x50] sm:$0xff]
        %v1596 = vld [vmem:[#allocation11 + $0x58] sm:$0xff]
        %v1597 = vld [vmem:[#allocation11 + $0x60] sm:$0xff]
        %v1598 = vld [vmem:[#allocation11 + $0x68] sm:$0xff]
        %v1599 = vld [vmem:[#allocation11 + $0x70] sm:$0xff]
        %v1600 = vld [vmem:[#allocation11 + $0x78] sm:$0xff]
        %v1601 = vld [vmem:[#allocation11 + $0x80] sm:$0xff]
        %v1602 = vld [vmem:[#allocation11 + $0x88] sm:$0xff]
        %v1603 = vld [vmem:[#allocation11 + $0x90] sm:$0xff]
        %v1604 = vld [vmem:[#allocation11 + $0x98] sm:$0xff]
        %v1605 = vld [vmem:[#allocation11 + $0xa0] sm:$0xff]
        %v1606 = vld [vmem:[#allocation11 + $0xa8] sm:$0xff]
        %v1607 = vld [vmem:[#allocation11 + $0xb0] sm:$0xff]
        %v1608 = vld [vmem:[#allocation11 + $0xb8] sm:$0xff]
        %v1609 = vld [vmem:[#allocation11 + $0xc0] sm:$0xff]
        %v1610 = vld [vmem:[#allocation11 + $0xc8] sm:$0xff]
        %v1611 = vld [vmem:[#allocation11 + $0xd0] sm:$0xff]
        %v1612 = vld [vmem:[#allocation11 + $0xd8] sm:$0xff]
        %v1613 = vld [vmem:[#allocation11 + $0xe0] sm:$0xff]
        %v1614 = vld [vmem:[#allocation11 + $0xe8] sm:$0xff]
        %v1615 = vld [vmem:[#allocation11 + $0xf0] sm:$0xff]
        %v1616 = vld [vmem:[#allocation11 + $0xf8] sm:$0xff]
        %v1617 = vld [vmem:[%s10] sm:$0xf]
        %v1619 = vlaneseq
        %v1620 = vshrl.u32 %v1619, 7
        %v1621 = vsub.s32 0, %v1620
        %v1622 = vrot.slane %v1617, %v1621
        %v1623 = vlaneseq
        %v1624 = vshrl.u32 %v1623, 7
        %v1625 = vsub.s32 1, %v1624
        %v1626 = vrot.slane %v1617, %v1625
        %v1627 = vlaneseq
        %v1628 = vshrl.u32 %v1627, 7
        %v1629 = vsub.s32 2, %v1628
        %v1630 = vrot.slane %v1617, %v1629
        %v1631 = vlaneseq
        %v1632 = vshrl.u32 %v1631, 7
        %v1633 = vsub.s32 3, %v1632
        %v1634 = vrot.slane %v1617, %v1633
        %v1671 = vunpack.c.l.b16 %v1585
        %v1672 = vunpack.c.h.b16 %v1585
        %v1673 = vunpack.c.l.b16 %v1586
        %v1674 = vunpack.c.h.b16 %v1586
        %v1675 = vunpack.c.l.b16 %v1587
        %v1676 = vunpack.c.h.b16 %v1587
        %v1677 = vunpack.c.l.b16 %v1588
        %v1678 = vunpack.c.h.b16 %v1588
        %v1679 = vunpack.c.l.b16 %v1589
        %v1680 = vunpack.c.h.b16 %v1589
        %v1681 = vunpack.c.l.b16 %v1590
        %v1682 = vunpack.c.h.b16 %v1590
        %v1683 = vunpack.c.l.b16 %v1591
        %v1684 = vunpack.c.h.b16 %v1591
        %v1685 = vunpack.c.l.b16 %v1592
        %v1686 = vunpack.c.h.b16 %v1592
        %v1687 = vunpack.c.l.b16 %v1593
        %v1688 = vunpack.c.h.b16 %v1593
        %v1689 = vunpack.c.l.b16 %v1594
        %v1690 = vunpack.c.h.b16 %v1594
        %v1691 = vunpack.c.l.b16 %v1595
        %v1692 = vunpack.c.h.b16 %v1595
        %v1693 = vunpack.c.l.b16 %v1596
        %v1694 = vunpack.c.h.b16 %v1596
        %v1695 = vunpack.c.l.b16 %v1597
        %v1696 = vunpack.c.h.b16 %v1597
        %v1697 = vunpack.c.l.b16 %v1598
        %v1698 = vunpack.c.h.b16 %v1598
        %v1699 = vunpack.c.l.b16 %v1599
        %v1700 = vunpack.c.h.b16 %v1599
        %v1701 = vunpack.c.l.b16 %v1600
        %v1702 = vunpack.c.h.b16 %v1600
        %v1703 = vunpack.c.l.b16 %v1601
        %v1704 = vunpack.c.h.b16 %v1601
        %v1705 = vunpack.c.l.b16 %v1602
        %v1706 = vunpack.c.h.b16 %v1602
        %v1707 = vunpack.c.l.b16 %v1603
        %v1708 = vunpack.c.h.b16 %v1603
        %v1709 = vunpack.c.l.b16 %v1604
        %v1710 = vunpack.c.h.b16 %v1604
        %v1711 = vunpack.c.l.b16 %v1605
        %v1712 = vunpack.c.h.b16 %v1605
        %v1713 = vunpack.c.l.b16 %v1606
        %v1714 = vunpack.c.h.b16 %v1606
        %v1715 = vunpack.c.l.b16 %v1607
        %v1716 = vunpack.c.h.b16 %v1607
        %v1717 = vunpack.c.l.b16 %v1608
        %v1718 = vunpack.c.h.b16 %v1608
        %v1719 = vunpack.c.l.b16 %v1609
        %v1720 = vunpack.c.h.b16 %v1609
        %v1721 = vunpack.c.l.b16 %v1610
        %v1722 = vunpack.c.h.b16 %v1610
        %v1723 = vunpack.c.l.b16 %v1611
        %v1724 = vunpack.c.h.b16 %v1611
        %v1725 = vunpack.c.l.b16 %v1612
        %v1726 = vunpack.c.h.b16 %v1612
        %v1727 = vunpack.c.l.b16 %v1613
        %v1728 = vunpack.c.h.b16 %v1613
        %v1729 = vunpack.c.l.b16 %v1614
        %v1730 = vunpack.c.h.b16 %v1614
        %v1731 = vunpack.c.l.b16 %v1615
        %v1732 = vunpack.c.h.b16 %v1615
        %v1733 = vunpack.c.l.b16 %v1616
        %v1734 = vunpack.c.h.b16 %v1616
        %v1735 = vpack.c.b16 %v1675, %v1671
        %v1736 = vpack.c.b16 %v1676, %v1672
        %v1737 = vpack.c.b16 %v1677, %v1673
        %v1738 = vpack.c.b16 %v1678, %v1674
        %v1739 = vpack.c.b16 %v1683, %v1679
        %v1740 = vpack.c.b16 %v1684, %v1680
        %v1741 = vpack.c.b16 %v1685, %v1681
        %v1742 = vpack.c.b16 %v1686, %v1682
        %v1743 = vpack.c.b16 %v1691, %v1687
        %v1744 = vpack.c.b16 %v1692, %v1688
        %v1745 = vpack.c.b16 %v1693, %v1689
        %v1746 = vpack.c.b16 %v1694, %v1690
        %v1747 = vpack.c.b16 %v1699, %v1695
        %v1748 = vpack.c.b16 %v1700, %v1696
        %v1749 = vpack.c.b16 %v1701, %v1697
        %v1750 = vpack.c.b16 %v1702, %v1698
        %v1751 = vpack.c.b16 %v1707, %v1703
        %v1752 = vpack.c.b16 %v1708, %v1704
        %v1753 = vpack.c.b16 %v1709, %v1705
        %v1754 = vpack.c.b16 %v1710, %v1706
        %v1755 = vpack.c.b16 %v1715, %v1711
        %v1756 = vpack.c.b16 %v1716, %v1712
        %v1757 = vpack.c.b16 %v1717, %v1713
        %v1758 = vpack.c.b16 %v1718, %v1714
        %v1759 = vpack.c.b16 %v1723, %v1719
        %v1760 = vpack.c.b16 %v1724, %v1720
        %v1761 = vpack.c.b16 %v1725, %v1721
        %v1762 = vpack.c.b16 %v1726, %v1722
        %v1763 = vpack.c.b16 %v1731, %v1727
        %v1764 = vpack.c.b16 %v1732, %v1728
        %v1765 = vpack.c.b16 %v1733, %v1729
        %v1766 = vpack.c.b16 %v1734, %v1730
        %1799 = vmatprep.subr.bf16.mxu0 %v1764
        %1800 = vmatpush1.bf16.msra.mxu0 %v1763
        %1801 = vmatprep.subr.bf16.mxu0 %v1760
        %1802 = vmatpush1.bf16.msra.mxu0 %v1759
        %1803 = vmatprep.subr.bf16.mxu0 %v1756
        %1804 = vmatpush1.bf16.msra.mxu0 %v1755
        %1805 = vmatprep.subr.bf16.mxu0 %v1752
        %1806 = vmatpush1.bf16.msra.mxu0 %v1751
        %1807 = vmatprep.subr.bf16.mxu0 %v1748
        %1808 = vmatpush1.bf16.msra.mxu0 %v1747
        %1809 = vmatprep.subr.bf16.mxu0 %v1744
        %1810 = vmatpush1.bf16.msra.mxu0 %v1743
        %1811 = vmatprep.subr.bf16.mxu0 %v1740
        %1812 = vmatpush1.bf16.msra.mxu0 %v1739
        %1813 = vmatprep.subr.bf16.mxu0 %v1736
        %1814 = vmatpush1.bf16.msra.mxu0 %v1735
        %1815 = vmatprep.subr.bf16.mxu0 0
        %1816 = vmatpush2.bf16.msra.mxu0 0
        %1817 = vmatprep.subr.bf16.mxu0 0
        %1818 = vmatpush2.bf16.msra.mxu0 0
        %1819 = vmatprep.subr.bf16.mxu0 0
        %1820 = vmatpush2.bf16.msra.mxu0 0
        %1821 = vmatprep.subr.bf16.mxu0 0
        %1822 = vmatpush2.bf16.msra.mxu0 0
        %1823 = vmatprep.subr.bf16.mxu0 0
        %1824 = vmatpush2.bf16.msra.mxu0 0
        %1825 = vmatprep.subr.bf16.mxu0 0
        %1826 = vmatpush2.bf16.msra.mxu0 0
        %1827 = vmatprep.subr.bf16.mxu0 0
        %1828 = vmatpush2.bf16.msra.mxu0 0
        %1829 = vmatprep.subr.bf16.mxu0 0
        %1830 = vmatpush2.bf16.msra.mxu0 0
        %1831 = vmatprep.mubr.bf16.mxu0 0
        %1832 = vmatmul.mubr.bf16.gmra.mxu0 %v1584
        %v1833 = vpop.f32.mrf.mxu0
        %v1834 = vadd.f32 %v1622, %v1833
        %v1835 = vpop.f32.mrf.mxu0
        %v1836 = vadd.f32 %v1626, %v1835
        %v1837 = vpop.f32.mrf.mxu0
        %v1838 = vpop.f32.mrf.mxu0
        %1839 = vdwg.mxu0
        %1840 = vmatprep.subr.bf16.mxu0 %v1766
        %1841 = vmatpush1.bf16.msra.mxu0 %v1765
        %1842 = vmatprep.subr.bf16.mxu0 %v1762
        %1843 = vmatpush1.bf16.msra.mxu0 %v1761
        %1844 = vmatprep.subr.bf16.mxu0 %v1758
        %1845 = vmatpush1.bf16.msra.mxu0 %v1757
        %1846 = vmatprep.subr.bf16.mxu0 %v1754
        %1847 = vmatpush1.bf16.msra.mxu0 %v1753
        %1848 = vmatprep.subr.bf16.mxu0 %v1750
        %1849 = vmatpush1.bf16.msra.mxu0 %v1749
        %1850 = vmatprep.subr.bf16.mxu0 %v1746
        %1851 = vmatpush1.bf16.msra.mxu0 %v1745
        %1852 = vmatprep.subr.bf16.mxu0 %v1742
        %1853 = vmatpush1.bf16.msra.mxu0 %v1741
        %1854 = vmatprep.subr.bf16.mxu0 %v1738
        %1855 = vmatpush1.bf16.msra.mxu0 %v1737
        %1856 = vmatprep.subr.bf16.mxu0 0
        %1857 = vmatpush2.bf16.msra.mxu0 0
        %1858 = vmatprep.subr.bf16.mxu0 0
        %1859 = vmatpush2.bf16.msra.mxu0 0
        %1860 = vmatprep.subr.bf16.mxu0 0
        %1861 = vmatpush2.bf16.msra.mxu0 0
        %1862 = vmatprep.subr.bf16.mxu0 0
        %1863 = vmatpush2.bf16.msra.mxu0 0
        %1864 = vmatprep.subr.bf16.mxu0 0
        %1865 = vmatpush2.bf16.msra.mxu0 0
        %1866 = vmatprep.subr.bf16.mxu0 0
        %1867 = vmatpush2.bf16.msra.mxu0 0
        %1868 = vmatprep.subr.bf16.mxu0 0
        %1869 = vmatpush2.bf16.msra.mxu0 0
        %1870 = vmatprep.subr.bf16.mxu0 0
        %1871 = vmatpush2.bf16.msra.mxu0 0
        %1872 = vmatprep.mubr.bf16.mxu0 0
        %1873 = vmatmul.mubr.bf16.gmra.mxu0 %v1584
        %v1874 = vpop.f32.mrf.mxu0
        %v1875 = vadd.f32 %v1630, %v1874
        %v1876 = vpop.f32.mrf.mxu0
        %v1877 = vadd.f32 %v1634, %v1876
        %v1878 = vpop.f32.mrf.mxu0
        %v1879 = vpop.f32.mrf.mxu0
        %1880 = vdwg.mxu0
        %v1881 = vmul.f32 %v1834, 0.5
        %v1882 = vmul.f32 %v1836, 0.5
        %v1883 = vmul.f32 %v1875, 0.5
        %v1884 = vmul.f32 %v1877, 0.5
        %v1885 = vmul.f32 %v1834, 0.70710677
        %v1886 = vmul.f32 %v1836, 0.70710677
        %v1887 = vmul.f32 %v1875, 0.70710677
        %v1888 = vmul.f32 %v1877, 0.70710677
        %v1889 = verf.f32.pop %v1885
        %v1890 = verf.f32.pop %v1886
        %v1891 = verf.f32.pop %v1887
        %v1892 = verf.f32.pop %v1888
        %v1893 = vadd.f32 %v1889, 1.0
        %v1894 = vadd.f32 %v1890, 1.0
        %v1895 = vadd.f32 %v1891, 1.0
        %v1896 = vadd.f32 %v1892, 1.0
        %v1897 = vmul.f32 %v1881, %v1893
        %v1898 = vmul.f32 %v1882, %v1894
        %v1899 = vmul.f32 %v1883, %v1895
        %v1900 = vmul.f32 %v1884, %v1896
        %v1901 = vpack.c.bf16 %v1897, %v1897
        %v1902 = vpack.c.bf16 %v1898, %v1898
        %v1903 = vpack.c.bf16 %v1899, %v1899
        %v1904 = vpack.c.bf16 %v1900, %v1900
        %v1905 = vld [vmem:[#allocation13] sm:$0xf]
        %v1906 = vld [vmem:[#allocation13 + $0x4] sm:$0xf]
        %v1907 = vld [vmem:[#allocation13 + $0x8] sm:$0xf]
        %v1908 = vld [vmem:[#allocation13 + $0xc] sm:$0xf]
        %v1909 = vld [vmem:[#allocation13 + $0x10] sm:$0xf]
        %v1910 = vld [vmem:[#allocation13 + $0x14] sm:$0xf]
        %v1911 = vld [vmem:[#allocation13 + $0x18] sm:$0xf]
        %v1912 = vld [vmem:[#allocation13 + $0x1c] sm:$0xf]
        %v1913 = vld [vmem:[#allocation13 + $0x20] sm:$0xf]
        %v1914 = vld [vmem:[#allocation13 + $0x24] sm:$0xf]
        %v1915 = vld [vmem:[#allocation13 + $0x28] sm:$0xf]
        %v1916 = vld [vmem:[#allocation13 + $0x2c] sm:$0xf]
        %v1917 = vld [vmem:[#allocation13 + $0x30] sm:$0xf]
        %v1918 = vld [vmem:[#allocation13 + $0x34] sm:$0xf]
        %v1919 = vld [vmem:[#allocation13 + $0x38] sm:$0xf]
        %v1920 = vld [vmem:[#allocation13 + $0x3c] sm:$0xf]
        %v1921 = vld [vmem:[#allocation13 + $0x40] sm:$0xf]
        %v1922 = vld [vmem:[#allocation13 + $0x44] sm:$0xf]
        %v1923 = vld [vmem:[#allocation13 + $0x48] sm:$0xf]
        %v1924 = vld [vmem:[#allocation13 + $0x4c] sm:$0xf]
        %v1925 = vld [vmem:[#allocation13 + $0x50] sm:$0xf]
        %v1926 = vld [vmem:[#allocation13 + $0x54] sm:$0xf]
        %v1927 = vld [vmem:[#allocation13 + $0x58] sm:$0xf]
        %v1928 = vld [vmem:[#allocation13 + $0x5c] sm:$0xf]
        %v1929 = vld [vmem:[#allocation13 + $0x60] sm:$0xf]
        %v1930 = vld [vmem:[#allocation13 + $0x64] sm:$0xf]
        %v1931 = vld [vmem:[#allocation13 + $0x68] sm:$0xf]
        %v1932 = vld [vmem:[#allocation13 + $0x6c] sm:$0xf]
        %v1933 = vld [vmem:[#allocation13 + $0x70] sm:$0xf]
        %v1934 = vld [vmem:[#allocation13 + $0x74] sm:$0xf]
        %v1935 = vld [vmem:[#allocation13 + $0x78] sm:$0xf]
        %v1936 = vld [vmem:[#allocation13 + $0x7c] sm:$0xf]
        %v1937 = vld [vmem:[#allocation13 + $0x80] sm:$0xf]
        %v1938 = vld [vmem:[#allocation13 + $0x84] sm:$0xf]
        %v1939 = vld [vmem:[#allocation13 + $0x88] sm:$0xf]
        %v1940 = vld [vmem:[#allocation13 + $0x8c] sm:$0xf]
        %v1941 = vld [vmem:[#allocation13 + $0x90] sm:$0xf]
        %v1942 = vld [vmem:[#allocation13 + $0x94] sm:$0xf]
        %v1943 = vld [vmem:[#allocation13 + $0x98] sm:$0xf]
        %v1944 = vld [vmem:[#allocation13 + $0x9c] sm:$0xf]
        %v1945 = vld [vmem:[#allocation13 + $0xa0] sm:$0xf]
        %v1946 = vld [vmem:[#allocation13 + $0xa4] sm:$0xf]
        %v1947 = vld [vmem:[#allocation13 + $0xa8] sm:$0xf]
        %v1948 = vld [vmem:[#allocation13 + $0xac] sm:$0xf]
        %v1949 = vld [vmem:[#allocation13 + $0xb0] sm:$0xf]
        %v1950 = vld [vmem:[#allocation13 + $0xb4] sm:$0xf]
        %v1951 = vld [vmem:[#allocation13 + $0xb8] sm:$0xf]
        %v1952 = vld [vmem:[#allocation13 + $0xbc] sm:$0xf]
        %v1953 = vld [vmem:[#allocation13 + $0xc0] sm:$0xf]
        %v1954 = vld [vmem:[#allocation13 + $0xc4] sm:$0xf]
        %v1955 = vld [vmem:[#allocation13 + $0xc8] sm:$0xf]
        %v1956 = vld [vmem:[#allocation13 + $0xcc] sm:$0xf]
        %v1957 = vld [vmem:[#allocation13 + $0xd0] sm:$0xf]
        %v1958 = vld [vmem:[#allocation13 + $0xd4] sm:$0xf]
        %v1959 = vld [vmem:[#allocation13 + $0xd8] sm:$0xf]
        %v1960 = vld [vmem:[#allocation13 + $0xdc] sm:$0xf]
        %v1961 = vld [vmem:[#allocation13 + $0xe0] sm:$0xf]
        %v1962 = vld [vmem:[#allocation13 + $0xe4] sm:$0xf]
        %v1963 = vld [vmem:[#allocation13 + $0xe8] sm:$0xf]
        %v1964 = vld [vmem:[#allocation13 + $0xec] sm:$0xf]
        %v1965 = vld [vmem:[#allocation13 + $0xf0] sm:$0xf]
        %v1966 = vld [vmem:[#allocation13 + $0xf4] sm:$0xf]
        %v1967 = vld [vmem:[#allocation13 + $0xf8] sm:$0xf]
        %v1968 = vld [vmem:[#allocation13 + $0xfc] sm:$0xf]
        %v1969 = vld [vmem:[%s12] sm:$0x1]
        %v1971 = vlaneseq
        %v1972 = vshrl.u32 %v1971, 7
        %v1973 = vsub.s32 0, %v1972
        %v1974 = vrot.slane %v1969, %v1973
        %v2040 = vunpack.c.l.b16 %v1905
        %v2041 = vunpack.c.l.b16 %v1906
        %v2042 = vunpack.c.l.b16 %v1907
        %v2043 = vunpack.c.l.b16 %v1908
        %v2044 = vunpack.c.l.b16 %v1909
        %v2045 = vunpack.c.l.b16 %v1910
        %v2046 = vunpack.c.l.b16 %v1911
        %v2047 = vunpack.c.l.b16 %v1912
        %v2048 = vunpack.c.l.b16 %v1913
        %v2049 = vunpack.c.l.b16 %v1914
        %v2050 = vunpack.c.l.b16 %v1915
        %v2051 = vunpack.c.l.b16 %v1916
        %v2052 = vunpack.c.l.b16 %v1917
        %v2053 = vunpack.c.l.b16 %v1918
        %v2054 = vunpack.c.l.b16 %v1919
        %v2055 = vunpack.c.l.b16 %v1920
        %v2056 = vunpack.c.l.b16 %v1921
        %v2057 = vunpack.c.l.b16 %v1922
        %v2058 = vunpack.c.l.b16 %v1923
        %v2059 = vunpack.c.l.b16 %v1924
        %v2060 = vunpack.c.l.b16 %v1925
        %v2061 = vunpack.c.l.b16 %v1926
        %v2062 = vunpack.c.l.b16 %v1927
        %v2063 = vunpack.c.l.b16 %v1928
        %v2064 = vunpack.c.l.b16 %v1929
        %v2065 = vunpack.c.l.b16 %v1930
        %v2066 = vunpack.c.l.b16 %v1931
        %v2067 = vunpack.c.l.b16 %v1932
        %v2068 = vunpack.c.l.b16 %v1933
        %v2069 = vunpack.c.l.b16 %v1934
        %v2070 = vunpack.c.l.b16 %v1935
        %v2071 = vunpack.c.l.b16 %v1936
        %v2072 = vunpack.c.l.b16 %v1937
        %v2073 = vunpack.c.l.b16 %v1938
        %v2074 = vunpack.c.l.b16 %v1939
        %v2075 = vunpack.c.l.b16 %v1940
        %v2076 = vunpack.c.l.b16 %v1941
        %v2077 = vunpack.c.l.b16 %v1942
        %v2078 = vunpack.c.l.b16 %v1943
        %v2079 = vunpack.c.l.b16 %v1944
        %v2080 = vunpack.c.l.b16 %v1945
        %v2081 = vunpack.c.l.b16 %v1946
        %v2082 = vunpack.c.l.b16 %v1947
        %v2083 = vunpack.c.l.b16 %v1948
        %v2084 = vunpack.c.l.b16 %v1949
        %v2085 = vunpack.c.l.b16 %v1950
        %v2086 = vunpack.c.l.b16 %v1951
        %v2087 = vunpack.c.l.b16 %v1952
        %v2088 = vunpack.c.l.b16 %v1953
        %v2089 = vunpack.c.l.b16 %v1954
        %v2090 = vunpack.c.l.b16 %v1955
        %v2091 = vunpack.c.l.b16 %v1956
        %v2092 = vunpack.c.l.b16 %v1957
        %v2093 = vunpack.c.l.b16 %v1958
        %v2094 = vunpack.c.l.b16 %v1959
        %v2095 = vunpack.c.l.b16 %v1960
        %v2096 = vunpack.c.l.b16 %v1961
        %v2097 = vunpack.c.l.b16 %v1962
        %v2098 = vunpack.c.l.b16 %v1963
        %v2099 = vunpack.c.l.b16 %v1964
        %v2100 = vunpack.c.l.b16 %v1965
        %v2101 = vunpack.c.l.b16 %v1966
        %v2102 = vunpack.c.l.b16 %v1967
        %v2103 = vunpack.c.l.b16 %v1968
        %v2104 = vpack.c.b16 %v2041, %v2040
        %v2105 = vpack.c.b16 %v2043, %v2042
        %v2106 = vpack.c.b16 %v2045, %v2044
        %v2107 = vpack.c.b16 %v2047, %v2046
        %v2108 = vpack.c.b16 %v2049, %v2048
        %v2109 = vpack.c.b16 %v2051, %v2050
        %v2110 = vpack.c.b16 %v2053, %v2052
        %v2111 = vpack.c.b16 %v2055, %v2054
        %v2112 = vpack.c.b16 %v2057, %v2056
        %v2113 = vpack.c.b16 %v2059, %v2058
        %v2114 = vpack.c.b16 %v2061, %v2060
        %v2115 = vpack.c.b16 %v2063, %v2062
        %v2116 = vpack.c.b16 %v2065, %v2064
        %v2117 = vpack.c.b16 %v2067, %v2066
        %v2118 = vpack.c.b16 %v2069, %v2068
        %v2119 = vpack.c.b16 %v2071, %v2070
        %v2120 = vpack.c.b16 %v2073, %v2072
        %v2121 = vpack.c.b16 %v2075, %v2074
        %v2122 = vpack.c.b16 %v2077, %v2076
        %v2123 = vpack.c.b16 %v2079, %v2078
        %v2124 = vpack.c.b16 %v2081, %v2080
        %v2125 = vpack.c.b16 %v2083, %v2082
        %v2126 = vpack.c.b16 %v2085, %v2084
        %v2127 = vpack.c.b16 %v2087, %v2086
        %v2128 = vpack.c.b16 %v2089, %v2088
        %v2129 = vpack.c.b16 %v2091, %v2090
        %v2130 = vpack.c.b16 %v2093, %v2092
        %v2131 = vpack.c.b16 %v2095, %v2094
        %v2132 = vpack.c.b16 %v2097, %v2096
        %v2133 = vpack.c.b16 %v2099, %v2098
        %v2134 = vpack.c.b16 %v2101, %v2100
        %v2135 = vpack.c.b16 %v2103, %v2102
        %2168 = vmatprep.subr.bf16.mxu0 0
        %2169 = vmatpush1.bf16.msra.mxu0 %v2111
        %2170 = vmatprep.subr.bf16.mxu0 0
        %2171 = vmatpush1.bf16.msra.mxu0 %v2110
        %2172 = vmatprep.subr.bf16.mxu0 0
        %2173 = vmatpush1.bf16.msra.mxu0 %v2109
        %2174 = vmatprep.subr.bf16.mxu0 0
        %2175 = vmatpush1.bf16.msra.mxu0 %v2108
        %2176 = vmatprep.subr.bf16.mxu0 0
        %2177 = vmatpush1.bf16.msra.mxu0 %v2107
        %2178 = vmatprep.subr.bf16.mxu0 0
        %2179 = vmatpush1.bf16.msra.mxu0 %v2106
        %2180 = vmatprep.subr.bf16.mxu0 0
        %2181 = vmatpush1.bf16.msra.mxu0 %v2105
        %2182 = vmatprep.subr.bf16.mxu0 0
        %2183 = vmatpush1.bf16.msra.mxu0 %v2104
        %2184 = vmatprep.subr.bf16.mxu0 0
        %2185 = vmatpush2.bf16.msra.mxu0 %v2119
        %2186 = vmatprep.subr.bf16.mxu0 0
        %2187 = vmatpush2.bf16.msra.mxu0 %v2118
        %2188 = vmatprep.subr.bf16.mxu0 0
        %2189 = vmatpush2.bf16.msra.mxu0 %v2117
        %2190 = vmatprep.subr.bf16.mxu0 0
        %2191 = vmatpush2.bf16.msra.mxu0 %v2116
        %2192 = vmatprep.subr.bf16.mxu0 0
        %2193 = vmatpush2.bf16.msra.mxu0 %v2115
        %2194 = vmatprep.subr.bf16.mxu0 0
        %2195 = vmatpush2.bf16.msra.mxu0 %v2114
        %2196 = vmatprep.subr.bf16.mxu0 0
        %2197 = vmatpush2.bf16.msra.mxu0 %v2113
        %2198 = vmatprep.subr.bf16.mxu0 0
        %2199 = vmatpush2.bf16.msra.mxu0 %v2112
        %2200 = vmatprep.mubr.bf16.mxu0 %v1902
        %2201 = vmatmul.mubr.bf16.gmra.mxu0 %v1901
        %v2202 = vpop.f32.mrf.mxu0
        %v2203 = vadd.f32 %v1974, %v2202
        %v2204 = vpop.f32.mrf.mxu0
        %v2205 = vpop.f32.mrf.mxu0
        %v2206 = vpop.f32.mrf.mxu0
        %2207 = vdwg.mxu0
        %2208 = vmatprep.subr.bf16.mxu0 0
        %2209 = vmatpush1.bf16.msra.mxu0 %v2127
        %2210 = vmatprep.subr.bf16.mxu0 0
        %2211 = vmatpush1.bf16.msra.mxu0 %v2126
        %2212 = vmatprep.subr.bf16.mxu0 0
        %2213 = vmatpush1.bf16.msra.mxu0 %v2125
        %2214 = vmatprep.subr.bf16.mxu0 0
        %2215 = vmatpush1.bf16.msra.mxu0 %v2124
        %2216 = vmatprep.subr.bf16.mxu0 0
        %2217 = vmatpush1.bf16.msra.mxu0 %v2123
        %2218 = vmatprep.subr.bf16.mxu0 0
        %2219 = vmatpush1.bf16.msra.mxu0 %v2122
        %2220 = vmatprep.subr.bf16.mxu0 0
        %2221 = vmatpush1.bf16.msra.mxu0 %v2121
        %2222 = vmatprep.subr.bf16.mxu0 0
        %2223 = vmatpush1.bf16.msra.mxu0 %v2120
        %2224 = vmatprep.subr.bf16.mxu0 0
        %2225 = vmatpush2.bf16.msra.mxu0 %v2135
        %2226 = vmatprep.subr.bf16.mxu0 0
        %2227 = vmatpush2.bf16.msra.mxu0 %v2134
        %2228 = vmatprep.subr.bf16.mxu0 0
        %2229 = vmatpush2.bf16.msra.mxu0 %v2133
        %2230 = vmatprep.subr.bf16.mxu0 0
        %2231 = vmatpush2.bf16.msra.mxu0 %v2132
        %2232 = vmatprep.subr.bf16.mxu0 0
        %2233 = vmatpush2.bf16.msra.mxu0 %v2131
        %2234 = vmatprep.subr.bf16.mxu0 0
        %2235 = vmatpush2.bf16.msra.mxu0 %v2130
        %2236 = vmatprep.subr.bf16.mxu0 0
        %2237 = vmatpush2.bf16.msra.mxu0 %v2129
        %2238 = vmatprep.subr.bf16.mxu0 0
        %2239 = vmatpush2.bf16.msra.mxu0 %v2128
        %2240 = vmatprep.mubr.bf16.mxu0 %v1904
        %2241 = vmatmul.mubr.bf16.gmra.mxu0 %v1903
        %v2242 = vpop.f32.mrf.mxu0
        %v2243 = vadd.f32 %v2203, %v2242
        %v2244 = vpop.f32.mrf.mxu0
        %v2245 = vpop.f32.mrf.mxu0
        %v2246 = vpop.f32.mrf.mxu0
        %2247 = vdwg.mxu0
        %v2248 = vadd.f32 %v1556, %v2243
        %2249 = vst [vmem:[%s538] sm:$0xff] %v2248
        %s2250 = sand.u32 %s319, 1
        %s2251 = scalar_lea.sflag [#allocation4], %s2250
        %s2252 = sand.u32 %s319, 1
        %s2253 = smul.addr %s2252, 8
        %s2254 = scalar_lea.vmem [#allocation14], %s2253
        // Predicated region
        $region101: #{tpu_custom_call.1} parent=71 // pred_check
          %p2255 = pneg %p329
        $region102: #{tpu_custom_call.1} parent=71 // pred_check_branch
          %2257 = sbr.rel (%p2255) target = $region104
        $region103: #{tpu_custom_call.1} parent=71 // pred_region
          %s2259 = ssub.s32 128, 128
          %2260 = vsyncadd %s2251, %s2259
          %s2261 = smul.addr %s33, 128
          %s2262 = scalar_lea.hbm %s13, %s2261
          %s2264 = sshll.u32 %s2254, 4
          %s2265 = int_to_ptr.vmem [resolvable:$true] %s2264
          %2267 = dma.vmem_to_hbm [thread:$0]  %s2265, 128, %s2262, %s2251
        $region104: #{tpu_custom_call.1} parent=71 // pred_fallthru
          _
      $region72: #{tpu_custom_call.1} parent=5 // pred_fallthru
        _
      %p2268 = scmp.le.s32.totalorder 2, %s28
      // Predicated region
      $region105: #{tpu_custom_call.1} parent=5 // pred_check
        %p2269 = pneg %p2268
      $region106: #{tpu_custom_call.1} parent=5 // pred_check_branch
        %2271 = sbr.rel (%p2269) target = $region108
      $region107: #{tpu_custom_call.1} parent=5 // pred_region
        %s2272 = ssub.s32 %s28, 2
        // Predicated region
        $region109: #{tpu_custom_call.1} parent=107 // pred_check
          %p2273 = pneg %p335
        $region110: #{tpu_custom_call.1} parent=107 // pred_check_branch
          %2275 = sbr.rel (%p2273) target = $region112
        $region111: #{tpu_custom_call.1} parent=107 // pred_region
          %s2276 = sand.u32 %s320, 1
          %s2277 = scalar_lea.sflag [#allocation4], %s2276
          %s2278 = sand.u32 %s320, 1
          %s2279 = smul.addr %s2278, 8
          %s2280 = scalar_lea.vmem [#allocation14], %s2279
          %2281 = dma.done %s2277, 128
        $region112: #{tpu_custom_call.1} parent=107 // pred_fallthru
          _
      $region108: #{tpu_custom_call.1} parent=5 // pred_fallthru
        _
    $region6: #{tpu_custom_call.1} parent=1 // loop_footer
      %s32 = sadd.s32 1, %s28
    $region7: #{tpu_custom_call.1} parent=1 // loop_footer_branch
      %27 = sbr.rel target = $region3
    $region8: #{tpu_custom_call.1} parent=1 // loop_exit
      _
    %2282 = vsyncpa [#allocation3], 1
    %s2283 = scalar_lea.sflag [#allocation3], 1
    %2284 = vsyncpa %s2283, 1
    %2285 = vsyncpa [#allocation6], 1
    %2286 = vsyncpa [#allocation9], 1
    %2287 = vsyncpa [#allocation12], 1
    %2288 = vsyncpa [#allocation4], 1
    %s2289 = scalar_lea.sflag [#allocation4], 1
    %2290 = vsyncpa %s2289, 1

// kernel: tpu_custom_call.1
$region0: #{tpu_custom_call.1}
  #allocation0 [shape = 'u32[]', space=smem, size = 0x4, offset = 0x4, fixed_abs, tag = 'smem constant byte address 0x4 - core index']
  #allocation1 [shape = 'u32[144,128]{1,0:T(1,128)}', space=vmem, size = 0x12000, scoped, tag = 'internal scratch']
  %s0 = inlined_call_operand.hbm [shape: f32[2,8,128], index: 0, kind: input, shape index: {}]
  %s1 = inlined_call_operand.hbm [shape: f32[1,128], index: 1, kind: input, shape index: {}]
  %s2 = inlined_call_operand.hbm [shape: f32[1,128], index: 2, kind: input, shape index: {}]
  %s3 = inlined_call_operand.hbm [shape: bf16[128,384], index: 3, kind: input, shape index: {}]
  %s4 = inlined_call_operand.vmem [shape: f32[1,384], index: 4, kind: input, shape index: {}]
  %s5 = inlined_call_operand.hbm [shape: bf16[4,32,128], index: 5, kind: input, shape index: {}]
  %s6 = inlined_call_operand.vmem [shape: f32[1,128], index: 6, kind: input, shape index: {}]
  %s7 = inlined_call_operand.vmem [shape: f32[1,128], index: 7, kind: input, shape index: {}]
  %s8 = inlined_call_operand.vmem [shape: f32[1,128], index: 8, kind: input, shape index: {}]
  %s9 = inlined_call_operand.hbm [shape: bf16[128,512], index: 9, kind: input, shape index: {}]
  %s10 = inlined_call_operand.vmem [shape: f32[1,512], index: 10, kind: input, shape index: {}]
  %s11 = inlined_call_operand.hbm [shape: bf16[512,128], index: 11, kind: input, shape index: {}]
  %s12 = inlined_call_operand.vmem [shape: f32[1,128], index: 12, kind: input, shape index: {}]
  %s13 = inlined_call_operand.hbm [shape: f32[2,8,128], index: 13, kind: output, shape index: {}]
  %s14 = sld [smem:[#allocation0]]
  $region113: #{tpu_custom_call.1} parent=0
    _
  %s16 = ssub.s32 1, %s14
  %s17 = scalar_select 0, %s16, %s14
  $region1: #{tpu_custom_call.1} parent=0
    #allocation2 [shape = 'u8[8192]{0}', space=vmem, size = 0x2000, scoped, tag = 'input window, operand 0']
    #allocation3 [shape = 's32[2]{0}', space=sflag, size = 0x8, scoped, tag = 'scoped memory for tpu_custom_call.1']
    #allocation4 [shape = 's32[2]{0}', space=sflag, size = 0x8, scoped, tag = 'scoped memory for tpu_custom_call.1']
    #allocation5 [shape = 'u8[512]{0}', space=vmem, size = 0x400, scoped, tag = 'input window, operand 1, single buffered']
    #allocation6 [shape = 's32[1]{0}', space=sflag, size = 0x4, scoped, tag = 'scoped memory for tpu_custom_call.1']
    #allocation7 [shape = 'u8[512]{0}', space=vmem, size = 0x400, scoped, tag = 'input window, operand 2, single buffered']
    #allocation8 [shape = 'u8[98304]{0}', space=vmem, size = 0x18000, scoped, tag = 'input window, operand 3, single buffered']
    #allocation9 [shape = 's32[1]{0}', space=sflag, size = 0x4, scoped, tag = 'scoped memory for tpu_custom_call.1']
    #allocation10 [shape = 'u8[32768]{0}', space=vmem, size = 0x8000, scoped, tag = 'input window, operand 5, single buffered']
    #allocation11 [shape = 'u8[131072]{0}', space=vmem, size = 0x20000, scoped, tag = 'input window, operand 9, single buffered']
    #allocation12 [shape = 's32[1]{0}', space=sflag, size = 0x4, scoped, tag = 'scoped memory for tpu_custom_call.1']
    #allocation13 [shape = 'u8[131072]{0}', space=vmem, size = 0x20000, scoped, tag = 'input window, operand 11, single buffered']
    #allocation14 [shape = 'u8[8192]{0}', space=vmem, size = 0x2000, scoped, tag = 'output window, operand 0']
    %18 = vsyncpa [#allocation3], 0
    %s19 = scalar_lea.sflag [#allocation3], 1
    %20 = vsyncpa %s19, 0
    %21 = vsyncpa [#allocation6], 0
    %22 = vsyncpa [#allocation9], 0
    %23 = vsyncpa [#allocation12], 0
    %24 = vsyncpa [#allocation4], 0
    %s25 = scalar_lea.sflag [#allocation4], 1
    %26 = vsyncpa %s25, 0
    loop: start=0, step=1, limit=4
    $region2: #{tpu_custom_call.1} parent=1 // loop_pre_header
      _
    $region3: #{tpu_custom_call.1} parent=1 // loop_header
      %s28 = sphi 0, %s32
      %p29 = scmp.ge.s32.totalorder %s28, 4
      %s38 = sphi 0, %s40
      %s41 = sphi 0, %s38
      %s42 = sphi 0, %s41
      %s58 = sphi 0, %s42
      %s62 = sphi 0, %s62
      %s64 = sphi 0, %s62
      %s65 = sphi 0, %s64
      %s79 = sphi 0, %s65
      %s83 = sphi 0, %s83
      %s85 = sphi 0, %s83
      %s86 = sphi 0, %s85
      %s100 = sphi 0, %s86
      %s104 = sphi 0, %s104
      %s106 = sphi 0, %s104
      %s107 = sphi 0, %s106
      %s121 = sphi 0, %s107
      %s125 = sphi 0, %s125
      %s127 = sphi 0, %s125
      %s128 = sphi 0, %s127
      %s142 = sphi 0, %s128
      %s146 = sphi 0, %s146
      %s148 = sphi 0, %s146
      %s149 = sphi 0, %s148
      %s163 = sphi 0, %s149
      %s167 = sphi 0, %s167
      %s169 = sphi 0, %s167
      %s170 = sphi 0, %s169
      %s184 = sphi 0, %s170
      %s188 = sphi 0, %s188
      %s190 = sphi 0, %s188
      %s191 = sphi 0, %s190
      %s205 = sphi 0, %s191
      %s209 = sphi 0, %s209
      %s211 = sphi 0, %s209
      %s212 = sphi 0, %s211
      %s226 = sphi 0, %s212
      %s230 = sphi 0, %s230
      %s232 = sphi 0, %s230
      %s233 = sphi 0, %s232
      %s247 = sphi 0, %s233
      %s251 = sphi 0, %s251
      %s253 = sphi 0, %s251
      %s254 = sphi 0, %s253
      %s268 = sphi 0, %s254
      %s272 = sphi 0, %s272
      %s274 = sphi 0, %s272
      %s275 = sphi 0, %s274
      %s289 = sphi 0, %s275
      %s293 = sphi 0, %s293
      %s295 = sphi 0, %s293
      %s296 = sphi 0, %s295
      %s310 = sphi 0, %s296
      %s316 = sphi 0, %s318
      %s319 = sphi 0, %s316
      %s320 = sphi 0, %s319
      %s336 = sphi 0, %s320
    $region4: #{tpu_custom_call.1} parent=1 // loop_header_branch
      %31 = sbr.rel (%p29) target = $region8
    $region5: #{tpu_custom_call.1} parent=1 // loop_body
      %s33 = ssub.s32 %s28, 1
      %s34 = ssub.s32 %s28, 2
      %s35 = sadd.s32 %s28, 1
      %s36 = ssub.s32 %s28, %s35
      %p37 = scmp.eq.s32.totalorder %s36, 0
      %s39 = sadd.s32 %s38, 1
      %s40 = scalar_select %p37, %s38, %s39
      %p43 = pneg %p37
      %p44 = scmp.eq.s32.totalorder %s28, 1
      %p45 = por %p43, %p44
      %p46 = scmp.ne.s32.totalorder %s38, %s41
      %p47 = scmp.eq.s32.totalorder %s28, 0
      %p48 = por %p46, %p47
      %p49 = scmp.ne.s32.totalorder %s38, %s41
      %p50 = scmp.eq.s32.totalorder %s33, 1
      %p51 = por %p49, %p50
      %p52 = scmp.ne.s32.totalorder %s41, %s42
      %p53 = scmp.eq.s32.totalorder %s33, 0
      %p54 = por %p52, %p53
      %p55 = scmp.ne.s32.totalorder %s41, %s42
      %p56 = scmp.eq.s32.totalorder %s34, 1
      %p57 = por %p55, %p56
      %p59 = scmp.ne.s32.totalorder %s42, %s58
      %p60 = scmp.eq.s32.totalorder %s34, 0
      %p61 = por %p59, %p60
      %s63 = sadd.s32 %s62, 1
      %p66 = scmp.eq.s32.totalorder %s28, 1
      %p67 = scmp.ne.s32.totalorder %s62, %s64
      %p68 = scmp.eq.s32.totalorder %s28, 0
      %p69 = por %p67, %p68
      %p70 = scmp.ne.s32.totalorder %s62, %s64
      %p71 = scmp.eq.s32.totalorder %s33, 1
      %p72 = por %p70, %p71
      %p73 = scmp.ne.s32.totalorder %s64, %s65
      %p74 = scmp.eq.s32.totalorder %s33, 0
      %p75 = por %p73, %p74
      %p76 = scmp.ne.s32.totalorder %s64, %s65
      %p77 = scmp.eq.s32.totalorder %s34, 1
      %p78 = por %p76, %p77
      %p80 = scmp.ne.s32.totalorder %s65, %s79
      %p81 = scmp.eq.s32.totalorder %s34, 0
      %p82 = por %p80, %p81
      %s84 = sadd.s32 %s83, 1
      %p87 = scmp.eq.s32.totalorder %s28, 1
      %p88 = scmp.ne.s32.totalorder %s83, %s85
      %p89 = scmp.eq.s32.totalorder %s28, 0
      %p90 = por %p88, %p89
      %p91 = scmp.ne.s32.totalorder %s83, %s85
      %p92 = scmp.eq.s32.totalorder %s33, 1
      %p93 = por %p91, %p92
      %p94 = scmp.ne.s32.totalorder %s85, %s86
      %p95 = scmp.eq.s32.totalorder %s33, 0
      %p96 = por %p94, %p95
      %p97 = scmp.ne.s32.totalorder %s85, %s86
      %p98 = scmp.eq.s32.totalorder %s34, 1
      %p99 = por %p97, %p98
      %p101 = scmp.ne.s32.totalorder %s86, %s100
      %p102 = scmp.eq.s32.totalorder %s34, 0
      %p103 = por %p101, %p102
      %s105 = sadd.s32 %s104, 1
      %p108 = scmp.eq.s32.totalorder %s28, 1
      %p109 = scmp.ne.s32.totalorder %s104, %s106
      %p110 = scmp.eq.s32.totalorder %s28, 0
      %p111 = por %p109, %p110
      %p112 = scmp.ne.s32.totalorder %s104, %s106
      %p113 = scmp.eq.s32.totalorder %s33, 1
      %p114 = por %p112, %p113
      %p115 = scmp.ne.s32.totalorder %s106, %s107
      %p116 = scmp.eq.s32.totalorder %s33, 0
      %p117 = por %p115, %p116
      %p118 = scmp.ne.s32.totalorder %s106, %s107
      %p119 = scmp.eq.s32.totalorder %s34, 1
      %p120 = por %p118, %p119
      %p122 = scmp.ne.s32.totalorder %s107, %s121
      %p123 = scmp.eq.s32.totalorder %s34, 0
      %p124 = por %p122, %p123
      %s126 = sadd.s32 %s125, 1
      %p129 = scmp.eq.s32.totalorder %s28, 1
      %p130 = scmp.ne.s32.totalorder %s125, %s127
      %p131 = scmp.eq.s32.totalorder %s28, 0
      %p132 = por %p130, %p131
      %p133 = scmp.ne.s32.totalorder %s125, %s127
      %p134 = scmp.eq.s32.totalorder %s33, 1
      %p135 = por %p133, %p134
      %p136 = scmp.ne.s32.totalorder %s127, %s128
      %p137 = scmp.eq.s32.totalorder %s33, 0
      %p138 = por %p136, %p137
      %p139 = scmp.ne.s32.totalorder %s127, %s128
      %p140 = scmp.eq.s32.totalorder %s34, 1
      %p141 = por %p139, %p140
      %p143 = scmp.ne.s32.totalorder %s128, %s142
      %p144 = scmp.eq.s32.totalorder %s34, 0
      %p145 = por %p143, %p144
      %s147 = sadd.s32 %s146, 1
      %p150 = scmp.eq.s32.totalorder %s28, 1
      %p151 = scmp.ne.s32.totalorder %s146, %s148
      %p152 = scmp.eq.s32.totalorder %s28, 0
      %p153 = por %p151, %p152
      %p154 = scmp.ne.s32.totalorder %s146, %s148
      %p155 = scmp.eq.s32.totalorder %s33, 1
      %p156 = por %p154, %p155
      %p157 = scmp.ne.s32.totalorder %s148, %s149
      %p158 = scmp.eq.s32.totalorder %s33, 0
      %p159 = por %p157, %p158
      %p160 = scmp.ne.s32.totalorder %s148, %s149
      %p161 = scmp.eq.s32.totalorder %s34, 1
      %p162 = por %p160, %p161
      %p164 = scmp.ne.s32.totalorder %s149, %s163
      %p165 = scmp.eq.s32.totalorder %s34, 0
      %p166 = por %p164, %p165
      %s168 = sadd.s32 %s167, 1
      %p171 = scmp.eq.s32.totalorder %s28, 1
      %p172 = scmp.ne.s32.totalorder %s167, %s169
      %p173 = scmp.eq.s32.totalorder %s28, 0
      %p174 = por %p172, %p173
      %p175 = scmp.ne.s32.totalorder %s167, %s169
      %p176 = scmp.eq.s32.totalorder %s33, 1
      %p177 = por %p175, %p176
      %p178 = scmp.ne.s32.totalorder %s169, %s170
      %p179 = scmp.eq.s32.totalorder %s33, 0
      %p180 = por %p178, %p179
      %p181 = scmp.ne.s32.totalorder %s169, %s170
      %p182 = scmp.eq.s32.totalorder %s34, 1
      %p183 = por %p181, %p182
      %p185 = scmp.ne.s32.totalorder %s170, %s184
      %p186 = scmp.eq.s32.totalorder %s34, 0
      %p187 = por %p185, %p186
      %s189 = sadd.s32 %s188, 1
      %p192 = scmp.eq.s32.totalorder %s28, 1
      %p193 = scmp.ne.s32.totalorder %s188, %s190
      %p194 = scmp.eq.s32.totalorder %s28, 0
      %p195 = por %p193, %p194
      %p196 = scmp.ne.s32.totalorder %s188, %s190
      %p197 = scmp.eq.s32.totalorder %s33, 1
      %p198 = por %p196, %p197
      %p199 = scmp.ne.s32.totalorder %s190, %s191
      %p200 = scmp.eq.s32.totalorder %s33, 0
      %p201 = por %p199, %p200
      %p202 = scmp.ne.s32.totalorder %s190, %s191
      %p203 = scmp.eq.s32.totalorder %s34, 1
      %p204 = por %p202, %p203
      %p206 = scmp.ne.s32.totalorder %s191, %s205
      %p207 = scmp.eq.s32.totalorder %s34, 0
      %p208 = por %p206, %p207
      %s210 = sadd.s32 %s209, 1
      %p213 = scmp.eq.s32.totalorder %s28, 1
      %p214 = scmp.ne.s32.totalorder %s209, %s211
      %p215 = scmp.eq.s32.totalorder %s28, 0
      %p216 = por %p214, %p215
      %p217 = scmp.ne.s32.totalorder %s209, %s211
      %p218 = scmp.eq.s32.totalorder %s33, 1
      %p219 = por %p217, %p218
      %p220 = scmp.ne.s32.totalorder %s211, %s212
      %p221 = scmp.eq.s32.totalorder %s33, 0
      %p222 = por %p220, %p221
      %p223 = scmp.ne.s32.totalorder %s211, %s212
      %p224 = scmp.eq.s32.totalorder %s34, 1
      %p225 = por %p223, %p224
      %p227 = scmp.ne.s32.totalorder %s212, %s226
      %p228 = scmp.eq.s32.totalorder %s34, 0
      %p229 = por %p227, %p228
      %s231 = sadd.s32 %s230, 1
      %p234 = scmp.eq.s32.totalorder %s28, 1
      %p235 = scmp.ne.s32.totalorder %s230, %s232
      %p236 = scmp.eq.s32.totalorder %s28, 0
      %p237 = por %p235, %p236
      %p238 = scmp.ne.s32.totalorder %s230, %s232
      %p239 = scmp.eq.s32.totalorder %s33, 1
      %p240 = por %p238, %p239
      %p241 = scmp.ne.s32.totalorder %s232, %s233
      %p242 = scmp.eq.s32.totalorder %s33, 0
      %p243 = por %p241, %p242
      %p244 = scmp.ne.s32.totalorder %s232, %s233
      %p245 = scmp.eq.s32.totalorder %s34, 1
      %p246 = por %p244, %p245
      %p248 = scmp.ne.s32.totalorder %s233, %s247
      %p249 = scmp.eq.s32.totalorder %s34, 0
      %p250 = por %p248, %p249
      %s252 = sadd.s32 %s251, 1
      %p255 = scmp.eq.s32.totalorder %s28, 1
      %p256 = scmp.ne.s32.totalorder %s251, %s253
      %p257 = scmp.eq.s32.totalorder %s28, 0
      %p258 = por %p256, %p257
      %p259 = scmp.ne.s32.totalorder %s251, %s253
      %p260 = scmp.eq.s32.totalorder %s33, 1
      %p261 = por %p259, %p260
      %p262 = scmp.ne.s32.totalorder %s253, %s254
      %p263 = scmp.eq.s32.totalorder %s33, 0
      %p264 = por %p262, %p263
      %p265 = scmp.ne.s32.totalorder %s253, %s254
      %p266 = scmp.eq.s32.totalorder %s34, 1
      %p267 = por %p265, %p266
      %p269 = scmp.ne.s32.totalorder %s254, %s268
      %p270 = scmp.eq.s32.totalorder %s34, 0
      %p271 = por %p269, %p270
      %s273 = sadd.s32 %s272, 1
      %p276 = scmp.eq.s32.totalorder %s28, 1
      %p277 = scmp.ne.s32.totalorder %s272, %s274
      %p278 = scmp.eq.s32.totalorder %s28, 0
      %p279 = por %p277, %p278
      %p280 = scmp.ne.s32.totalorder %s272, %s274
      %p281 = scmp.eq.s32.totalorder %s33, 1
      %p282 = por %p280, %p281
      %p283 = scmp.ne.s32.totalorder %s274, %s275
      %p284 = scmp.eq.s32.totalorder %s33, 0
      %p285 = por %p283, %p284
      %p286 = scmp.ne.s32.totalorder %s274, %s275
      %p287 = scmp.eq.s32.totalorder %s34, 1
      %p288 = por %p286, %p287
      %p290 = scmp.ne.s32.totalorder %s275, %s289
      %p291 = scmp.eq.s32.totalorder %s34, 0
      %p292 = por %p290, %p291
      %s294 = sadd.s32 %s293, 1
      %p297 = scmp.eq.s32.totalorder %s28, 1
      %p298 = scmp.ne.s32.totalorder %s293, %s295
      %p299 = scmp.eq.s32.totalorder %s28, 0
      %p300 = por %p298, %p299
      %p301 = scmp.ne.s32.totalorder %s293, %s295
      %p302 = scmp.eq.s32.totalorder %s33, 1
      %p303 = por %p301, %p302
      %p304 = scmp.ne.s32.totalorder %s295, %s296
      %p305 = scmp.eq.s32.totalorder %s33, 0
      %p306 = por %p304, %p305
      %p307 = scmp.ne.s32.totalorder %s295, %s296
      %p308 = scmp.eq.s32.totalorder %s34, 1
      %p309 = por %p307, %p308
      %p311 = scmp.ne.s32.totalorder %s296, %s310
      %p312 = scmp.eq.s32.totalorder %s34, 0
      %p313 = por %p311, %p312
      %s314 = ssub.s32 %s28, %s35
      %p315 = scmp.eq.s32.totalorder %s314, 0
      %s317 = sadd.s32 %s316, 1
      %s318 = scalar_select %p315, %s316, %s317
      %p321 = pneg %p315
      %p322 = scmp.eq.s32.totalorder %s28, 1
      %p323 = por %p321, %p322
      %p324 = scmp.ne.s32.totalorder %s316, %s319
      %p325 = scmp.eq.s32.totalorder %s28, 0
      %p326 = por %p324, %p325
      %p327 = scmp.ne.s32.totalorder %s316, %s319
      %p328 = scmp.eq.s32.totalorder %s33, 1
      %p329 = por %p327, %p328
      %p330 = scmp.ne.s32.totalorder %s319, %s320
      %p331 = scmp.eq.s32.totalorder %s33, 0
      %p332 = por %p330, %p331
      %p333 = scmp.ne.s32.totalorder %s319, %s320
      %p334 = scmp.eq.s32.totalorder %s34, 1
      %p335 = por %p333, %p334
      %p337 = scmp.ne.s32.totalorder %s320, %s336
      %p338 = scmp.eq.s32.totalorder %s34, 0
      %p339 = por %p337, %p338
      %p340 = scmp.le.s32.totalorder 1, %s28
      %p341 = scmp.lt.s32.totalorder %s28, 3
      %p342 = pnand %p340, %p341
      %p343 = pneg %p342
      // Predicated region
      $region9: #{tpu_custom_call.1} parent=5 // pred_check
        _
      $region10: #{tpu_custom_call.1} parent=5 // pred_check_branch
        %345 = sbr.rel (%p342) target = $region12
      $region11: #{tpu_custom_call.1} parent=5 // pred_region
        %s346 = ssub.s32 %s28, 1
        // Predicated region
        $region13: #{tpu_custom_call.1} parent=11 // pred_check
          %p347 = pneg %p75
        $region14: #{tpu_custom_call.1} parent=11 // pred_check_branch
          %349 = sbr.rel (%p347) target = $region16
        $region15: #{tpu_custom_call.1} parent=11 // pred_region
          %s351 = ssub.s32 16, 16
          %352 = vsyncadd [#allocation6], %s351
          %s354 = sshll.u32 [#allocation5], 4
          %s355 = int_to_ptr.vmem [resolvable:$true] %s354
          %357 = dma.hbm_to_vmem [thread:$0]  %s1, 16, %s355, [#allocation6]
        $region16: #{tpu_custom_call.1} parent=11 // pred_fallthru
          _
        // Predicated region
        $region17: #{tpu_custom_call.1} parent=11 // pred_check
          %p358 = pneg %p96
        $region18: #{tpu_custom_call.1} parent=11 // pred_check_branch
          %360 = sbr.rel (%p358) target = $region20
        $region19: #{tpu_custom_call.1} parent=11 // pred_region
          %s362 = ssub.s32 16, 16
          %363 = vsyncadd [#allocation6], %s362
          %s365 = sshll.u32 [#allocation7], 4
          %s366 = int_to_ptr.vmem [resolvable:$true] %s365
          %368 = dma.hbm_to_vmem [thread:$0]  %s2, 16, %s366, [#allocation6]
        $region20: #{tpu_custom_call.1} parent=11 // pred_fallthru
          _
        // Predicated region
        $region21: #{tpu_custom_call.1} parent=11 // pred_check
          %p369 = pneg %p117
        $region22: #{tpu_custom_call.1} parent=11 // pred_check_branch
          %371 = sbr.rel (%p369) target = $region24
        $region23: #{tpu_custom_call.1} parent=11 // pred_region
          %s373 = ssub.s32 3072, 3072
          %374 = vsyncadd [#allocation9], %s373
          %s375 = sshll.u32 [#allocation8], 4
          %s376 = int_to_ptr.vmem [resolvable:$true] %s375
          %381 = dma.hbm_to_vmem [thread:$0]  %s3, 3072, %s376, [#allocation9], 192, 192, 12
        $region24: #{tpu_custom_call.1} parent=11 // pred_fallthru
          _
        // Predicated region
        $region25: #{tpu_custom_call.1} parent=11 // pred_check
          %p382 = pneg %p138
        $region26: #{tpu_custom_call.1} parent=11 // pred_check_branch
          %384 = sbr.rel (%p382) target = $region28
        $region27: #{tpu_custom_call.1} parent=11 // pred_region
          _
        $region28: #{tpu_custom_call.1} parent=11 // pred_fallthru
          _
        // Predicated region
        $region29: #{tpu_custom_call.1} parent=11 // pred_check
          %p385 = pneg %p159
        $region30: #{tpu_custom_call.1} parent=11 // pred_check_branch
          %387 = sbr.rel (%p385) target = $region32
        $region31: #{tpu_custom_call.1} parent=11 // pred_region
          %s389 = ssub.s32 1024, 1024
          %390 = vsyncadd [#allocation9], %s389
          %s391 = sshll.u32 [#allocation10], 4
          %s392 = int_to_ptr.vmem [resolvable:$true] %s391
          %397 = dma.hbm_to_vmem [thread:$0]  %s5, 1024, %s392, [#allocation9], 64, 64, 4
        $region32: #{tpu_custom_call.1} parent=11 // pred_fallthru
          _
        // Predicated region
        $region33: #{tpu_custom_call.1} parent=11 // pred_check
          %p398 = pneg %p180
        $region34: #{tpu_custom_call.1} parent=11 // pred_check_branch
          %400 = sbr.rel (%p398) target = $region36
        $region35: #{tpu_custom_call.1} parent=11 // pred_region
          _
        $region36: #{tpu_custom_call.1} parent=11 // pred_fallthru
          _
        // Predicated region
        $region37: #{tpu_custom_call.1} parent=11 // pred_check
          %p401 = pneg %p201
        $region38: #{tpu_custom_call.1} parent=11 // pred_check_branch
          %403 = sbr.rel (%p401) target = $region40
        $region39: #{tpu_custom_call.1} parent=11 // pred_region
          _
        $region40: #{tpu_custom_call.1} parent=11 // pred_fallthru
          _
        // Predicated region
        $region41: #{tpu_custom_call.1} parent=11 // pred_check
          %p404 = pneg %p222
        $region42: #{tpu_custom_call.1} parent=11 // pred_check_branch
          %406 = sbr.rel (%p404) target = $region44
        $region43: #{tpu_custom_call.1} parent=11 // pred_region
          _
        $region44: #{tpu_custom_call.1} parent=11 // pred_fallthru
          _
        // Predicated region
        $region45: #{tpu_custom_call.1} parent=11 // pred_check
          %p407 = pneg %p243
        $region46: #{tpu_custom_call.1} parent=11 // pred_check_branch
          %409 = sbr.rel (%p407) target = $region48
        $region47: #{tpu_custom_call.1} parent=11 // pred_region
          %s411 = ssub.s32 4096, 4096
          %412 = vsyncadd [#allocation12], %s411
          %s413 = sshll.u32 [#allocation11], 4
          %s414 = int_to_ptr.vmem [resolvable:$true] %s413
          %419 = dma.hbm_to_vmem [thread:$0]  %s9, 4096, %s414, [#allocation12], 256, 256, 16
        $region48: #{tpu_custom_call.1} parent=11 // pred_fallthru
          _
        // Predicated region
        $region49: #{tpu_custom_call.1} parent=11 // pred_check
          %p420 = pneg %p264
        $region50: #{tpu_custom_call.1} parent=11 // pred_check_branch
          %422 = sbr.rel (%p420) target = $region52
        $region51: #{tpu_custom_call.1} parent=11 // pred_region
          _
        $region52: #{tpu_custom_call.1} parent=11 // pred_fallthru
          _
        // Predicated region
        $region53: #{tpu_custom_call.1} parent=11 // pred_check
          %p423 = pneg %p285
        $region54: #{tpu_custom_call.1} parent=11 // pred_check_branch
          %425 = sbr.rel (%p423) target = $region56
        $region55: #{tpu_custom_call.1} parent=11 // pred_region
          %s427 = ssub.s32 4096, 4096
          %428 = vsyncadd [#allocation12], %s427
          %s429 = sshll.u32 [#allocation13], 4
          %s430 = int_to_ptr.vmem [resolvable:$true] %s429
          %435 = dma.hbm_to_vmem [thread:$0]  %s11, 4096, %s430, [#allocation12], 64, 64, 4
        $region56: #{tpu_custom_call.1} parent=11 // pred_fallthru
          _
        // Predicated region
        $region57: #{tpu_custom_call.1} parent=11 // pred_check
          %p436 = pneg %p306
        $region58: #{tpu_custom_call.1} parent=11 // pred_check_branch
          %438 = sbr.rel (%p436) target = $region60
        $region59: #{tpu_custom_call.1} parent=11 // pred_region
          _
        $region60: #{tpu_custom_call.1} parent=11 // pred_fallthru
          _
      $region12: #{tpu_custom_call.1} parent=5 // pred_fallthru
        _
      %p439 = scmp.lt.s32.totalorder %s28, 2
      // Predicated region
      $region61: #{tpu_custom_call.1} parent=5 // pred_check
        %p440 = pneg %p439
      $region62: #{tpu_custom_call.1} parent=5 // pred_check_branch
        %442 = sbr.rel (%p440) target = $region64
      $region63: #{tpu_custom_call.1} parent=5 // pred_region
        // Predicated region
        $region65: #{tpu_custom_call.1} parent=63 // pred_check
          %p443 = pneg %p48
        $region66: #{tpu_custom_call.1} parent=63 // pred_check_branch
          %445 = sbr.rel (%p443) target = $region68
        $region67: #{tpu_custom_call.1} parent=63 // pred_region
          %s446 = sand.u32 %s38, 1
          %s447 = scalar_lea.sflag [#allocation3], %s446
          %s448 = sand.u32 %s38, 1
          %s449 = smul.addr %s448, 8
          %s450 = scalar_lea.vmem [#allocation2], %s449
          %s452 = ssub.s32 128, 128
          %453 = vsyncadd %s447, %s452
          %s454 = smul.addr %s28, 128
          %s455 = scalar_lea.hbm %s0, %s454
          %s457 = sshll.u32 %s450, 4
          %s458 = int_to_ptr.vmem [resolvable:$true] %s457
          %460 = dma.hbm_to_vmem [thread:$0]  %s455, 128, %s458, %s447
        $region68: #{tpu_custom_call.1} parent=63 // pred_fallthru
          _
      $region64: #{tpu_custom_call.1} parent=5 // pred_fallthru
        _
      %p461 = scmp.le.s32.totalorder 1, %s28
      %p462 = scmp.lt.s32.totalorder %s28, 3
      %p463 = pnand %p461, %p462
      %p464 = pneg %p463
      // Predicated region
      $region69: #{tpu_custom_call.1} parent=5 // pred_check
        _
      $region70: #{tpu_custom_call.1} parent=5 // pred_check_branch
        %466 = sbr.rel (%p463) target = $region72
      $region71: #{tpu_custom_call.1} parent=5 // pred_region
        %s467 = ssub.s32 %s28, 1
        %s468 = sand.u32 %s41, 1
        %s469 = scalar_lea.sflag [#allocation3], %s468
        %s470 = sand.u32 %s41, 1
        %s471 = smul.addr %s470, 8
        %s472 = scalar_lea.vmem [#allocation2], %s471
        // Predicated region
        $region73: #{tpu_custom_call.1} parent=71 // pred_check
          %p473 = pneg %p54
        $region74: #{tpu_custom_call.1} parent=71 // pred_check_branch
          %475 = sbr.rel (%p473) target = $region76
        $region75: #{tpu_custom_call.1} parent=71 // pred_region
          %476 = dma.done %s469, 128
        $region76: #{tpu_custom_call.1} parent=71 // pred_fallthru
          _
        // Predicated region
        $region77: #{tpu_custom_call.1} parent=71 // pred_check
          %p477 = pneg %p75
        $region78: #{tpu_custom_call.1} parent=71 // pred_check_branch
          %479 = sbr.rel (%p477) target = $region80
        $region79: #{tpu_custom_call.1} parent=71 // pred_region
          %480 = dma.done [#allocation6], 16
        $region80: #{tpu_custom_call.1} parent=71 // pred_fallthru
          _
        // Predicated region
        $region81: #{tpu_custom_call.1} parent=71 // pred_check
          %p481 = pneg %p96
        $region82: #{tpu_custom_call.1} parent=71 // pred_check_branch
          %483 = sbr.rel (%p481) target = $region84
        $region83: #{tpu_custom_call.1} parent=71 // pred_region
          %484 = dma.done [#allocation6], 16
        $region84: #{tpu_custom_call.1} parent=71 // pred_fallthru
          _
        // Predicated region
        $region85: #{tpu_custom_call.1} parent=71 // pred_check
          %p485 = pneg %p117
        $region86: #{tpu_custom_call.1} parent=71 // pred_check_branch
          %487 = sbr.rel (%p485) target = $region88
        $region87: #{tpu_custom_call.1} parent=71 // pred_region
          %488 = dma.done [#allocation9], 3072
        $region88: #{tpu_custom_call.1} parent=71 // pred_fallthru
          _
        // Predicated region
        $region89: #{tpu_custom_call.1} parent=71 // pred_check
          %p489 = pneg %p159
        $region90: #{tpu_custom_call.1} parent=71 // pred_check_branch
          %491 = sbr.rel (%p489) target = $region92
        $region91: #{tpu_custom_call.1} parent=71 // pred_region
          %492 = dma.done [#allocation9], 1024
        $region92: #{tpu_custom_call.1} parent=71 // pred_fallthru
          _
        // Predicated region
        $region93: #{tpu_custom_call.1} parent=71 // pred_check
          %p493 = pneg %p243
        $region94: #{tpu_custom_call.1} parent=71 // pred_check_branch
          %495 = sbr.rel (%p493) target = $region96
        $region95: #{tpu_custom_call.1} parent=71 // pred_region
          %496 = dma.done [#allocation12], 4096
        $region96: #{tpu_custom_call.1} parent=71 // pred_fallthru
          _
        // Predicated region
        $region97: #{tpu_custom_call.1} parent=71 // pred_check
          %p497 = pneg %p285
        $region98: #{tpu_custom_call.1} parent=71 // pred_check_branch
          %499 = sbr.rel (%p497) target = $region100
        $region99: #{tpu_custom_call.1} parent=71 // pred_region
          %500 = dma.done [#allocation12], 4096
        $region100: #{tpu_custom_call.1} parent=71 // pred_fallthru
          _
        %s501 = sand.u32 %s41, 1
        %s502 = scalar_lea.sflag [#allocation3], %s501
        %s503 = sand.u32 %s41, 1
        %s504 = smul.addr %s503, 8
        %s505 = scalar_lea.vmem [#allocation2], %s504
        %p506 = pneg %p54
        %p507 = pneg %p51
        %p508 = pneg %p75
        %p509 = pneg %p72
        %p510 = pneg %p96
        %p511 = pneg %p93
        %p512 = pneg %p117
        %p513 = pneg %p114
        %p514 = pneg %p138
        %p515 = pneg %p135
        %p516 = pneg %p159
        %p517 = pneg %p156
        %p518 = pneg %p180
        %p519 = pneg %p177
        %p520 = pneg %p201
        %p521 = pneg %p198
        %p522 = pneg %p222
        %p523 = pneg %p219
        %p524 = pneg %p243
        %p525 = pneg %p240
        %p526 = pneg %p264
        %p527 = pneg %p261
        %p528 = pneg %p285
        %p529 = pneg %p282
        %p530 = pneg %p306
        %p531 = pneg %p303
        %p532 = pneg %p332
        %p533 = pneg %p329
        %s534 = sand.u32 %s319, 1
        %s535 = scalar_lea.sflag [#allocation4], %s534
        %s536 = sand.u32 %s319, 1
        %s537 = smul.addr %s536, 8
        %s538 = scalar_lea.vmem [#allocation14], %s537
        %v540 = vld [vmem:[%s472] sm:$0xff]
        %v541 = vld [vmem:[#allocation5] sm:$0x1]
        %v542 = vld [vmem:[#allocation7] sm:$0x1]
        %543 = vadd.xlane.f32.xlu0 %v540
        %v544 = vpop.xlane.xlu0 %543
        %v545 = vrcp.pop 128.0
        %v546 = vmul.f32 %v544, %v545
        %v547 = vsub.f32 %v540, %v546
        %v548 = vmul.f32 %v547, %v547
        %549 = vadd.xlane.f32.xlu0 %v548
        %v550 = vpop.xlane.xlu0 %549
        %v551 = vmul.f32 %v550, %v545
        %v552 = vadd.f32 %v551, 1e-05
        %v553 = vrsqrt.pop %v552
        %v554 = vmul.f32 %v547, %v553
        %v556 = vlaneseq
        %v557 = vshrl.u32 %v556, 7
        %v558 = vsub.s32 0, %v557
        %v559 = vrot.slane %v541, %v558
        %v561 = vmul.f32 %v554, %v559
        %v563 = vlaneseq
        %v564 = vshrl.u32 %v563, 7
        %v565 = vsub.s32 0, %v564
        %v566 = vrot.slane %v542, %v565
        %v568 = vadd.f32 %v561, %v566
        %v569 = vpack.c.bf16 %v568, %v568
        %v570 = vld [vmem:[#allocation8] sm:$0xff]
        %v571 = vld [vmem:[#allocation8 + $0x8] sm:$0xf]
        %v572 = vld [vmem:[#allocation8 + $0xc] sm:$0xff]
        %v573 = vld [vmem:[#allocation8 + $0x14] sm:$0xf]
        %v574 = vld [vmem:[#allocation8 + $0x18] sm:$0xff]
        %v575 = vld [vmem:[#allocation8 + $0x20] sm:$0xf]
        %v576 = vld [vmem:[#allocation8 + $0x24] sm:$0xff]
        %v577 = vld [vmem:[#allocation8 + $0x2c] sm:$0xf]
        %v578 = vld [vmem:[#allocation8 + $0x30] sm:$0xff]
        %v579 = vld [vmem:[#allocation8 + $0x38] sm:$0xf]
        %v580 = vld [vmem:[#allocation8 + $0x3c] sm:$0xff]
        %v581 = vld [vmem:[#allocation8 + $0x44] sm:$0xf]
        %v582 = vld [vmem:[#allocation8 + $0x48] sm:$0xff]
        %v583 = vld [vmem:[#allocation8 + $0x50] sm:$0xf]
        %v584 = vld [vmem:[#allocation8 + $0x54] sm:$0xff]
        %v585 = vld [vmem:[#allocation8 + $0x5c] sm:$0xf]
        %v586 = vld [vmem:[#allocation8 + $0x60] sm:$0xff]
        %v587 = vld [vmem:[#allocation8 + $0x68] sm:$0xf]
        %v588 = vld [vmem:[#allocation8 + $0x6c] sm:$0xff]
        %v589 = vld [vmem:[#allocation8 + $0x74] sm:$0xf]
        %v590 = vld [vmem:[#allocation8 + $0x78] sm:$0xff]
        %v591 = vld [vmem:[#allocation8 + $0x80] sm:$0xf]
        %v592 = vld [vmem:[#allocation8 + $0x84] sm:$0xff]
        %v593 = vld [vmem:[#allocation8 + $0x8c] sm:$0xf]
        %v594 = vld [vmem:[#allocation8 + $0x90] sm:$0xff]
        %v595 = vld [vmem:[#allocation8 + $0x98] sm:$0xf]
        %v596 = vld [vmem:[#allocation8 + $0x9c] sm:$0xff]
        %v597 = vld [vmem:[#allocation8 + $0xa4] sm:$0xf]
        %v598 = vld [vmem:[#allocation8 + $0xa8] sm:$0xff]
        %v599 = vld [vmem:[#allocation8 + $0xb0] sm:$0xf]
        %v600 = vld [vmem:[#allocation8 + $0xb4] sm:$0xff]
        %v601 = vld [vmem:[#allocation8 + $0xbc] sm:$0xf]
        %v602 = vld [vmem:[%s4] sm:$0x7]
        %v604 = vlaneseq
        %v605 = vshrl.u32 %v604, 7
        %v606 = vsub.s32 0, %v605
        %v607 = vrot.slane %v602, %v606
        %v608 = vlaneseq
        %v609 = vshrl.u32 %v608, 7
        %v610 = vsub.s32 1, %v609
        %v611 = vrot.slane %v602, %v610
        %v612 = vlaneseq
        %v613 = vshrl.u32 %v612, 7
        %v614 = vsub.s32 2, %v613
        %v615 = vrot.slane %v602, %v614
        %v651 = vunpack.c.l.b16 %v570
        %v652 = vunpack.c.h.b16 %v570
        %v653 = vunpack.c.l.b16 %v571
        %v654 = vunpack.c.l.b16 %v572
        %v655 = vunpack.c.h.b16 %v572
        %v656 = vunpack.c.l.b16 %v573
        %v657 = vunpack.c.l.b16 %v574
        %v658 = vunpack.c.h.b16 %v574
        %v659 = vunpack.c.l.b16 %v575
        %v660 = vunpack.c.l.b16 %v576
        %v661 = vunpack.c.h.b16 %v576
        %v662 = vunpack.c.l.b16 %v577
        %v663 = vunpack.c.l.b16 %v578
        %v664 = vunpack.c.h.b16 %v578
        %v665 = vunpack.c.l.b16 %v579
        %v666 = vunpack.c.l.b16 %v580
        %v667 = vunpack.c.h.b16 %v580
        %v668 = vunpack.c.l.b16 %v581
        %v669 = vunpack.c.l.b16 %v582
        %v670 = vunpack.c.h.b16 %v582
        %v671 = vunpack.c.l.b16 %v583
        %v672 = vunpack.c.l.b16 %v584
        %v673 = vunpack.c.h.b16 %v584
        %v674 = vunpack.c.l.b16 %v585
        %v675 = vunpack.c.l.b16 %v586
        %v676 = vunpack.c.h.b16 %v586
        %v677 = vunpack.c.l.b16 %v587
        %v678 = vunpack.c.l.b16 %v588
        %v679 = vunpack.c.h.b16 %v588
        %v680 = vunpack.c.l.b16 %v589
        %v681 = vunpack.c.l.b16 %v590
        %v682 = vunpack.c.h.b16 %v590
        %v683 = vunpack.c.l.b16 %v591
        %v684 = vunpack.c.l.b16 %v592
        %v685 = vunpack.c.h.b16 %v592
        %v686 = vunpack.c.l.b16 %v593
        %v687 = vunpack.c.l.b16 %v594
        %v688 = vunpack.c.h.b16 %v594
        %v689 = vunpack.c.l.b16 %v595
        %v690 = vunpack.c.l.b16 %v596
        %v691 = vunpack.c.h.b16 %v596
        %v692 = vunpack.c.l.b16 %v597
        %v693 = vunpack.c.l.b16 %v598
        %v694 = vunpack.c.h.b16 %v598
        %v695 = vunpack.c.l.b16 %v599
        %v696 = vunpack.c.l.b16 %v600
        %v697 = vunpack.c.h.b16 %v600
        %v698 = vunpack.c.l.b16 %v601
        %v699 = vpack.c.b16 %v654, %v651
        %v700 = vpack.c.b16 %v655, %v652
        %v701 = vpack.c.b16 %v656, %v653
        %v702 = vpack.c.b16 %v660, %v657
        %v703 = vpack.c.b16 %v661, %v658
        %v704 = vpack.c.b16 %v662, %v659
        %v705 = vpack.c.b16 %v666, %v663
        %v706 = vpack.c.b16 %v667, %v664
        %v707 = vpack.c.b16 %v668, %v665
        %v708 = vpack.c.b16 %v672, %v669
        %v709 = vpack.c.b16 %v673, %v670
        %v710 = vpack.c.b16 %v674, %v671
        %v711 = vpack.c.b16 %v678, %v675
        %v712 = vpack.c.b16 %v679, %v676
        %v713 = vpack.c.b16 %v680, %v677
        %v714 = vpack.c.b16 %v684, %v681
        %v715 = vpack.c.b16 %v685, %v682
        %v716 = vpack.c.b16 %v686, %v683
        %v717 = vpack.c.b16 %v690, %v687
        %v718 = vpack.c.b16 %v691, %v688
        %v719 = vpack.c.b16 %v692, %v689
        %v720 = vpack.c.b16 %v696, %v693
        %v721 = vpack.c.b16 %v697, %v694
        %v722 = vpack.c.b16 %v698, %v695
        %747 = vmatprep.subr.bf16.mxu0 %v721
        %748 = vmatpush1.bf16.msra.mxu0 %v720
        %749 = vmatprep.subr.bf16.mxu0 %v718
        %750 = vmatpush1.bf16.msra.mxu0 %v717
        %751 = vmatprep.subr.bf16.mxu0 %v715
        %752 = vmatpush1.bf16.msra.mxu0 %v714
        %753 = vmatprep.subr.bf16.mxu0 %v712
        %754 = vmatpush1.bf16.msra.mxu0 %v711
        %755 = vmatprep.subr.bf16.mxu0 %v709
        %756 = vmatpush1.bf16.msra.mxu0 %v708
        %757 = vmatprep.subr.bf16.mxu0 %v706
        %758 = vmatpush1.bf16.msra.mxu0 %v705
        %759 = vmatprep.subr.bf16.mxu0 %v703
        %760 = vmatpush1.bf16.msra.mxu0 %v702
        %761 = vmatprep.subr.bf16.mxu0 %v700
        %762 = vmatpush1.bf16.msra.mxu0 %v699
        %763 = vmatprep.subr.bf16.mxu0 0
        %764 = vmatpush2.bf16.msra.mxu0 0
        %765 = vmatprep.subr.bf16.mxu0 0
        %766 = vmatpush2.bf16.msra.mxu0 0
        %767 = vmatprep.subr.bf16.mxu0 0
        %768 = vmatpush2.bf16.msra.mxu0 0
        %769 = vmatprep.subr.bf16.mxu0 0
        %770 = vmatpush2.bf16.msra.mxu0 0
        %771 = vmatprep.subr.bf16.mxu0 0
        %772 = vmatpush2.bf16.msra.mxu0 0
        %773 = vmatprep.subr.bf16.mxu0 0
        %774 = vmatpush2.bf16.msra.mxu0 0
        %775 = vmatprep.subr.bf16.mxu0 0
        %776 = vmatpush2.bf16.msra.mxu0 0
        %777 = vmatprep.subr.bf16.mxu0 0
        %778 = vmatpush2.bf16.msra.mxu0 0
        %779 = vmatprep.mubr.bf16.mxu0 0
        %780 = vmatmul.mubr.bf16.gmra.mxu0 %v569
        %v781 = vpop.f32.mrf.mxu0
        %v782 = vadd.f32 %v607, %v781
        %v783 = vpop.f32.mrf.mxu0
        %v784 = vadd.f32 %v611, %v783
        %v785 = vpop.f32.mrf.mxu0
        %v786 = vpop.f32.mrf.mxu0
        %787 = vdwg.mxu0
        %788 = vmatprep.subr.bf16.mxu0 0
        %789 = vmatpush1.bf16.msra.mxu0 %v722
        %790 = vmatprep.subr.bf16.mxu0 0
        %791 = vmatpush1.bf16.msra.mxu0 %v719
        %792 = vmatprep.subr.bf16.mxu0 0
        %793 = vmatpush1.bf16.msra.mxu0 %v716
        %794 = vmatprep.subr.bf16.mxu0 0
        %795 = vmatpush1.bf16.msra.mxu0 %v713
        %796 = vmatprep.subr.bf16.mxu0 0
        %797 = vmatpush1.bf16.msra.mxu0 %v710
        %798 = vmatprep.subr.bf16.mxu0 0
        %799 = vmatpush1.bf16.msra.mxu0 %v707
        %800 = vmatprep.subr.bf16.mxu0 0
        %801 = vmatpush1.bf16.msra.mxu0 %v704
        %802 = vmatprep.subr.bf16.mxu0 0
        %803 = vmatpush1.bf16.msra.mxu0 %v701
        %804 = vmatprep.subr.bf16.mxu0 0
        %805 = vmatpush2.bf16.msra.mxu0 0
        %806 = vmatprep.subr.bf16.mxu0 0
        %807 = vmatpush2.bf16.msra.mxu0 0
        %808 = vmatprep.subr.bf16.mxu0 0
        %809 = vmatpush2.bf16.msra.mxu0 0
        %810 = vmatprep.subr.bf16.mxu0 0
        %811 = vmatpush2.bf16.msra.mxu0 0
        %812 = vmatprep.subr.bf16.mxu0 0
        %813 = vmatpush2.bf16.msra.mxu0 0
        %814 = vmatprep.subr.bf16.mxu0 0
        %815 = vmatpush2.bf16.msra.mxu0 0
        %816 = vmatprep.subr.bf16.mxu0 0
        %817 = vmatpush2.bf16.msra.mxu0 0
        %818 = vmatprep.subr.bf16.mxu0 0
        %819 = vmatpush2.bf16.msra.mxu0 0
        %820 = vmatprep.mubr.bf16.mxu0 0
        %821 = vmatmul.mubr.bf16.gmra.mxu0 %v569
        %v822 = vpop.f32.mrf.mxu0
        %v823 = vadd.f32 %v615, %v822
        %v824 = vpop.f32.mrf.mxu0
        %v825 = vpop.f32.mrf.mxu0
        %v826 = vpop.f32.mrf.mxu0
        %827 = vdwg.mxu0
        %830 = vrot.lane.b32.xlu0 %v782, 32
        %v831 = vpop.permute.xlu0 %830
        %832 = vrot.lane.b32.xlu0 %v784, 32
        %v833 = vpop.permute.xlu0 %832
        %vm834 = vcmask 261120
        %v835 = vsel %vm834, %v831, %v833
        %838 = vrot.lane.b32.xlu0 %v784, 64
        %v839 = vpop.permute.xlu0 %838
        %840 = vrot.lane.b32.xlu0 %v823, 64
        %v841 = vpop.permute.xlu0 %840
        %vm842 = vcmask 523264
        %v843 = vsel %vm842, %v839, %v841
        %845 = vrot.lane.b32.xlu0 %v823, 96
        %v846 = vpop.permute.xlu0 %845
        %v848 = vpack.c.bf16 %v782, %v782
        %v849 = vpack.c.bf16 %v835, %v835
        %v850 = vpack.c.bf16 %v843, %v843
        %v851 = vpack.c.bf16 %v846, %v846
        %853 = vrot.lane.b32.xlu0 %v848, 96
        %v854 = vpop.permute.xlu0 %853
        %v856 = vsel %vm834, %v848, 0
        %v859 = vsel %vm834, %v854, 0
        %861 = vmatprep.subr.bf16.mxu0 0
        %862 = vmatpush1.bf16.xpose.msra.mxu0 0
        %863 = vmatprep.subr.bf16.mxu0 0
        %864 = vmatpush1.bf16.xpose.msra.mxu0 0
        %865 = vmatprep.subr.bf16.mxu0 0
        %866 = vmatpush1.bf16.xpose.msra.mxu0 0
        %867 = vmatprep.subr.bf16.mxu0 0
        %868 = vmatpush1.bf16.xpose.msra.mxu0 0
        %869 = vmatprep.subr.bf16.mxu0 0
        %870 = vmatpush1.bf16.xpose.msra.mxu0 0
        %871 = vmatprep.subr.bf16.mxu0 0
        %872 = vmatpush1.bf16.xpose.msra.mxu0 0
        %873 = vmatprep.subr.bf16.mxu0 0
        %874 = vmatpush1.bf16.xpose.msra.mxu0 0
        %875 = vmatprep.subr.bf16.mxu0 0
        %876 = vmatpush1.bf16.xpose.msra.mxu0 %v859
        %877 = vmatprep.subr.bf16.mxu0 0
        %878 = vmatpush2.bf16.xpose.msra.mxu0 0
        %879 = vmatprep.subr.bf16.mxu0 0
        %880 = vmatpush2.bf16.xpose.msra.mxu0 0
        %881 = vmatprep.subr.bf16.mxu0 0
        %882 = vmatpush2.bf16.xpose.msra.mxu0 0
        %883 = vmatprep.subr.bf16.mxu0 0
        %884 = vmatpush2.bf16.xpose.msra.mxu0 0
        %885 = vmatprep.subr.bf16.mxu0 0
        %886 = vmatpush2.bf16.xpose.msra.mxu0 0
        %887 = vmatprep.subr.bf16.mxu0 0
        %888 = vmatpush2.bf16.xpose.msra.mxu0 0
        %889 = vmatprep.subr.bf16.mxu0 0
        %890 = vmatpush2.bf16.xpose.msra.mxu0 0
        %891 = vmatprep.subr.bf16.mxu0 0
        %892 = vmatpush2.bf16.xpose.msra.mxu0 0
        %893 = vmatprep.mubr.bf16.mxu0 0
        %894 = vmatmul.mubr.bf16.gmra.mxu0 %v856
        %v895 = vpop.f32.mrf.mxu0
        %v896 = vadd.f32 0.0, %v895
        %v897 = vpop.f32.mrf.mxu0
        %v898 = vpop.f32.mrf.mxu0
        %v899 = vpop.f32.mrf.mxu0
        %900 = vdwg.mxu0
        %902 = vrot.lane.b32.xlu0 %v849, 96
        %v903 = vpop.permute.xlu0 %902
        %v905 = vsel %vm834, %v849, 0
        %v908 = vsel %vm834, %v903, 0
        %910 = vmatprep.subr.bf16.mxu0 0
        %911 = vmatpush1.bf16.xpose.msra.mxu0 0
        %912 = vmatprep.subr.bf16.mxu0 0
        %913 = vmatpush1.bf16.xpose.msra.mxu0 0
        %914 = vmatprep.subr.bf16.mxu0 0
        %915 = vmatpush1.bf16.xpose.msra.mxu0 0
        %916 = vmatprep.subr.bf16.mxu0 0
        %917 = vmatpush1.bf16.xpose.msra.mxu0 0
        %918 = vmatprep.subr.bf16.mxu0 0
        %919 = vmatpush1.bf16.xpose.msra.mxu0 0
        %920 = vmatprep.subr.bf16.mxu0 0
        %921 = vmatpush1.bf16.xpose.msra.mxu0 0
        %922 = vmatprep.subr.bf16.mxu0 0
        %923 = vmatpush1.bf16.xpose.msra.mxu0 0
        %924 = vmatprep.subr.bf16.mxu0 0
        %925 = vmatpush1.bf16.xpose.msra.mxu0 %v908
        %926 = vmatprep.subr.bf16.mxu0 0
        %927 = vmatpush2.bf16.xpose.msra.mxu0 0
        %928 = vmatprep.subr.bf16.mxu0 0
        %929 = vmatpush2.bf16.xpose.msra.mxu0 0
        %930 = vmatprep.subr.bf16.mxu0 0
        %931 = vmatpush2.bf16.xpose.msra.mxu0 0
        %932 = vmatprep.subr.bf16.mxu0 0
        %933 = vmatpush2.bf16.xpose.msra.mxu0 0
        %934 = vmatprep.subr.bf16.mxu0 0
        %935 = vmatpush2.bf16.xpose.msra.mxu0 0
        %936 = vmatprep.subr.bf16.mxu0 0
        %937 = vmatpush2.bf16.xpose.msra.mxu0 0
        %938 = vmatprep.subr.bf16.mxu0 0
        %939 = vmatpush2.bf16.xpose.msra.mxu0 0
        %940 = vmatprep.subr.bf16.mxu0 0
        %941 = vmatpush2.bf16.xpose.msra.mxu0 0
        %942 = vmatprep.mubr.bf16.mxu0 0
        %943 = vmatmul.mubr.bf16.gmra.mxu0 %v905
        %v944 = vpop.f32.mrf.mxu0
        %v945 = vadd.f32 0.0, %v944
        %v946 = vpop.f32.mrf.mxu0
        %v947 = vpop.f32.mrf.mxu0
        %v948 = vpop.f32.mrf.mxu0
        %949 = vdwg.mxu0
        %951 = vrot.lane.b32.xlu0 %v850, 96
        %v952 = vpop.permute.xlu0 %951
        %v954 = vsel %vm834, %v850, 0
        %v957 = vsel %vm834, %v952, 0
        %959 = vmatprep.subr.bf16.mxu0 0
        %960 = vmatpush1.bf16.xpose.msra.mxu0 0
        %961 = vmatprep.subr.bf16.mxu0 0
        %962 = vmatpush1.bf16.xpose.msra.mxu0 0
        %963 = vmatprep.subr.bf16.mxu0 0
        %964 = vmatpush1.bf16.xpose.msra.mxu0 0
        %965 = vmatprep.subr.bf16.mxu0 0
        %966 = vmatpush1.bf16.xpose.msra.mxu0 0
        %967 = vmatprep.subr.bf16.mxu0 0
        %968 = vmatpush1.bf16.xpose.msra.mxu0 0
        %969 = vmatprep.subr.bf16.mxu0 0
        %970 = vmatpush1.bf16.xpose.msra.mxu0 0
        %971 = vmatprep.subr.bf16.mxu0 0
        %972 = vmatpush1.bf16.xpose.msra.mxu0 0
        %973 = vmatprep.subr.bf16.mxu0 0
        %974 = vmatpush1.bf16.xpose.msra.mxu0 %v957
        %975 = vmatprep.subr.bf16.mxu0 0
        %976 = vmatpush2.bf16.xpose.msra.mxu0 0
        %977 = vmatprep.subr.bf16.mxu0 0
        %978 = vmatpush2.bf16.xpose.msra.mxu0 0
        %979 = vmatprep.subr.bf16.mxu0 0
        %980 = vmatpush2.bf16.xpose.msra.mxu0 0
        %981 = vmatprep.subr.bf16.mxu0 0
        %982 = vmatpush2.bf16.xpose.msra.mxu0 0
        %983 = vmatprep.subr.bf16.mxu0 0
        %984 = vmatpush2.bf16.xpose.msra.mxu0 0
        %985 = vmatprep.subr.bf16.mxu0 0
        %986 = vmatpush2.bf16.xpose.msra.mxu0 0
        %987 = vmatprep.subr.bf16.mxu0 0
        %988 = vmatpush2.bf16.xpose.msra.mxu0 0
        %989 = vmatprep.subr.bf16.mxu0 0
        %990 = vmatpush2.bf16.xpose.msra.mxu0 0
        %991 = vmatprep.mubr.bf16.mxu0 0
        %992 = vmatmul.mubr.bf16.gmra.mxu0 %v954
        %v993 = vpop.f32.mrf.mxu0
        %v994 = vadd.f32 0.0, %v993
        %v995 = vpop.f32.mrf.mxu0
        %v996 = vpop.f32.mrf.mxu0
        %v997 = vpop.f32.mrf.mxu0
        %998 = vdwg.mxu0
        %1000 = vrot.lane.b32.xlu0 %v851, 96
        %v1001 = vpop.permute.xlu0 %1000
        %v1003 = vsel %vm834, %v851, 0
        %v1006 = vsel %vm834, %v1001, 0
        %1008 = vmatprep.subr.bf16.mxu0 0
        %1009 = vmatpush1.bf16.xpose.msra.mxu0 0
        %1010 = vmatprep.subr.bf16.mxu0 0
        %1011 = vmatpush1.bf16.xpose.msra.mxu0 0
        %1012 = vmatprep.subr.bf16.mxu0 0
        %1013 = vmatpush1.bf16.xpose.msra.mxu0 0
        %1014 = vmatprep.subr.bf16.mxu0 0
        %1015 = vmatpush1.bf16.xpose.msra.mxu0 0
        %1016 = vmatprep.subr.bf16.mxu0 0
        %1017 = vmatpush1.bf16.xpose.msra.mxu0 0
        %1018 = vmatprep.subr.bf16.mxu0 0
        %1019 = vmatpush1.bf16.xpose.msra.mxu0 0
        %1020 = vmatprep.subr.bf16.mxu0 0
        %1021 = vmatpush1.bf16.xpose.msra.mxu0 0
        %1022 = vmatprep.subr.bf16.mxu0 0
        %1023 = vmatpush1.bf16.xpose.msra.mxu0 %v1006
        %1024 = vmatprep.subr.bf16.mxu0 0
        %1025 = vmatpush2.bf16.xpose.msra.mxu0 0
        %1026 = vmatprep.subr.bf16.mxu0 0
        %1027 = vmatpush2.bf16.xpose.msra.mxu0 0
        %1028 = vmatprep.subr.bf16.mxu0 0
        %1029 = vmatpush2.bf16.xpose.msra.mxu0 0
        %1030 = vmatprep.subr.bf16.mxu0 0
        %1031 = vmatpush2.bf16.xpose.msra.mxu0 0
        %1032 = vmatprep.subr.bf16.mxu0 0
        %1033 = vmatpush2.bf16.xpose.msra.mxu0 0
        %1034 = vmatprep.subr.bf16.mxu0 0
        %1035 = vmatpush2.bf16.xpose.msra.mxu0 0
        %1036 = vmatprep.subr.bf16.mxu0 0
        %1037 = vmatpush2.bf16.xpose.msra.mxu0 0
        %1038 = vmatprep.subr.bf16.mxu0 0
        %1039 = vmatpush2.bf16.xpose.msra.mxu0 0
        %1040 = vmatprep.mubr.bf16.mxu0 0
        %1041 = vmatmul.mubr.bf16.gmra.mxu0 %v1003
        %v1042 = vpop.f32.mrf.mxu0
        %v1043 = vadd.f32 0.0, %v1042
        %v1044 = vpop.f32.mrf.mxu0
        %v1045 = vpop.f32.mrf.mxu0
        %v1046 = vpop.f32.mrf.mxu0
        %1047 = vdwg.mxu0
        %v1048 = vmul.f32 %v896, 0.17677669
        %v1049 = vmul.f32 %v945, 0.17677669
        %v1050 = vmul.f32 %v994, 0.17677669
        %v1051 = vmul.f32 %v1043, 0.17677669
        %v1052 = vlaneseq
        %v1053 = vshrl.u32 %v1052, 7
        %v1054 = vlaneseq
        %v1055 = vand.u32 %v1054, 127
        %vm1056 = vcmp.le.s32.totalorder %v1055, %v1053
        %v1057 = vsel %vm1056, 1, 0
        %vm1058 = vcmp.eq.s32.totalorder %v1057, 1
        %v1059 = vsel %vm1058, %v1048, -1e+30
        %v1060 = vsel %vm1058, %v1049, -1e+30
        %v1061 = vsel %vm1058, %v1050, -1e+30
        %v1062 = vsel %vm1058, %v1051, -1e+30
        %vm1063 = vcmask 64512
        %v1064 = vsel %vm1063, %v1059, -inf
        %1065 = vmax.xlane.f32.xlu0 %v1064
        %v1066 = vpop.xlane.xlu0 %1065
        %v1067 = vsel %vm1063, %v1060, -inf
        %1068 = vmax.xlane.f32.xlu0 %v1067
        %v1069 = vpop.xlane.xlu0 %1068
        %v1070 = vsel %vm1063, %v1061, -inf
        %1071 = vmax.xlane.f32.xlu0 %v1070
        %v1072 = vpop.xlane.xlu0 %1071
        %v1073 = vsel %vm1063, %v1062, -inf
        %1074 = vmax.xlane.f32.xlu0 %v1073
        %v1075 = vpop.xlane.xlu0 %1074
        %v1076 = vsub.f32 %v1059, %v1066
        %v1077 = vsub.f32 %v1060, %v1069
        %v1078 = vsub.f32 %v1061, %v1072
        %v1079 = vsub.f32 %v1062, %v1075
        %v1080 = vmul.f32 %v1076, 1.442695
        %v1081 = vpow.pop %v1080
        %v1082 = vmul.f32 %v1077, 1.442695
        %v1083 = vpow.pop %v1082
        %v1084 = vmul.f32 %v1078, 1.442695
        %v1085 = vpow.pop %v1084
        %v1086 = vmul.f32 %v1079, 1.442695
        %v1087 = vpow.pop %v1086
        %v1088 = vsel %vm1063, %v1081, 0.0
        %1089 = vadd.xlane.f32.xlu0 %v1088
        %v1090 = vpop.xlane.xlu0 %1089
        %v1091 = vsel %vm1063, %v1083, 0.0
        %1092 = vadd.xlane.f32.xlu0 %v1091
        %v1093 = vpop.xlane.xlu0 %1092
        %v1094 = vsel %vm1063, %v1085, 0.0
        %1095 = vadd.xlane.f32.xlu0 %v1094
        %v1096 = vpop.xlane.xlu0 %1095
        %v1097 = vsel %vm1063, %v1087, 0.0
        %1098 = vadd.xlane.f32.xlu0 %v1097
        %v1099 = vpop.xlane.xlu0 %1098
        %v1100 = vrcp.pop %v1090
        %v1101 = vrcp.pop %v1093
        %v1102 = vrcp.pop %v1096
        %v1103 = vrcp.pop %v1099
        %v1104 = vmul.f32 %v1081, %v1100
        %v1105 = vmul.f32 %v1083, %v1101
        %v1106 = vmul.f32 %v1085, %v1102
        %v1107 = vmul.f32 %v1087, %v1103
        %v1108 = vpack.c.bf16 %v1104, %v1104
        %v1109 = vpack.c.bf16 %v1105, %v1105
        %v1110 = vpack.c.bf16 %v1106, %v1106
        %v1111 = vpack.c.bf16 %v1107, %v1107
        %1112 = vrot.lane.b32.xlu0 %v848, 64
        %v1113 = vpop.permute.xlu0 %1112
        %v1115 = vsel %vm1063, %v1108, 0
        %vm1117 = vcmask 1043456
        %v1119 = vsel %vm1117, %v1113, 0
        %1121 = vmatprep.subr.bf16.mxu0 0
        %1122 = vmatpush1.bf16.msra.mxu0 0
        %1123 = vmatprep.subr.bf16.mxu0 0
        %1124 = vmatpush1.bf16.msra.mxu0 0
        %1125 = vmatprep.subr.bf16.mxu0 0
        %1126 = vmatpush1.bf16.msra.mxu0 0
        %1127 = vmatprep.subr.bf16.mxu0 0
        %1128 = vmatpush1.bf16.msra.mxu0 0
        %1129 = vmatprep.subr.bf16.mxu0 0
        %1130 = vmatpush1.bf16.msra.mxu0 0
        %1131 = vmatprep.subr.bf16.mxu0 0
        %1132 = vmatpush1.bf16.msra.mxu0 0
        %1133 = vmatprep.subr.bf16.mxu0 0
        %1134 = vmatpush1.bf16.msra.mxu0 0
        %1135 = vmatprep.subr.bf16.mxu0 0
        %1136 = vmatpush1.bf16.msra.mxu0 %v1119
        %1137 = vmatprep.subr.bf16.mxu0 0
        %1138 = vmatpush2.bf16.msra.mxu0 0
        %1139 = vmatprep.subr.bf16.mxu0 0
        %1140 = vmatpush2.bf16.msra.mxu0 0
        %1141 = vmatprep.subr.bf16.mxu0 0
        %1142 = vmatpush2.bf16.msra.mxu0 0
        %1143 = vmatprep.subr.bf16.mxu0 0
        %1144 = vmatpush2.bf16.msra.mxu0 0
        %1145 = vmatprep.subr.bf16.mxu0 0
        %1146 = vmatpush2.bf16.msra.mxu0 0
        %1147 = vmatprep.subr.bf16.mxu0 0
        %1148 = vmatpush2.bf16.msra.mxu0 0
        %1149 = vmatprep.subr.bf16.mxu0 0
        %1150 = vmatpush2.bf16.msra.mxu0 0
        %1151 = vmatprep.subr.bf16.mxu0 0
        %1152 = vmatpush2.bf16.msra.mxu0 0
        %1153 = vmatprep.mubr.bf16.mxu0 0
        %1154 = vmatmul.mubr.bf16.gmra.mxu0 %v1115
        %v1155 = vpop.f32.mrf.mxu0
        %v1156 = vadd.f32 0.0, %v1155
        %v1157 = vpop.f32.mrf.mxu0
        %v1158 = vpop.f32.mrf.mxu0
        %v1159 = vpop.f32.mrf.mxu0
        %1160 = vdwg.mxu0
        %1161 = vrot.lane.b32.xlu0 %v849, 64
        %v1162 = vpop.permute.xlu0 %1161
        %v1164 = vsel %vm1063, %v1109, 0
        %v1167 = vsel %vm1117, %v1162, 0
        %1169 = vmatprep.subr.bf16.mxu0 0
        %1170 = vmatpush1.bf16.msra.mxu0 0
        %1171 = vmatprep.subr.bf16.mxu0 0
        %1172 = vmatpush1.bf16.msra.mxu0 0
        %1173 = vmatprep.subr.bf16.mxu0 0
        %1174 = vmatpush1.bf16.msra.mxu0 0
        %1175 = vmatprep.subr.bf16.mxu0 0
        %1176 = vmatpush1.bf16.msra.mxu0 0
        %1177 = vmatprep.subr.bf16.mxu0 0
        %1178 = vmatpush1.bf16.msra.mxu0 0
        %1179 = vmatprep.subr.bf16.mxu0 0
        %1180 = vmatpush1.bf16.msra.mxu0 0
        %1181 = vmatprep.subr.bf16.mxu0 0
        %1182 = vmatpush1.bf16.msra.mxu0 0
        %1183 = vmatprep.subr.bf16.mxu0 0
        %1184 = vmatpush1.bf16.msra.mxu0 %v1167
        %1185 = vmatprep.subr.bf16.mxu0 0
        %1186 = vmatpush2.bf16.msra.mxu0 0
        %1187 = vmatprep.subr.bf16.mxu0 0
        %1188 = vmatpush2.bf16.msra.mxu0 0
        %1189 = vmatprep.subr.bf16.mxu0 0
        %1190 = vmatpush2.bf16.msra.mxu0 0
        %1191 = vmatprep.subr.bf16.mxu0 0
        %1192 = vmatpush2.bf16.msra.mxu0 0
        %1193 = vmatprep.subr.bf16.mxu0 0
        %1194 = vmatpush2.bf16.msra.mxu0 0
        %1195 = vmatprep.subr.bf16.mxu0 0
        %1196 = vmatpush2.bf16.msra.mxu0 0
        %1197 = vmatprep.subr.bf16.mxu0 0
        %1198 = vmatpush2.bf16.msra.mxu0 0
        %1199 = vmatprep.subr.bf16.mxu0 0
        %1200 = vmatpush2.bf16.msra.mxu0 0
        %1201 = vmatprep.mubr.bf16.mxu0 0
        %1202 = vmatmul.mubr.bf16.gmra.mxu0 %v1164
        %v1203 = vpop.f32.mrf.mxu0
        %v1204 = vadd.f32 0.0, %v1203
        %v1205 = vpop.f32.mrf.mxu0
        %v1206 = vpop.f32.mrf.mxu0
        %v1207 = vpop.f32.mrf.mxu0
        %1208 = vdwg.mxu0
        %1209 = vrot.lane.b32.xlu0 %v850, 64
        %v1210 = vpop.permute.xlu0 %1209
        %v1212 = vsel %vm1063, %v1110, 0
        %v1215 = vsel %vm1117, %v1210, 0
        %1217 = vmatprep.subr.bf16.mxu0 0
        %1218 = vmatpush1.bf16.msra.mxu0 0
        %1219 = vmatprep.subr.bf16.mxu0 0
        %1220 = vmatpush1.bf16.msra.mxu0 0
        %1221 = vmatprep.subr.bf16.mxu0 0
        %1222 = vmatpush1.bf16.msra.mxu0 0
        %1223 = vmatprep.subr.bf16.mxu0 0
        %1224 = vmatpush1.bf16.msra.mxu0 0
        %1225 = vmatprep.subr.bf16.mxu0 0
        %1226 = vmatpush1.bf16.msra.mxu0 0
        %1227 = vmatprep.subr.bf16.mxu0 0
        %1228 = vmatpush1.bf16.msra.mxu0 0
        %1229 = vmatprep.subr.bf16.mxu0 0
        %1230 = vmatpush1.bf16.msra.mxu0 0
        %1231 = vmatprep.subr.bf16.mxu0 0
        %1232 = vmatpush1.bf16.msra.mxu0 %v1215
        %1233 = vmatprep.subr.bf16.mxu0 0
        %1234 = vmatpush2.bf16.msra.mxu0 0
        %1235 = vmatprep.subr.bf16.mxu0 0
        %1236 = vmatpush2.bf16.msra.mxu0 0
        %1237 = vmatprep.subr.bf16.mxu0 0
        %1238 = vmatpush2.bf16.msra.mxu0 0
        %1239 = vmatprep.subr.bf16.mxu0 0
        %1240 = vmatpush2.bf16.msra.mxu0 0
        %1241 = vmatprep.subr.bf16.mxu0 0
        %1242 = vmatpush2.bf16.msra.mxu0 0
        %1243 = vmatprep.subr.bf16.mxu0 0
        %1244 = vmatpush2.bf16.msra.mxu0 0
        %1245 = vmatprep.subr.bf16.mxu0 0
        %1246 = vmatpush2.bf16.msra.mxu0 0
        %1247 = vmatprep.subr.bf16.mxu0 0
        %1248 = vmatpush2.bf16.msra.mxu0 0
        %1249 = vmatprep.mubr.bf16.mxu0 0
        %1250 = vmatmul.mubr.bf16.gmra.mxu0 %v1212
        %v1251 = vpop.f32.mrf.mxu0
        %v1252 = vadd.f32 0.0, %v1251
        %v1253 = vpop.f32.mrf.mxu0
        %v1254 = vpop.f32.mrf.mxu0
        %v1255 = vpop.f32.mrf.mxu0
        %1256 = vdwg.mxu0
        %1257 = vrot.lane.b32.xlu0 %v851, 64
        %v1258 = vpop.permute.xlu0 %1257
        %v1260 = vsel %vm1063, %v1111, 0
        %v1263 = vsel %vm1117, %v1258, 0
        %1265 = vmatprep.subr.bf16.mxu0 0
        %1266 = vmatpush1.bf16.msra.mxu0 0
        %1267 = vmatprep.subr.bf16.mxu0 0
        %1268 = vmatpush1.bf16.msra.mxu0 0
        %1269 = vmatprep.subr.bf16.mxu0 0
        %1270 = vmatpush1.bf16.msra.mxu0 0
        %1271 = vmatprep.subr.bf16.mxu0 0
        %1272 = vmatpush1.bf16.msra.mxu0 0
        %1273 = vmatprep.subr.bf16.mxu0 0
        %1274 = vmatpush1.bf16.msra.mxu0 0
        %1275 = vmatprep.subr.bf16.mxu0 0
        %1276 = vmatpush1.bf16.msra.mxu0 0
        %1277 = vmatprep.subr.bf16.mxu0 0
        %1278 = vmatpush1.bf16.msra.mxu0 0
        %1279 = vmatprep.subr.bf16.mxu0 0
        %1280 = vmatpush1.bf16.msra.mxu0 %v1263
        %1281 = vmatprep.subr.bf16.mxu0 0
        %1282 = vmatpush2.bf16.msra.mxu0 0
        %1283 = vmatprep.subr.bf16.mxu0 0
        %1284 = vmatpush2.bf16.msra.mxu0 0
        %1285 = vmatprep.subr.bf16.mxu0 0
        %1286 = vmatpush2.bf16.msra.mxu0 0
        %1287 = vmatprep.subr.bf16.mxu0 0
        %1288 = vmatpush2.bf16.msra.mxu0 0
        %1289 = vmatprep.subr.bf16.mxu0 0
        %1290 = vmatpush2.bf16.msra.mxu0 0
        %1291 = vmatprep.subr.bf16.mxu0 0
        %1292 = vmatpush2.bf16.msra.mxu0 0
        %1293 = vmatprep.subr.bf16.mxu0 0
        %1294 = vmatpush2.bf16.msra.mxu0 0
        %1295 = vmatprep.subr.bf16.mxu0 0
        %1296 = vmatpush2.bf16.msra.mxu0 0
        %1297 = vmatprep.mubr.bf16.mxu0 0
        %1298 = vmatmul.mubr.bf16.gmra.mxu0 %v1260
        %v1299 = vpop.f32.mrf.mxu0
        %v1300 = vadd.f32 0.0, %v1299
        %v1301 = vpop.f32.mrf.mxu0
        %v1302 = vpop.f32.mrf.mxu0
        %v1303 = vpop.f32.mrf.mxu0
        %1304 = vdwg.mxu0
        %v1305 = vpack.c.bf16 %v1156, %v1156
        %v1306 = vpack.c.bf16 %v1204, %v1204
        %v1307 = vpack.c.bf16 %v1252, %v1252
        %v1308 = vpack.c.bf16 %v1300, %v1300
        %v1309 = vld [vmem:[#allocation10] sm:$0xf]
        %v1310 = vld [vmem:[#allocation10 + $0x4] sm:$0xf]
        %v1311 = vld [vmem:[#allocation10 + $0x8] sm:$0xf]
        %v1312 = vld [vmem:[#allocation10 + $0xc] sm:$0xf]
        %v1313 = vld [vmem:[#allocation10 + $0x10] sm:$0xf]
        %v1314 = vld [vmem:[#allocation10 + $0x14] sm:$0xf]
        %v1315 = vld [vmem:[#allocation10 + $0x18] sm:$0xf]
        %v1316 = vld [vmem:[#allocation10 + $0x1c] sm:$0xf]
        %v1317 = vld [vmem:[#allocation10 + $0x20] sm:$0xf]
        %v1318 = vld [vmem:[#allocation10 + $0x24] sm:$0xf]
        %v1319 = vld [vmem:[#allocation10 + $0x28] sm:$0xf]
        %v1320 = vld [vmem:[#allocation10 + $0x2c] sm:$0xf]
        %v1321 = vld [vmem:[#allocation10 + $0x30] sm:$0xf]
        %v1322 = vld [vmem:[#allocation10 + $0x34] sm:$0xf]
        %v1323 = vld [vmem:[#allocation10 + $0x38] sm:$0xf]
        %v1324 = vld [vmem:[#allocation10 + $0x3c] sm:$0xf]
        %v1329 = vunpack.c.l.b16 %v1309
        %v1330 = vunpack.c.l.b16 %v1310
        %v1331 = vunpack.c.l.b16 %v1311
        %v1332 = vunpack.c.l.b16 %v1312
        %v1333 = vpack.c.b16 %v1330, %v1329
        %v1334 = vpack.c.b16 %v1332, %v1331
        %v1338 = vsel %vm834, %v1305, 0
        %1340 = vmatprep.subr.bf16.mxu0 0
        %1341 = vmatpush1.bf16.msra.mxu0 0
        %1342 = vmatprep.subr.bf16.mxu0 0
        %1343 = vmatpush1.bf16.msra.mxu0 0
        %1344 = vmatprep.subr.bf16.mxu0 0
        %1345 = vmatpush1.bf16.msra.mxu0 0
        %1346 = vmatprep.subr.bf16.mxu0 0
        %1347 = vmatpush1.bf16.msra.mxu0 0
        %1348 = vmatprep.subr.bf16.mxu0 0
        %1349 = vmatpush1.bf16.msra.mxu0 0
        %1350 = vmatprep.subr.bf16.mxu0 0
        %1351 = vmatpush1.bf16.msra.mxu0 0
        %1352 = vmatprep.subr.bf16.mxu0 0
        %1353 = vmatpush1.bf16.msra.mxu0 %v1334
        %1354 = vmatprep.subr.bf16.mxu0 0
        %1355 = vmatpush1.bf16.msra.mxu0 %v1333
        %1356 = vmatprep.subr.bf16.mxu0 0
        %1357 = vmatpush2.bf16.msra.mxu0 0
        %1358 = vmatprep.subr.bf16.mxu0 0
        %1359 = vmatpush2.bf16.msra.mxu0 0
        %1360 = vmatprep.subr.bf16.mxu0 0
        %1361 = vmatpush2.bf16.msra.mxu0 0
        %1362 = vmatprep.subr.bf16.mxu0 0
        %1363 = vmatpush2.bf16.msra.mxu0 0
        %1364 = vmatprep.subr.bf16.mxu0 0
        %1365 = vmatpush2.bf16.msra.mxu0 0
        %1366 = vmatprep.subr.bf16.mxu0 0
        %1367 = vmatpush2.bf16.msra.mxu0 0
        %1368 = vmatprep.subr.bf16.mxu0 0
        %1369 = vmatpush2.bf16.msra.mxu0 0
        %1370 = vmatprep.subr.bf16.mxu0 0
        %1371 = vmatpush2.bf16.msra.mxu0 0
        %1372 = vmatprep.mubr.bf16.mxu0 0
        %1373 = vmatmul.mubr.bf16.gmra.mxu0 %v1338
        %v1374 = vpop.f32.mrf.mxu0
        %v1375 = vadd.f32 0.0, %v1374
        %v1376 = vpop.f32.mrf.mxu0
        %v1377 = vpop.f32.mrf.mxu0
        %v1378 = vpop.f32.mrf.mxu0
        %1379 = vdwg.mxu0
        %v1384 = vunpack.c.l.b16 %v1313
        %v1385 = vunpack.c.l.b16 %v1314
        %v1386 = vunpack.c.l.b16 %v1315
        %v1387 = vunpack.c.l.b16 %v1316
        %v1388 = vpack.c.b16 %v1385, %v1384
        %v1389 = vpack.c.b16 %v1387, %v1386
        %v1393 = vsel %vm834, %v1306, 0
        %1395 = vmatprep.subr.bf16.mxu0 0
        %1396 = vmatpush1.bf16.msra.mxu0 0
        %1397 = vmatprep.subr.bf16.mxu0 0
        %1398 = vmatpush1.bf16.msra.mxu0 0
        %1399 = vmatprep.subr.bf16.mxu0 0
        %1400 = vmatpush1.bf16.msra.mxu0 0
        %1401 = vmatprep.subr.bf16.mxu0 0
        %1402 = vmatpush1.bf16.msra.mxu0 0
        %1403 = vmatprep.subr.bf16.mxu0 0
        %1404 = vmatpush1.bf16.msra.mxu0 0
        %1405 = vmatprep.subr.bf16.mxu0 0
        %1406 = vmatpush1.bf16.msra.mxu0 0
        %1407 = vmatprep.subr.bf16.mxu0 0
        %1408 = vmatpush1.bf16.msra.mxu0 %v1389
        %1409 = vmatprep.subr.bf16.mxu0 0
        %1410 = vmatpush1.bf16.msra.mxu0 %v1388
        %1411 = vmatprep.subr.bf16.mxu0 0
        %1412 = vmatpush2.bf16.msra.mxu0 0
        %1413 = vmatprep.subr.bf16.mxu0 0
        %1414 = vmatpush2.bf16.msra.mxu0 0
        %1415 = vmatprep.subr.bf16.mxu0 0
        %1416 = vmatpush2.bf16.msra.mxu0 0
        %1417 = vmatprep.subr.bf16.mxu0 0
        %1418 = vmatpush2.bf16.msra.mxu0 0
        %1419 = vmatprep.subr.bf16.mxu0 0
        %1420 = vmatpush2.bf16.msra.mxu0 0
        %1421 = vmatprep.subr.bf16.mxu0 0
        %1422 = vmatpush2.bf16.msra.mxu0 0
        %1423 = vmatprep.subr.bf16.mxu0 0
        %1424 = vmatpush2.bf16.msra.mxu0 0
        %1425 = vmatprep.subr.bf16.mxu0 0
        %1426 = vmatpush2.bf16.msra.mxu0 0
        %1427 = vmatprep.mubr.bf16.mxu0 0
        %1428 = vmatmul.mubr.bf16.gmra.mxu0 %v1393
        %v1429 = vpop.f32.mrf.mxu0
        %v1430 = vadd.f32 0.0, %v1429
        %v1431 = vpop.f32.mrf.mxu0
        %v1432 = vpop.f32.mrf.mxu0
        %v1433 = vpop.f32.mrf.mxu0
        %1434 = vdwg.mxu0
        %v1439 = vunpack.c.l.b16 %v1317
        %v1440 = vunpack.c.l.b16 %v1318
        %v1441 = vunpack.c.l.b16 %v1319
        %v1442 = vunpack.c.l.b16 %v1320
        %v1443 = vpack.c.b16 %v1440, %v1439
        %v1444 = vpack.c.b16 %v1442, %v1441
        %v1448 = vsel %vm834, %v1307, 0
        %1450 = vmatprep.subr.bf16.mxu0 0
        %1451 = vmatpush1.bf16.msra.mxu0 0
        %1452 = vmatprep.subr.bf16.mxu0 0
        %1453 = vmatpush1.bf16.msra.mxu0 0
        %1454 = vmatprep.subr.bf16.mxu0 0
        %1455 = vmatpush1.bf16.msra.mxu0 0
        %1456 = vmatprep.subr.bf16.mxu0 0
        %1457 = vmatpush1.bf16.msra.mxu0 0
        %1458 = vmatprep.subr.bf16.mxu0 0
        %1459 = vmatpush1.bf16.msra.mxu0 0
        %1460 = vmatprep.subr.bf16.mxu0 0
        %1461 = vmatpush1.bf16.msra.mxu0 0
        %1462 = vmatprep.subr.bf16.mxu0 0
        %1463 = vmatpush1.bf16.msra.mxu0 %v1444
        %1464 = vmatprep.subr.bf16.mxu0 0
        %1465 = vmatpush1.bf16.msra.mxu0 %v1443
        %1466 = vmatprep.subr.bf16.mxu0 0
        %1467 = vmatpush2.bf16.msra.mxu0 0
        %1468 = vmatprep.subr.bf16.mxu0 0
        %1469 = vmatpush2.bf16.msra.mxu0 0
        %1470 = vmatprep.subr.bf16.mxu0 0
        %1471 = vmatpush2.bf16.msra.mxu0 0
        %1472 = vmatprep.subr.bf16.mxu0 0
        %1473 = vmatpush2.bf16.msra.mxu0 0
        %1474 = vmatprep.subr.bf16.mxu0 0
        %1475 = vmatpush2.bf16.msra.mxu0 0
        %1476 = vmatprep.subr.bf16.mxu0 0
        %1477 = vmatpush2.bf16.msra.mxu0 0
        %1478 = vmatprep.subr.bf16.mxu0 0
        %1479 = vmatpush2.bf16.msra.mxu0 0
        %1480 = vmatprep.subr.bf16.mxu0 0
        %1481 = vmatpush2.bf16.msra.mxu0 0
        %1482 = vmatprep.mubr.bf16.mxu0 0
        %1483 = vmatmul.mubr.bf16.gmra.mxu0 %v1448
        %v1484 = vpop.f32.mrf.mxu0
        %v1485 = vadd.f32 0.0, %v1484
        %v1486 = vpop.f32.mrf.mxu0
        %v1487 = vpop.f32.mrf.mxu0
        %v1488 = vpop.f32.mrf.mxu0
        %1489 = vdwg.mxu0
        %v1494 = vunpack.c.l.b16 %v1321
        %v1495 = vunpack.c.l.b16 %v1322
        %v1496 = vunpack.c.l.b16 %v1323
        %v1497 = vunpack.c.l.b16 %v1324
        %v1498 = vpack.c.b16 %v1495, %v1494
        %v1499 = vpack.c.b16 %v1497, %v1496
        %v1503 = vsel %vm834, %v1308, 0
        %1505 = vmatprep.subr.bf16.mxu0 0
        %1506 = vmatpush1.bf16.msra.mxu0 0
        %1507 = vmatprep.subr.bf16.mxu0 0
        %1508 = vmatpush1.bf16.msra.mxu0 0
        %1509 = vmatprep.subr.bf16.mxu0 0
        %1510 = vmatpush1.bf16.msra.mxu0 0
        %1511 = vmatprep.subr.bf16.mxu0 0
        %1512 = vmatpush1.bf16.msra.mxu0 0
        %1513 = vmatprep.subr.bf16.mxu0 0
        %1514 = vmatpush1.bf16.msra.mxu0 0
        %1515 = vmatprep.subr.bf16.mxu0 0
        %1516 = vmatpush1.bf16.msra.mxu0 0
        %1517 = vmatprep.subr.bf16.mxu0 0
        %1518 = vmatpush1.bf16.msra.mxu0 %v1499
        %1519 = vmatprep.subr.bf16.mxu0 0
        %1520 = vmatpush1.bf16.msra.mxu0 %v1498
        %1521 = vmatprep.subr.bf16.mxu0 0
        %1522 = vmatpush2.bf16.msra.mxu0 0
        %1523 = vmatprep.subr.bf16.mxu0 0
        %1524 = vmatpush2.bf16.msra.mxu0 0
        %1525 = vmatprep.subr.bf16.mxu0 0
        %1526 = vmatpush2.bf16.msra.mxu0 0
        %1527 = vmatprep.subr.bf16.mxu0 0
        %1528 = vmatpush2.bf16.msra.mxu0 0
        %1529 = vmatprep.subr.bf16.mxu0 0
        %1530 = vmatpush2.bf16.msra.mxu0 0
        %1531 = vmatprep.subr.bf16.mxu0 0
        %1532 = vmatpush2.bf16.msra.mxu0 0
        %1533 = vmatprep.subr.bf16.mxu0 0
        %1534 = vmatpush2.bf16.msra.mxu0 0
        %1535 = vmatprep.subr.bf16.mxu0 0
        %1536 = vmatpush2.bf16.msra.mxu0 0
        %1537 = vmatprep.mubr.bf16.mxu0 0
        %1538 = vmatmul.mubr.bf16.gmra.mxu0 %v1503
        %v1539 = vpop.f32.mrf.mxu0
        %v1540 = vadd.f32 0.0, %v1539
        %v1541 = vpop.f32.mrf.mxu0
        %v1542 = vpop.f32.mrf.mxu0
        %v1543 = vpop.f32.mrf.mxu0
        %1544 = vdwg.mxu0
        %v1545 = vadd.f32 %v1375, %v1430
        %v1546 = vadd.f32 %v1545, %v1485
        %v1547 = vadd.f32 %v1546, %v1540
        %v1548 = vld [vmem:[%s6] sm:$0x1]
        %v1550 = vlaneseq
        %v1551 = vshrl.u32 %v1550, 7
        %v1552 = vsub.s32 0, %v1551
        %v1553 = vrot.slane %v1548, %v1552
        %v1555 = vadd.f32 %v1547, %v1553
        %v1556 = vadd.f32 %v540, %v1555
        %v1557 = vld [vmem:[%s7] sm:$0x1]
        %v1558 = vld [vmem:[%s8] sm:$0x1]
        %1559 = vadd.xlane.f32.xlu0 %v1556
        %v1560 = vpop.xlane.xlu0 %1559
        %v1561 = vmul.f32 %v1560, %v545
        %v1562 = vsub.f32 %v1556, %v1561
        %v1563 = vmul.f32 %v1562, %v1562
        %1564 = vadd.xlane.f32.xlu0 %v1563
        %v1565 = vpop.xlane.xlu0 %1564
        %v1566 = vmul.f32 %v1565, %v545
        %v1567 = vadd.f32 %v1566, 1e-05
        %v1568 = vrsqrt.pop %v1567
        %v1569 = vmul.f32 %v1562, %v1568
        %v1571 = vlaneseq
        %v1572 = vshrl.u32 %v1571, 7
        %v1573 = vsub.s32 0, %v1572
        %v1574 = vrot.slane %v1557, %v1573
        %v1576 = vmul.f32 %v1569, %v1574
        %v1578 = vlaneseq
        %v1579 = vshrl.u32 %v1578, 7
        %v1580 = vsub.s32 0, %v1579
        %v1581 = vrot.slane %v1558, %v1580
        %v1583 = vadd.f32 %v1576, %v1581
        %v1584 = vpack.c.bf16 %v1583, %v1583
        %v1585 = vld [vmem:[#allocation11] sm:$0xff]
        %v1586 = vld [vmem:[#allocation11 + $0x8] sm:$0xff]
        %v1587 = vld [vmem:[#allocation11 + $0x10] sm:$0xff]
        %v1588 = vld [vmem:[#allocation11 + $0x18] sm:$0xff]
        %v1589 = vld [vmem:[#allocation11 + $0x20] sm:$0xff]
        %v1590 = vld [vmem:[#allocation11 + $0x28] sm:$0xff]
        %v1591 = vld [vmem:[#allocation11 + $0x30] sm:$0xff]
        %v1592 = vld [vmem:[#allocation11 + $0x38] sm:$0xff]
        %v1593 = vld [vmem:[#allocation11 + $0x40] sm:$0xff]
        %v1594 = vld [vmem:[#allocation11 + $0x48] sm:$0xff]
        %v1595 = vld [vmem:[#allocation11 + $0x50] sm:$0xff]
        %v1596 = vld [vmem:[#allocation11 + $0x58] sm:$0xff]
        %v1597 = vld [vmem:[#allocation11 + $0x60] sm:$0xff]
        %v1598 = vld [vmem:[#allocation11 + $0x68] sm:$0xff]
        %v1599 = vld [vmem:[#allocation11 + $0x70] sm:$0xff]
        %v1600 = vld [vmem:[#allocation11 + $0x78] sm:$0xff]
        %v1601 = vld [vmem:[#allocation11 + $0x80] sm:$0xff]
        %v1602 = vld [vmem:[#allocation11 + $0x88] sm:$0xff]
        %v1603 = vld [vmem:[#allocation11 + $0x90] sm:$0xff]
        %v1604 = vld [vmem:[#allocation11 + $0x98] sm:$0xff]
        %v1605 = vld [vmem:[#allocation11 + $0xa0] sm:$0xff]
        %v1606 = vld [vmem:[#allocation11 + $0xa8] sm:$0xff]
        %v1607 = vld [vmem:[#allocation11 + $0xb0] sm:$0xff]
        %v1608 = vld [vmem:[#allocation11 + $0xb8] sm:$0xff]
        %v1609 = vld [vmem:[#allocation11 + $0xc0] sm:$0xff]
        %v1610 = vld [vmem:[#allocation11 + $0xc8] sm:$0xff]
        %v1611 = vld [vmem:[#allocation11 + $0xd0] sm:$0xff]
        %v1612 = vld [vmem:[#allocation11 + $0xd8] sm:$0xff]
        %v1613 = vld [vmem:[#allocation11 + $0xe0] sm:$0xff]
        %v1614 = vld [vmem:[#allocation11 + $0xe8] sm:$0xff]
        %v1615 = vld [vmem:[#allocation11 + $0xf0] sm:$0xff]
        %v1616 = vld [vmem:[#allocation11 + $0xf8] sm:$0xff]
        %v1617 = vld [vmem:[%s10] sm:$0xf]
        %v1619 = vlaneseq
        %v1620 = vshrl.u32 %v1619, 7
        %v1621 = vsub.s32 0, %v1620
        %v1622 = vrot.slane %v1617, %v1621
        %v1623 = vlaneseq
        %v1624 = vshrl.u32 %v1623, 7
        %v1625 = vsub.s32 1, %v1624
        %v1626 = vrot.slane %v1617, %v1625
        %v1627 = vlaneseq
        %v1628 = vshrl.u32 %v1627, 7
        %v1629 = vsub.s32 2, %v1628
        %v1630 = vrot.slane %v1617, %v1629
        %v1631 = vlaneseq
        %v1632 = vshrl.u32 %v1631, 7
        %v1633 = vsub.s32 3, %v1632
        %v1634 = vrot.slane %v1617, %v1633
        %v1671 = vunpack.c.l.b16 %v1585
        %v1672 = vunpack.c.h.b16 %v1585
        %v1673 = vunpack.c.l.b16 %v1586
        %v1674 = vunpack.c.h.b16 %v1586
        %v1675 = vunpack.c.l.b16 %v1587
        %v1676 = vunpack.c.h.b16 %v1587
        %v1677 = vunpack.c.l.b16 %v1588
        %v1678 = vunpack.c.h.b16 %v1588
        %v1679 = vunpack.c.l.b16 %v1589
        %v1680 = vunpack.c.h.b16 %v1589
        %v1681 = vunpack.c.l.b16 %v1590
        %v1682 = vunpack.c.h.b16 %v1590
        %v1683 = vunpack.c.l.b16 %v1591
        %v1684 = vunpack.c.h.b16 %v1591
        %v1685 = vunpack.c.l.b16 %v1592
        %v1686 = vunpack.c.h.b16 %v1592
        %v1687 = vunpack.c.l.b16 %v1593
        %v1688 = vunpack.c.h.b16 %v1593
        %v1689 = vunpack.c.l.b16 %v1594
        %v1690 = vunpack.c.h.b16 %v1594
        %v1691 = vunpack.c.l.b16 %v1595
        %v1692 = vunpack.c.h.b16 %v1595
        %v1693 = vunpack.c.l.b16 %v1596
        %v1694 = vunpack.c.h.b16 %v1596
        %v1695 = vunpack.c.l.b16 %v1597
        %v1696 = vunpack.c.h.b16 %v1597
        %v1697 = vunpack.c.l.b16 %v1598
        %v1698 = vunpack.c.h.b16 %v1598
        %v1699 = vunpack.c.l.b16 %v1599
        %v1700 = vunpack.c.h.b16 %v1599
        %v1701 = vunpack.c.l.b16 %v1600
        %v1702 = vunpack.c.h.b16 %v1600
        %v1703 = vunpack.c.l.b16 %v1601
        %v1704 = vunpack.c.h.b16 %v1601
        %v1705 = vunpack.c.l.b16 %v1602
        %v1706 = vunpack.c.h.b16 %v1602
        %v1707 = vunpack.c.l.b16 %v1603
        %v1708 = vunpack.c.h.b16 %v1603
        %v1709 = vunpack.c.l.b16 %v1604
        %v1710 = vunpack.c.h.b16 %v1604
        %v1711 = vunpack.c.l.b16 %v1605
        %v1712 = vunpack.c.h.b16 %v1605
        %v1713 = vunpack.c.l.b16 %v1606
        %v1714 = vunpack.c.h.b16 %v1606
        %v1715 = vunpack.c.l.b16 %v1607
        %v1716 = vunpack.c.h.b16 %v1607
        %v1717 = vunpack.c.l.b16 %v1608
        %v1718 = vunpack.c.h.b16 %v1608
        %v1719 = vunpack.c.l.b16 %v1609
        %v1720 = vunpack.c.h.b16 %v1609
        %v1721 = vunpack.c.l.b16 %v1610
        %v1722 = vunpack.c.h.b16 %v1610
        %v1723 = vunpack.c.l.b16 %v1611
        %v1724 = vunpack.c.h.b16 %v1611
        %v1725 = vunpack.c.l.b16 %v1612
        %v1726 = vunpack.c.h.b16 %v1612
        %v1727 = vunpack.c.l.b16 %v1613
        %v1728 = vunpack.c.h.b16 %v1613
        %v1729 = vunpack.c.l.b16 %v1614
        %v1730 = vunpack.c.h.b16 %v1614
        %v1731 = vunpack.c.l.b16 %v1615
        %v1732 = vunpack.c.h.b16 %v1615
        %v1733 = vunpack.c.l.b16 %v1616
        %v1734 = vunpack.c.h.b16 %v1616
        %v1735 = vpack.c.b16 %v1675, %v1671
        %v1736 = vpack.c.b16 %v1676, %v1672
        %v1737 = vpack.c.b16 %v1677, %v1673
        %v1738 = vpack.c.b16 %v1678, %v1674
        %v1739 = vpack.c.b16 %v1683, %v1679
        %v1740 = vpack.c.b16 %v1684, %v1680
        %v1741 = vpack.c.b16 %v1685, %v1681
        %v1742 = vpack.c.b16 %v1686, %v1682
        %v1743 = vpack.c.b16 %v1691, %v1687
        %v1744 = vpack.c.b16 %v1692, %v1688
        %v1745 = vpack.c.b16 %v1693, %v1689
        %v1746 = vpack.c.b16 %v1694, %v1690
        %v1747 = vpack.c.b16 %v1699, %v1695
        %v1748 = vpack.c.b16 %v1700, %v1696
        %v1749 = vpack.c.b16 %v1701, %v1697
        %v1750 = vpack.c.b16 %v1702, %v1698
        %v1751 = vpack.c.b16 %v1707, %v1703
        %v1752 = vpack.c.b16 %v1708, %v1704
        %v1753 = vpack.c.b16 %v1709, %v1705
        %v1754 = vpack.c.b16 %v1710, %v1706
        %v1755 = vpack.c.b16 %v1715, %v1711
        %v1756 = vpack.c.b16 %v1716, %v1712
        %v1757 = vpack.c.b16 %v1717, %v1713
        %v1758 = vpack.c.b16 %v1718, %v1714
        %v1759 = vpack.c.b16 %v1723, %v1719
        %v1760 = vpack.c.b16 %v1724, %v1720
        %v1761 = vpack.c.b16 %v1725, %v1721
        %v1762 = vpack.c.b16 %v1726, %v1722
        %v1763 = vpack.c.b16 %v1731, %v1727
        %v1764 = vpack.c.b16 %v1732, %v1728
        %v1765 = vpack.c.b16 %v1733, %v1729
        %v1766 = vpack.c.b16 %v1734, %v1730
        %1799 = vmatprep.subr.bf16.mxu0 %v1764
        %1800 = vmatpush1.bf16.msra.mxu0 %v1763
        %1801 = vmatprep.subr.bf16.mxu0 %v1760
        %1802 = vmatpush1.bf16.msra.mxu0 %v1759
        %1803 = vmatprep.subr.bf16.mxu0 %v1756
        %1804 = vmatpush1.bf16.msra.mxu0 %v1755
        %1805 = vmatprep.subr.bf16.mxu0 %v1752
        %1806 = vmatpush1.bf16.msra.mxu0 %v1751
        %1807 = vmatprep.subr.bf16.mxu0 %v1748
        %1808 = vmatpush1.bf16.msra.mxu0 %v1747
        %1809 = vmatprep.subr.bf16.mxu0 %v1744
        %1810 = vmatpush1.bf16.msra.mxu0 %v1743
        %1811 = vmatprep.subr.bf16.mxu0 %v1740
        %1812 = vmatpush1.bf16.msra.mxu0 %v1739
        %1813 = vmatprep.subr.bf16.mxu0 %v1736
        %1814 = vmatpush1.bf16.msra.mxu0 %v1735
        %1815 = vmatprep.subr.bf16.mxu0 0
        %1816 = vmatpush2.bf16.msra.mxu0 0
        %1817 = vmatprep.subr.bf16.mxu0 0
        %1818 = vmatpush2.bf16.msra.mxu0 0
        %1819 = vmatprep.subr.bf16.mxu0 0
        %1820 = vmatpush2.bf16.msra.mxu0 0
        %1821 = vmatprep.subr.bf16.mxu0 0
        %1822 = vmatpush2.bf16.msra.mxu0 0
        %1823 = vmatprep.subr.bf16.mxu0 0
        %1824 = vmatpush2.bf16.msra.mxu0 0
        %1825 = vmatprep.subr.bf16.mxu0 0
        %1826 = vmatpush2.bf16.msra.mxu0 0
        %1827 = vmatprep.subr.bf16.mxu0 0
        %1828 = vmatpush2.bf16.msra.mxu0 0
        %1829 = vmatprep.subr.bf16.mxu0 0
        %1830 = vmatpush2.bf16.msra.mxu0 0
        %1831 = vmatprep.mubr.bf16.mxu0 0
        %1832 = vmatmul.mubr.bf16.gmra.mxu0 %v1584
        %v1833 = vpop.f32.mrf.mxu0
        %v1834 = vadd.f32 %v1622, %v1833
        %v1835 = vpop.f32.mrf.mxu0
        %v1836 = vadd.f32 %v1626, %v1835
        %v1837 = vpop.f32.mrf.mxu0
        %v1838 = vpop.f32.mrf.mxu0
        %1839 = vdwg.mxu0
        %1840 = vmatprep.subr.bf16.mxu0 %v1766
        %1841 = vmatpush1.bf16.msra.mxu0 %v1765
        %1842 = vmatprep.subr.bf16.mxu0 %v1762
        %1843 = vmatpush1.bf16.msra.mxu0 %v1761
        %1844 = vmatprep.subr.bf16.mxu0 %v1758
        %1845 = vmatpush1.bf16.msra.mxu0 %v1757
        %1846 = vmatprep.subr.bf16.mxu0 %v1754
        %1847 = vmatpush1.bf16.msra.mxu0 %v1753
        %1848 = vmatprep.subr.bf16.mxu0 %v1750
        %1849 = vmatpush1.bf16.msra.mxu0 %v1749
        %1850 = vmatprep.subr.bf16.mxu0 %v1746
        %1851 = vmatpush1.bf16.msra.mxu0 %v1745
        %1852 = vmatprep.subr.bf16.mxu0 %v1742
        %1853 = vmatpush1.bf16.msra.mxu0 %v1741
        %1854 = vmatprep.subr.bf16.mxu0 %v1738
        %1855 = vmatpush1.bf16.msra.mxu0 %v1737
        %1856 = vmatprep.subr.bf16.mxu0 0
        %1857 = vmatpush2.bf16.msra.mxu0 0
        %1858 = vmatprep.subr.bf16.mxu0 0
        %1859 = vmatpush2.bf16.msra.mxu0 0
        %1860 = vmatprep.subr.bf16.mxu0 0
        %1861 = vmatpush2.bf16.msra.mxu0 0
        %1862 = vmatprep.subr.bf16.mxu0 0
        %1863 = vmatpush2.bf16.msra.mxu0 0
        %1864 = vmatprep.subr.bf16.mxu0 0
        %1865 = vmatpush2.bf16.msra.mxu0 0
        %1866 = vmatprep.subr.bf16.mxu0 0
        %1867 = vmatpush2.bf16.msra.mxu0 0
        %1868 = vmatprep.subr.bf16.mxu0 0
        %1869 = vmatpush2.bf16.msra.mxu0 0
        %1870 = vmatprep.subr.bf16.mxu0 0
        %1871 = vmatpush2.bf16.msra.mxu0 0
        %1872 = vmatprep.mubr.bf16.mxu0 0
        %1873 = vmatmul.mubr.bf16.gmra.mxu0 %v1584
        %v1874 = vpop.f32.mrf.mxu0
        %v1875 = vadd.f32 %v1630, %v1874
        %v1876 = vpop.f32.mrf.mxu0
        %v1877 = vadd.f32 %v1634, %v1876
        %v1878 = vpop.f32.mrf.mxu0
        %v1879 = vpop.f32.mrf.mxu0
        %1880 = vdwg.mxu0
        %v1881 = vmul.f32 %v1834, 0.5
        %v1882 = vmul.f32 %v1836, 0.5
        %v1883 = vmul.f32 %v1875, 0.5
        %v1884 = vmul.f32 %v1877, 0.5
        %v1885 = vmul.f32 %v1834, 0.70710677
        %v1886 = vmul.f32 %v1836, 0.70710677
        %v1887 = vmul.f32 %v1875, 0.70710677
        %v1888 = vmul.f32 %v1877, 0.70710677
        %v1889 = verf.f32.pop %v1885
        %v1890 = verf.f32.pop %v1886
        %v1891 = verf.f32.pop %v1887
        %v1892 = verf.f32.pop %v1888
        %v1893 = vadd.f32 %v1889, 1.0
        %v1894 = vadd.f32 %v1890, 1.0
        %v1895 = vadd.f32 %v1891, 1.0
        %v1896 = vadd.f32 %v1892, 1.0
        %v1897 = vmul.f32 %v1881, %v1893
        %v1898 = vmul.f32 %v1882, %v1894
        %v1899 = vmul.f32 %v1883, %v1895
        %v1900 = vmul.f32 %v1884, %v1896
        %v1901 = vpack.c.bf16 %v1897, %v1897
        %v1902 = vpack.c.bf16 %v1898, %v1898
        %v1903 = vpack.c.bf16 %v1899, %v1899
        %v1904 = vpack.c.bf16 %v1900, %v1900
        %v1905 = vld [vmem:[#allocation13] sm:$0xf]
        %v1906 = vld [vmem:[#allocation13 + $0x4] sm:$0xf]
        %v1907 = vld [vmem:[#allocation13 + $0x8] sm:$0xf]
        %v1908 = vld [vmem:[#allocation13 + $0xc] sm:$0xf]
        %v1909 = vld [vmem:[#allocation13 + $0x10] sm:$0xf]
        %v1910 = vld [vmem:[#allocation13 + $0x14] sm:$0xf]
        %v1911 = vld [vmem:[#allocation13 + $0x18] sm:$0xf]
        %v1912 = vld [vmem:[#allocation13 + $0x1c] sm:$0xf]
        %v1913 = vld [vmem:[#allocation13 + $0x20] sm:$0xf]
        %v1914 = vld [vmem:[#allocation13 + $0x24] sm:$0xf]
        %v1915 = vld [vmem:[#allocation13 + $0x28] sm:$0xf]
        %v1916 = vld [vmem:[#allocation13 + $0x2c] sm:$0xf]
        %v1917 = vld [vmem:[#allocation13 + $0x30] sm:$0xf]
        %v1918 = vld [vmem:[#allocation13 + $0x34] sm:$0xf]
        %v1919 = vld [vmem:[#allocation13 + $0x38] sm:$0xf]
        %v1920 = vld [vmem:[#allocation13 + $0x3c] sm:$0xf]
        %v1921 = vld [vmem:[#allocation13 + $0x40] sm:$0xf]
        %v1922 = vld [vmem:[#allocation13 + $0x44] sm:$0xf]
        %v1923 = vld [vmem:[#allocation13 + $0x48] sm:$0xf]
        %v1924 = vld [vmem:[#allocation13 + $0x4c] sm:$0xf]
        %v1925 = vld [vmem:[#allocation13 + $0x50] sm:$0xf]
        %v1926 = vld [vmem:[#allocation13 + $0x54] sm:$0xf]
        %v1927 = vld [vmem:[#allocation13 + $0x58] sm:$0xf]
        %v1928 = vld [vmem:[#allocation13 + $0x5c] sm:$0xf]
        %v1929 = vld [vmem:[#allocation13 + $0x60] sm:$0xf]
        %v1930 = vld [vmem:[#allocation13 + $0x64] sm:$0xf]
        %v1931 = vld [vmem:[#allocation13 + $0x68] sm:$0xf]
        %v1932 = vld [vmem:[#allocation13 + $0x6c] sm:$0xf]
        %v1933 = vld [vmem:[#allocation13 + $0x70] sm:$0xf]
        %v1934 = vld [vmem:[#allocation13 + $0x74] sm:$0xf]
        %v1935 = vld [vmem:[#allocation13 + $0x78] sm:$0xf]
        %v1936 = vld [vmem:[#allocation13 + $0x7c] sm:$0xf]
        %v1937 = vld [vmem:[#allocation13 + $0x80] sm:$0xf]
        %v1938 = vld [vmem:[#allocation13 + $0x84] sm:$0xf]
        %v1939 = vld [vmem:[#allocation13 + $0x88] sm:$0xf]
        %v1940 = vld [vmem:[#allocation13 + $0x8c] sm:$0xf]
        %v1941 = vld [vmem:[#allocation13 + $0x90] sm:$0xf]
        %v1942 = vld [vmem:[#allocation13 + $0x94] sm:$0xf]
        %v1943 = vld [vmem:[#allocation13 + $0x98] sm:$0xf]
        %v1944 = vld [vmem:[#allocation13 + $0x9c] sm:$0xf]
        %v1945 = vld [vmem:[#allocation13 + $0xa0] sm:$0xf]
        %v1946 = vld [vmem:[#allocation13 + $0xa4] sm:$0xf]
        %v1947 = vld [vmem:[#allocation13 + $0xa8] sm:$0xf]
        %v1948 = vld [vmem:[#allocation13 + $0xac] sm:$0xf]
        %v1949 = vld [vmem:[#allocation13 + $0xb0] sm:$0xf]
        %v1950 = vld [vmem:[#allocation13 + $0xb4] sm:$0xf]
        %v1951 = vld [vmem:[#allocation13 + $0xb8] sm:$0xf]
        %v1952 = vld [vmem:[#allocation13 + $0xbc] sm:$0xf]
        %v1953 = vld [vmem:[#allocation13 + $0xc0] sm:$0xf]
        %v1954 = vld [vmem:[#allocation13 + $0xc4] sm:$0xf]
        %v1955 = vld [vmem:[#allocation13 + $0xc8] sm:$0xf]
        %v1956 = vld [vmem:[#allocation13 + $0xcc] sm:$0xf]
        %v1957 = vld [vmem:[#allocation13 + $0xd0] sm:$0xf]
        %v1958 = vld [vmem:[#allocation13 + $0xd4] sm:$0xf]
        %v1959 = vld [vmem:[#allocation13 + $0xd8] sm:$0xf]
        %v1960 = vld [vmem:[#allocation13 + $0xdc] sm:$0xf]
        %v1961 = vld [vmem:[#allocation13 + $0xe0] sm:$0xf]
        %v1962 = vld [vmem:[#allocation13 + $0xe4] sm:$0xf]
        %v1963 = vld [vmem:[#allocation13 + $0xe8] sm:$0xf]
        %v1964 = vld [vmem:[#allocation13 + $0xec] sm:$0xf]
        %v1965 = vld [vmem:[#allocation13 + $0xf0] sm:$0xf]
        %v1966 = vld [vmem:[#allocation13 + $0xf4] sm:$0xf]
        %v1967 = vld [vmem:[#allocation13 + $0xf8] sm:$0xf]
        %v1968 = vld [vmem:[#allocation13 + $0xfc] sm:$0xf]
        %v1969 = vld [vmem:[%s12] sm:$0x1]
        %v1971 = vlaneseq
        %v1972 = vshrl.u32 %v1971, 7
        %v1973 = vsub.s32 0, %v1972
        %v1974 = vrot.slane %v1969, %v1973
        %v2040 = vunpack.c.l.b16 %v1905
        %v2041 = vunpack.c.l.b16 %v1906
        %v2042 = vunpack.c.l.b16 %v1907
        %v2043 = vunpack.c.l.b16 %v1908
        %v2044 = vunpack.c.l.b16 %v1909
        %v2045 = vunpack.c.l.b16 %v1910
        %v2046 = vunpack.c.l.b16 %v1911
        %v2047 = vunpack.c.l.b16 %v1912
        %v2048 = vunpack.c.l.b16 %v1913
        %v2049 = vunpack.c.l.b16 %v1914
        %v2050 = vunpack.c.l.b16 %v1915
        %v2051 = vunpack.c.l.b16 %v1916
        %v2052 = vunpack.c.l.b16 %v1917
        %v2053 = vunpack.c.l.b16 %v1918
        %v2054 = vunpack.c.l.b16 %v1919
        %v2055 = vunpack.c.l.b16 %v1920
        %v2056 = vunpack.c.l.b16 %v1921
        %v2057 = vunpack.c.l.b16 %v1922
        %v2058 = vunpack.c.l.b16 %v1923
        %v2059 = vunpack.c.l.b16 %v1924
        %v2060 = vunpack.c.l.b16 %v1925
        %v2061 = vunpack.c.l.b16 %v1926
        %v2062 = vunpack.c.l.b16 %v1927
        %v2063 = vunpack.c.l.b16 %v1928
        %v2064 = vunpack.c.l.b16 %v1929
        %v2065 = vunpack.c.l.b16 %v1930
        %v2066 = vunpack.c.l.b16 %v1931
        %v2067 = vunpack.c.l.b16 %v1932
        %v2068 = vunpack.c.l.b16 %v1933
        %v2069 = vunpack.c.l.b16 %v1934
        %v2070 = vunpack.c.l.b16 %v1935
        %v2071 = vunpack.c.l.b16 %v1936
        %v2072 = vunpack.c.l.b16 %v1937
        %v2073 = vunpack.c.l.b16 %v1938
        %v2074 = vunpack.c.l.b16 %v1939
        %v2075 = vunpack.c.l.b16 %v1940
        %v2076 = vunpack.c.l.b16 %v1941
        %v2077 = vunpack.c.l.b16 %v1942
        %v2078 = vunpack.c.l.b16 %v1943
        %v2079 = vunpack.c.l.b16 %v1944
        %v2080 = vunpack.c.l.b16 %v1945
        %v2081 = vunpack.c.l.b16 %v1946
        %v2082 = vunpack.c.l.b16 %v1947
        %v2083 = vunpack.c.l.b16 %v1948
        %v2084 = vunpack.c.l.b16 %v1949
        %v2085 = vunpack.c.l.b16 %v1950
        %v2086 = vunpack.c.l.b16 %v1951
        %v2087 = vunpack.c.l.b16 %v1952
        %v2088 = vunpack.c.l.b16 %v1953
        %v2089 = vunpack.c.l.b16 %v1954
        %v2090 = vunpack.c.l.b16 %v1955
        %v2091 = vunpack.c.l.b16 %v1956
        %v2092 = vunpack.c.l.b16 %v1957
        %v2093 = vunpack.c.l.b16 %v1958
        %v2094 = vunpack.c.l.b16 %v1959
        %v2095 = vunpack.c.l.b16 %v1960
        %v2096 = vunpack.c.l.b16 %v1961
        %v2097 = vunpack.c.l.b16 %v1962
        %v2098 = vunpack.c.l.b16 %v1963
        %v2099 = vunpack.c.l.b16 %v1964
        %v2100 = vunpack.c.l.b16 %v1965
        %v2101 = vunpack.c.l.b16 %v1966
        %v2102 = vunpack.c.l.b16 %v1967
        %v2103 = vunpack.c.l.b16 %v1968
        %v2104 = vpack.c.b16 %v2041, %v2040
        %v2105 = vpack.c.b16 %v2043, %v2042
        %v2106 = vpack.c.b16 %v2045, %v2044
        %v2107 = vpack.c.b16 %v2047, %v2046
        %v2108 = vpack.c.b16 %v2049, %v2048
        %v2109 = vpack.c.b16 %v2051, %v2050
        %v2110 = vpack.c.b16 %v2053, %v2052
        %v2111 = vpack.c.b16 %v2055, %v2054
        %v2112 = vpack.c.b16 %v2057, %v2056
        %v2113 = vpack.c.b16 %v2059, %v2058
        %v2114 = vpack.c.b16 %v2061, %v2060
        %v2115 = vpack.c.b16 %v2063, %v2062
        %v2116 = vpack.c.b16 %v2065, %v2064
        %v2117 = vpack.c.b16 %v2067, %v2066
        %v2118 = vpack.c.b16 %v2069, %v2068
        %v2119 = vpack.c.b16 %v2071, %v2070
        %v2120 = vpack.c.b16 %v2073, %v2072
        %v2121 = vpack.c.b16 %v2075, %v2074
        %v2122 = vpack.c.b16 %v2077, %v2076
        %v2123 = vpack.c.b16 %v2079, %v2078
        %v2124 = vpack.c.b16 %v2081, %v2080
        %v2125 = vpack.c.b16 %v2083, %v2082
        %v2126 = vpack.c.b16 %v2085, %v2084
        %v2127 = vpack.c.b16 %v2087, %v2086
        %v2128 = vpack.c.b16 %v2089, %v2088
        %v2129 = vpack.c.b16 %v2091, %v2090
        %v2130 = vpack.c.b16 %v2093, %v2092
        %v2131 = vpack.c.b16 %v2095, %v2094
        %v2132 = vpack.c.b16 %v2097, %v2096
        %v2133 = vpack.c.b16 %v2099, %v2098
        %v2134 = vpack.c.b16 %v2101, %v2100
        %v2135 = vpack.c.b16 %v2103, %v2102
        %2168 = vmatprep.subr.bf16.mxu0 0
        %2169 = vmatpush1.bf16.msra.mxu0 %v2111
        %2170 = vmatprep.subr.bf16.mxu0 0
        %2171 = vmatpush1.bf16.msra.mxu0 %v2110
        %2172 = vmatprep.subr.bf16.mxu0 0
        %2173 = vmatpush1.bf16.msra.mxu0 %v2109
        %2174 = vmatprep.subr.bf16.mxu0 0
        %2175 = vmatpush1.bf16.msra.mxu0 %v2108
        %2176 = vmatprep.subr.bf16.mxu0 0
        %2177 = vmatpush1.bf16.msra.mxu0 %v2107
        %2178 = vmatprep.subr.bf16.mxu0 0
        %2179 = vmatpush1.bf16.msra.mxu0 %v2106
        %2180 = vmatprep.subr.bf16.mxu0 0
        %2181 = vmatpush1.bf16.msra.mxu0 %v2105
        %2182 = vmatprep.subr.bf16.mxu0 0
        %2183 = vmatpush1.bf16.msra.mxu0 %v2104
        %2184 = vmatprep.subr.bf16.mxu0 0
        %2185 = vmatpush2.bf16.msra.mxu0 %v2119
        %2186 = vmatprep.subr.bf16.mxu0 0
        %2187 = vmatpush2.bf16.msra.mxu0 %v2118
        %2188 = vmatprep.subr.bf16.mxu0 0
        %2189 = vmatpush2.bf16.msra.mxu0 %v2117
        %2190 = vmatprep.subr.bf16.mxu0 0
        %2191 = vmatpush2.bf16.msra.mxu0 %v2116
        %2192 = vmatprep.subr.bf16.mxu0 0
        %2193 = vmatpush2.bf16.msra.mxu0 %v2115
        %2194 = vmatprep.subr.bf16.mxu0 0
        %2195 = vmatpush2.bf16.msra.mxu0 %v2114
        %2196 = vmatprep.subr.bf16.mxu0 0
        %2197 = vmatpush2.bf16.msra.mxu0 %v2113
        %2198 = vmatprep.subr.bf16.mxu0 0
        %2199 = vmatpush2.bf16.msra.mxu0 %v2112
        %2200 = vmatprep.mubr.bf16.mxu0 %v1902
        %2201 = vmatmul.mubr.bf16.gmra.mxu0 %v1901
        %v2202 = vpop.f32.mrf.mxu0
        %v2203 = vadd.f32 %v1974, %v2202
        %v2204 = vpop.f32.mrf.mxu0
        %v2205 = vpop.f32.mrf.mxu0
        %v2206 = vpop.f32.mrf.mxu0
        %2207 = vdwg.mxu0
        %2208 = vmatprep.subr.bf16.mxu0 0
        %2209 = vmatpush1.bf16.msra.mxu0 %v2127
        %2210 = vmatprep.subr.bf16.mxu0 0
        %2211 = vmatpush1.bf16.msra.mxu0 %v2126
        %2212 = vmatprep.subr.bf16.mxu0 0
        %2213 = vmatpush1.bf16.msra.mxu0 %v2125
        %2214 = vmatprep.subr.bf16.mxu0 0
        %2215 = vmatpush1.bf16.msra.mxu0 %v2124
        %2216 = vmatprep.subr.bf16.mxu0 0
        %2217 = vmatpush1.bf16.msra.mxu0 %v2123
        %2218 = vmatprep.subr.bf16.mxu0 0
        %2219 = vmatpush1.bf16.msra.mxu0 %v2122
        %2220 = vmatprep.subr.bf16.mxu0 0
        %2221 = vmatpush1.bf16.msra.mxu0 %v2121
        %2222 = vmatprep.subr.bf16.mxu0 0
        %2223 = vmatpush1.bf16.msra.mxu0 %v2120
        %2224 = vmatprep.subr.bf16.mxu0 0
        %2225 = vmatpush2.bf16.msra.mxu0 %v2135
        %2226 = vmatprep.subr.bf16.mxu0 0
        %2227 = vmatpush2.bf16.msra.mxu0 %v2134
        %2228 = vmatprep.subr.bf16.mxu0 0
        %2229 = vmatpush2.bf16.msra.mxu0 %v2133
        %2230 = vmatprep.subr.bf16.mxu0 0
        %2231 = vmatpush2.bf16.msra.mxu0 %v2132
        %2232 = vmatprep.subr.bf16.mxu0 0
        %2233 = vmatpush2.bf16.msra.mxu0 %v2131
        %2234 = vmatprep.subr.bf16.mxu0 0
        %2235 = vmatpush2.bf16.msra.mxu0 %v2130
        %2236 = vmatprep.subr.bf16.mxu0 0
        %2237 = vmatpush2.bf16.msra.mxu0 %v2129
        %2238 = vmatprep.subr.bf16.mxu0 0
        %2239 = vmatpush2.bf16.msra.mxu0 %v2128
        %2240 = vmatprep.mubr.bf16.mxu0 %v1904
        %2241 = vmatmul.mubr.bf16.gmra.mxu0 %v1903
        %v2242 = vpop.f32.mrf.mxu0
        %v2243 = vadd.f32 %v2203, %v2242
        %v2244 = vpop.f32.mrf.mxu0
        %v2245 = vpop.f32.mrf.mxu0
        %v2246 = vpop.f32.mrf.mxu0
        %2247 = vdwg.mxu0
        %v2248 = vadd.f32 %v1556, %v2243
        %2249 = vst [vmem:[%s538] sm:$0xff] %v2248
        %s2250 = sand.u32 %s319, 1
        %s2251 = scalar_lea.sflag [#allocation4], %s2250
        %s2252 = sand.u32 %s319, 1
        %s2253 = smul.addr %s2252, 8
        %s2254 = scalar_lea.vmem [#allocation14], %s2253
        // Predicated region
        $region101: #{tpu_custom_call.1} parent=71 // pred_check
          %p2255 = pneg %p329
        $region102: #{tpu_custom_call.1} parent=71 // pred_check_branch
          %2257 = sbr.rel (%p2255) target = $region104
        $region103: #{tpu_custom_call.1} parent=71 // pred_region
          %s2259 = ssub.s32 128, 128
          %2260 = vsyncadd %s2251, %s2259
          %s2261 = smul.addr %s33, 128
          %s2262 = scalar_lea.hbm %s13, %s2261
          %s2264 = sshll.u32 %s2254, 4
          %s2265 = int_to_ptr.vmem [resolvable:$true] %s2264
          %2267 = dma.vmem_to_hbm [thread:$0]  %s2265, 128, %s2262, %s2251
        $region104: #{tpu_custom_call.1} parent=71 // pred_fallthru
          _
      $region72: #{tpu_custom_call.1} parent=5 // pred_fallthru
        _
      %p2268 = scmp.le.s32.totalorder 2, %s28
      // Predicated region
      $region105: #{tpu_custom_call.1} parent=5 // pred_check
        %p2269 = pneg %p2268
      $region106: #{tpu_custom_call.1} parent=5 // pred_check_branch
        %2271 = sbr.rel (%p2269) target = $region108
      $region107: #{tpu_custom_call.1} parent=5 // pred_region
        %s2272 = ssub.s32 %s28, 2
        // Predicated region
        $region109: #{tpu_custom_call.1} parent=107 // pred_check
          %p2273 = pneg %p335
        $region110: #{tpu_custom_call.1} parent=107 // pred_check_branch
          %2275 = sbr.rel (%p2273) target = $region112
        $region111: #{tpu_custom_call.1} parent=107 // pred_region
          %s2276 = sand.u32 %s320, 1
          %s2277 = scalar_lea.sflag [#allocation4], %s2276
          %s2278 = sand.u32 %s320, 1
          %s2279 = smul.addr %s2278, 8
          %s2280 = scalar_lea.vmem [#allocation14], %s2279
          %2281 = dma.done %s2277, 128
        $region112: #{tpu_custom_call.1} parent=107 // pred_fallthru
          _
      $region108: #{tpu_custom_call.1} parent=5 // pred_fallthru
        _
    $region6: #{tpu_custom_call.1} parent=1 // loop_footer
      %s32 = sadd.s32 1, %s28
    $region7: #{tpu_custom_call.1} parent=1 // loop_footer_branch
      %27 = sbr.rel target = $region3
    $region8: #{tpu_custom_call.1} parent=1 // loop_exit
      _
    %2282 = vsyncpa [#allocation3], 1
    %s2283 = scalar_lea.sflag [#allocation3], 1
    %2284 = vsyncpa %s2283, 1
    %2285 = vsyncpa [#allocation6], 1
    %2286 = vsyncpa [#allocation9], 1
    %2287 = vsyncpa [#allocation12], 1
    %2288 = vsyncpa [#allocation4], 1
    %s2289 = scalar_lea.sflag [#allocation4], 1
    %2290 = vsyncpa %s2289, 1

</llo_original>
